<compile_context>
chip_gen: v6e
topology: v6e:2x2x1
jax: 0.10.0
libtpu: 0.0.40
codegen_flags: <defaults>
</compile_context>

<pallas_src>
import functools

import jax
import jax.numpy as jnp
from jax import lax
from jax.experimental import pallas as pl
from jax.experimental.pallas import tpu as pltpu

EPS = 1e-5


# ---------------------------------------------------------------------------
# Budget / tiling helpers
# ---------------------------------------------------------------------------
def _vmem_budget_bytes():
    """Generation-aware VMEM budget (never above the physical capacity)."""
    try:
        phys = int(getattr(pltpu.get_tpu_info(), "vmem_capacity_bytes", 0))
    except Exception:
        phys = 0
    if phys >= 128 * 1024 * 1024:                     # v5e / v6e class
        return 96 * 1024 * 1024
    if phys > 0:                                      # v7x class (64 MiB physical)
        return max(32 * 1024 * 1024, (phys * 3) // 4)
    return 48 * 1024 * 1024                           # unknown: conservative


def _pick_tile_rows(hout, wout, w_in, cin, cout, stride, budget, tile_rows):
    """Largest divisor of hout whose per-step working set fits the VMEM budget."""
    def est(tq):
        rows_in = (tq - 1) * stride + 3
        b = 2 * tq * stride * w_in * cin * 4          # x main block (f32, double-buffered)
        b += 6 * w_in * max(cin, cout) * 4            # halo row blocks
        b += rows_in * (w_in + 2) * cin * 2           # conv1 padded scratch (bf16)
        b += (tq + 2) * (wout + 2) * cout * 2         # conv2 padded scratch (bf16)
        b += 4 * tq * wout * cout * 2                 # z block (bf16, in + out, dbuf)
        b += 2 * tq * wout * cout * 4                 # final out block (f32, dbuf)
        b += 2 * tq * wout * 9 * max(cin, cout) * 2   # in-register im2col patch
        b += 4 * 9 * max(cin, cout) * cout * 2        # conv weights (dbuf)
        return b

    cap = hout if tile_rows is None else max(1, min(tile_rows, hout))
    best = 1
    for tq in range(1, cap + 1):
        if hout % tq == 0 and 2 * est(tq) <= budget:
            best = tq
    return best


# ---------------------------------------------------------------------------
# In-kernel helpers
# ---------------------------------------------------------------------------
def _bn_relu(v, scale, shift):
    return jnp.maximum(v * scale + shift, 0.0)


def _conv3x3_from_padded(yp_ref, w_ref, *, stride, rows_out, cols_out, cin, fat_k):
    """3x3 conv over the zero-haloed bf16 scratch yp_ref of shape (rows_in, W+2, Cin).

    fat_k=True : build the (rows*cols, 9*Cin) patch in registers (one concatenate) and
                 issue ONE fat-K MXU matmul (best while Cin is far below the MXU depth).
    fat_k=False: 9 direct K=Cin dots accumulated in f32 (Cin already fills the MXU depth;
                 avoids the patch's register/VMEM footprint).
    """
    def tap(dy, dx):
        if stride == 1:
            v = yp_ref[dy:dy + rows_out, dx:dx + cols_out, :]
        else:
            v = yp_ref[pl.ds(dy, rows_out, stride), pl.ds(dx, cols_out, stride), :]
        return v.reshape(rows_out * cols_out, cin)

    if fat_k:
        pat = jnp.concatenate([tap(dy, dx) for dy in range(3) for dx in range(3)],
                              axis=-1)
        return jnp.dot(pat, w_ref[...], preferred_element_type=jnp.float32)

    acc = None
    for dy in range(3):
        for dx in range(3):
            k = (dy * 3 + dx) * cin
            d = jnp.dot(tap(dy, dx), w_ref[k:k + cin, :],
                        preferred_element_type=jnp.float32)
            acc = d if acc is None else acc + d
    return acc


# ---------------------------------------------------------------------------
# Kernels
# ---------------------------------------------------------------------------
def _channel_stats_kernel(x_ref, s_ref):
    """Per-(sample, row-tile) channel [sum, sum-of-squares] partials for BN1."""
    c = x_ref.shape[-1]
    x = x_ref[...].reshape(-1, c)
    s_ref[...] = jnp.concatenate(
        [jnp.sum(x, axis=0, keepdims=True),
         jnp.sum(x * x, axis=0, keepdims=True)], axis=0)[None, None]


def _bn_relu_conv1_kernel(a_ref, b_ref, xt_ref, xm_ref, *rest, stride, tq, fat_k):
    """BN1 + ReLU + 3x3 conv (stride) for one (sample, output-row-tile) block.

    Also emits per-tile channel sums of the conv output (reduced outside into the global
    BN2 batch statistics).  conv1's bias is omitted: it cancels exactly through BN2's
    batch statistics (training-mode BN).
    """
    if stride == 1:
        xb_ref, w_ref, z_ref, zs_ref, yp_ref = rest
    else:
        w_ref, z_ref, zs_ref, yp_ref = rest
    t = pl.program_id(1)
    nt = pl.num_programs(1)
    rows_m, w_in, cin = xm_ref.shape[1], xm_ref.shape[2], xm_ref.shape[3]
    wout, cout = z_ref.shape[2], z_ref.shape[3]
    a, b = a_ref[...], b_ref[...]
    bf = yp_ref.dtype

    # Zero W-halo columns (redone each step: megacore-safe, two thin stores).
    zcol = jnp.zeros((yp_ref.shape[0], 1, cin), bf)
    yp_ref[:, 0:1, :] = zcol
    yp_ref[:, w_in + 1:w_in + 2, :] = zcol

    # Main rows and H-halo rows (halo rows masked to zero at the image boundary).
    yp_ref[1:1 + rows_m, 1:w_in + 1, :] = _bn_relu(xm_ref[...][0], a, b).astype(bf)
    top = _bn_relu(xt_ref[...][0], a, b) * (t > 0).astype(jnp.float32)
    yp_ref[0:1, 1:w_in + 1, :] = top.astype(bf)
    if stride == 1:
        bot = _bn_relu(xb_ref[...][0], a, b) * (t < nt - 1).astype(jnp.float32)
        yp_ref[1 + rows_m:2 + rows_m, 1:w_in + 1, :] = bot.astype(bf)

    acc = _conv3x3_from_padded(yp_ref, w_ref, stride=stride, rows_out=tq,
                               cols_out=wout, cin=cin, fat_k=fat_k)
    z_ref[...] = acc.reshape(1, tq, wout, cout).astype(z_ref.dtype)   # bf16 to HBM
    zs_ref[...] = jnp.concatenate(
        [jnp.sum(acc, axis=0, keepdims=True),
         jnp.sum(acc * acc, axis=0, keepdims=True)], axis=0)[None, None]


def _bn_relu_conv2_add_kernel(a_ref, b_ref, zt_ref, zm_ref, zb_ref, w_ref, cb_ref,
                              xsc_ref, *rest, stride, tq, has_proj, fat_k):
    """BN2 + ReLU + 3x3 conv (+bias) + shortcut add for one (sample, row-tile) block."""
    if has_proj:
        ws_ref, bs_ref, out_ref, yp_ref = rest
    else:
        out_ref, yp_ref = rest
    t = pl.program_id(1)
    nt = pl.num_programs(1)
    wout, cout = zm_ref.shape[2], zm_ref.shape[3]
    cin = xsc_ref.shape[3]
    a, b = a_ref[...], b_ref[...]
    bf = yp_ref.dtype

    zcol = jnp.zeros((tq + 2, 1, cout), bf)
    yp_ref[:, 0:1, :] = zcol
    yp_ref[:, wout + 1:wout + 2, :] = zcol

    yp_ref[1:tq + 1, 1:wout + 1, :] = _bn_relu(
        zm_ref[...][0].astype(jnp.float32), a, b).astype(bf)
    top = _bn_relu(zt_ref[...][0].astype(jnp.float32), a, b) * (t > 0).astype(jnp.float32)
    yp_ref[0:1, 1:wout + 1, :] = top.astype(bf)
    bot = _bn_relu(zb_ref[...][0].astype(jnp.float32), a, b) * (t < nt - 1).astype(jnp.float32)
    yp_ref[tq + 1:tq + 2, 1:wout + 1, :] = bot.astype(bf)

    r = _conv3x3_from_padded(yp_ref, w_ref, stride=1, rows_out=tq, cols_out=wout,
                             cin=cout, fat_k=fat_k) + cb_ref[...]

    # Shortcut: stride-s spatial sub-sampling of x done in-kernel (no HBM round trip).
    if stride == 1:
        xs = xsc_ref[...][0].reshape(tq * wout, cin)
    else:
        xs = xsc_ref[pl.ds(0, 1), pl.ds(0, tq, stride),
                     pl.ds(0, wout, stride), :].reshape(tq * wout, cin)
    if has_proj:
        sc = jnp.dot(xs.astype(jnp.bfloat16), ws_ref[...],
                     preferred_element_type=jnp.float32) + bs_ref[...]
    else:
        sc = xs                                      # identity: cin == cout, stride == 1
    out_ref[...] = (r + sc).reshape(1, tq, wout, cout).astype(out_ref.dtype)


# ---------------------------------------------------------------------------
# Wrapper
# ---------------------------------------------------------------------------
def _fold_bn(stats, count, gamma, beta):
    """Fold BatchNorm (batch statistics, biased variance) + affine into scale/shift."""
    s = jnp.sum(stats, axis=(0, 1))                  # (2, C)
    mean = s[0] / count
    var = jnp.maximum(s[1] / count - mean * mean, 0.0)
    scale = gamma.reshape(-1) * lax.rsqrt(var + EPS)
    shift = beta.reshape(-1) - mean * scale
    return scale.reshape(1, -1), shift.reshape(1, -1)


@functools.partial(jax.jit, static_argnums=(2, 3))
def preact_basic(x_nchw, p, stride, tile_rows=None):
    # TODO(synk): keep the whole network NHWC end-to-end to drop this relayout.
    x = jnp.transpose(x_nchw, (0, 2, 3, 1)).astype(jnp.float32)   # NCHW -> NHWC
    n, h, w, cin = x.shape
    cout = p["w1"].shape[-1]
    assert h % stride == 0 and w % stride == 0, "stride must divide H and W"
    hout, wout = h // stride, w // stride
    has_proj = "ws" in p

    budget = _vmem_budget_bytes()
    tq = _pick_tile_rows(hout, wout, w, cin, cout, stride, budget, tile_rows)
    nt = hout // tq
    rr = tq * stride                       # input rows consumed per output-row tile
    rows_in1 = (tq - 1) * stride + 3       # conv1 padded-scratch rows
    fat_k1 = cin < 128                     # fat-K patch only below the MXU depth
    fat_k2 = cout < 128

    cparams = pltpu.CompilerParams(
        dimension_semantics=("parallel", "parallel"),
        vmem_limit_bytes=budget)

    # ---- pass 1: per-(sample, row-tile) channel sums of x -> BN1 batch stats ----
    xstats = pl.pallas_call(
        _channel_stats_kernel,
        grid=(n, nt),
        in_specs=[pl.BlockSpec((1, rr, w, cin), lambda i, t: (i, t, 0, 0))],
        out_specs=pl.BlockSpec((1, 1, 2, cin), lambda i, t: (i, t, 0, 0)),
        out_shape=jax.ShapeDtypeStruct((n, nt, 2, cin), jnp.float32),
        compiler_params=cparams,
    )(x)
    a1, b1 = _fold_bn(xstats, n * h * w, p["bn1_gamma"], p["bn1_beta"])

    # ---- pass 2: BN1 + ReLU + conv1 (stride); bf16 z + per-tile z stats ----
    w1r = p["w1"].reshape(9 * cin, cout).astype(jnp.bfloat16)
    in_specs2 = [
        pl.BlockSpec((1, cin), lambda i, t: (0, 0)),                      # BN1 scale
        pl.BlockSpec((1, cin), lambda i, t: (0, 0)),                      # BN1 shift
        pl.BlockSpec((1, 1, w, cin),                                      # top halo row
                     lambda i, t: (i, jnp.maximum(t * rr - 1, 0), 0, 0)),
        pl.BlockSpec((1, rr, w, cin), lambda i, t: (i, t, 0, 0)),         # main rows
    ]
    args2 = [a1, b1, x, x]
    if stride == 1:
        in_specs2.append(pl.BlockSpec(                                    # bottom halo row
            (1, 1, w, cin), lambda i, t: (i, jnp.minimum(t * rr + rr, h - 1), 0, 0)))
        args2.append(x)
    in_specs2.append(pl.BlockSpec((9 * cin, cout), lambda i, t: (0, 0)))  # conv1 weight
    args2.append(w1r)

    z, zstats = pl.pallas_call(
        functools.partial(_bn_relu_conv1_kernel, stride=stride, tq=tq, fat_k=fat_k1),
        grid=(n, nt),
        in_specs=in_specs2,
        out_specs=[
            pl.BlockSpec((1, tq, wout, cout), lambda i, t: (i, t, 0, 0)),
            pl.BlockSpec((1, 1, 2, cout), lambda i, t: (i, t, 0, 0)),
        ],
        out_shape=[
            jax.ShapeDtypeStruct((n, hout, wout, cout), jnp.bfloat16),    # z in bf16
            jax.ShapeDtypeStruct((n, nt, 2, cout), jnp.float32),
        ],
        scratch_shapes=[pltpu.VMEM((rows_in1, w + 2, cin), jnp.bfloat16)],
        compiler_params=cparams,
    )(*args2)
    a2, b2 = _fold_bn(zstats, n * hout * wout, p["bn2_gamma"], p["bn2_beta"])

    # ---- pass 3: BN2 + ReLU + conv2 + shortcut ----
    w2r = p["w2"].reshape(9 * cout, cout).astype(jnp.bfloat16)
    cb2 = p["cb2"].reshape(1, cout)
    in_specs3 = [
        pl.BlockSpec((1, cout), lambda i, t: (0, 0)),                     # BN2 scale
        pl.BlockSpec((1, cout), lambda i, t: (0, 0)),                     # BN2 shift
        pl.BlockSpec((1, 1, wout, cout),                                  # z top halo
                     lambda i, t: (i, jnp.maximum(t * tq - 1, 0), 0, 0)),
        pl.BlockSpec((1, tq, wout, cout), lambda i, t: (i, t, 0, 0)),     # z main rows
        pl.BlockSpec((1, 1, wout, cout),                                  # z bottom halo
                     lambda i, t: (i, jnp.minimum(t * tq + tq, hout - 1), 0, 0)),
        pl.BlockSpec((9 * cout, cout), lambda i, t: (0, 0)),              # conv2 weight
        pl.BlockSpec((1, cout), lambda i, t: (0, 0)),                     # conv2 bias
        pl.BlockSpec((1, rr, w, cin), lambda i, t: (i, t, 0, 0)),         # shortcut x rows
    ]
    args3 = [a2, b2, z, z, z, w2r, cb2, x]
    if has_proj:
        in_specs3 += [pl.BlockSpec((cin, cout), lambda i, t: (0, 0)),
                      pl.BlockSpec((1, cout), lambda i, t: (0, 0))]
        args3 += [p["ws"].astype(jnp.bfloat16), p["bs"].reshape(1, cout)]

    out = pl.pallas_call(
        functools.partial(_bn_relu_conv2_add_kernel, stride=stride, tq=tq,
                          has_proj=has_proj, fat_k=fat_k2),
        grid=(n, nt),
        in_specs=in_specs3,
        out_specs=pl.BlockSpec((1, tq, wout, cout), lambda i, t: (i, t, 0, 0)),
        out_shape=jax.ShapeDtypeStruct((n, hout, wout, cout), jnp.float32),
        scratch_shapes=[pltpu.VMEM((tq + 2, wout + 2, cout), jnp.bfloat16)],
        compiler_params=cparams,
    )(*args3)
    return jnp.transpose(out, (0, 3, 1, 2))               # NHWC -> NCHW


# ---------------------------------------------------------------------------
# Params / reference / test
# ---------------------------------------------------------------------------
def init_params(key, in_c, out_c, stride):
    ks = jax.random.split(key, 10)
    p = {
        "bn1_gamma": 1.0 + 0.1 * jax.random.normal(ks[0], (1, 1, 1, in_c), jnp.float32),
        "bn1_beta": 0.1 * jax.random.normal(ks[1], (1, 1, 1, in_c), jnp.float32),
        "w1": 0.1 * jax.random.normal(ks[2], (3, 3, in_c, out_c), jnp.float32),
        "cb1": 0.1 * jax.random.normal(ks[3], (1, 1, 1, out_c), jnp.float32),
        "bn2_gamma": 1.0 + 0.1 * jax.random.normal(ks[4], (1, 1, 1, out_c), jnp.float32),
        "bn2_beta": 0.1 * jax.random.normal(ks[5], (1, 1, 1, out_c), jnp.float32),
        "w2": 0.1 * jax.random.normal(ks[6], (3, 3, out_c, out_c), jnp.float32),
        "cb2": 0.1 * jax.random.normal(ks[7], (1, 1, 1, out_c), jnp.float32),
    }
    if stride != 1 or in_c != out_c:   # projection shortcut only when needed
        p["ws"] = 0.1 * jax.random.normal(ks[8], (in_c, out_c), jnp.float32)
        p["bs"] = 0.1 * jax.random.normal(ks[9], (1, 1, 1, out_c), jnp.float32)
    return p


def reference(x_nchw, p, stride, conv_dtype=jnp.float32):
    """Pure-JAX/XLA reference forward (conv_dtype = conv operand / MXU precision)."""
    x = jnp.transpose(x_nchw, (0, 2, 3, 1)).astype(jnp.float32)

    def bn_relu(v, g, b):
        mu = jnp.mean(v, axis=(0, 1, 2), keepdims=True)
        var = jnp.mean((v - mu) ** 2, axis=(0, 1, 2), keepdims=True)
        return jnp.maximum((v - mu) / jnp.sqrt(var + EPS) * g + b, 0.0)

    def conv(v, w, b, s, pad):
        return lax.conv_general_dilated(
            v.astype(conv_dtype), w.astype(conv_dtype), (s, s),
            [(pad, pad), (pad, pad)],
            dimension_numbers=("NHWC", "HWIO", "NHWC"),
            preferred_element_type=jnp.float32) + b

    y = bn_relu(x, p["bn1_gamma"], p["bn1_beta"])
    z = conv(y, p["w1"], p["cb1"], stride, 1)
    a = bn_relu(z, p["bn2_gamma"], p["bn2_beta"])
    r = conv(a, p["w2"], p["cb2"], 1, 1)
    if "ws" in p:
        w_sc = p["ws"].reshape(1, 1, *p["ws"].shape)
        sc = conv(x, w_sc, p["bs"], stride, 0)
    else:
        sc = x[:, ::stride, ::stride, :]
    return jnp.transpose(r + sc, (0, 3, 1, 2))


if __name__ == "__main__":
    key = jax.random.PRNGKey(0)
    # (in_c, out_c, stride, tile_rows): exercise projection & identity shortcuts,
    # multi-H-tile halos, and the strided (stride=2) conv / shortcut path.
    configs = [
        (4, 8, 1, 8),    # projection (channel change), 2 H-tiles of 8 output rows
        (8, 8, 1, 4),    # identity shortcut, 4 H-tiles of 4 output rows
        (8, 16, 2, 4),   # projection + stride 2, 2 H-tiles of 4 output rows
    ]
    for idx, (cin, cout, stride, tile_rows) in enumerate(configs):
        kx, kp = jax.random.split(jax.random.fold_in(key, idx))
        x = jax.random.normal(kx, (2, cin, 16, 16), jnp.float32)
        params = init_params(kp, cin, cout, stride)

        out = jax.block_until_ready(preact_basic(x, params, stride, tile_rows))
        hw_out = 16 // stride
        assert out.shape == (2, cout, hw_out, hw_out), out.shape

        # Tight check vs a reference with the same bf16 conv-operand precision
        # (the kernel additionally round-trips z through bf16 HBM storage).
        ref_b = jax.block_until_ready(reference(x, params, stride, jnp.bfloat16))
        err_b = float(jnp.max(jnp.abs(out - ref_b)))
        assert jnp.allclose(out, ref_b, atol=2e-2, rtol=2e-2), (idx, err_b)

        # Semantic check vs the all-f32 reference (loose: bf16 MXU operands).
        ref_f = jax.block_until_ready(reference(x, params, stride, jnp.float32))
        err_f = float(jnp.max(jnp.abs(out - ref_f)))
        assert jnp.allclose(out, ref_f, atol=6e-2, rtol=6e-2), (idx, err_f)

    print("KERNEL_OK")
</pallas_src>

<mosaic_0001>
module attributes {stable_mosaic.version = 11 : i64} {
  func.func @_channel_stats_kernel(%arg0: i32, %arg1: i32, %arg2: memref<1x8x16x4xf32, #tpu.memory_space<vmem>>, %arg3: memref<1x1x2x4xf32, #tpu.memory_space<vmem>>) attributes {dimension_semantics = [#tpu.dimension_semantics<parallel>, #tpu.dimension_semantics<parallel>], iteration_bounds = array<i64: 2, 2>, scalar_prefetch = 0 : i64, scratch_operands = 0 : i64, tpu.core_type = #tpu.core_type<tc>, window_params = [{transform_indices = @transform_0, window_bounds = array<i64: 1, 8, 16, 4>}, {transform_indices = @transform_1, window_bounds = array<i64: 1, 1, 2, 4>}]} {
    %c0 = arith.constant 0 : index
    %c0_0 = arith.constant 0 : index
    %c0_1 = arith.constant 0 : index
    %c0_2 = arith.constant 0 : index
    %0 = vector.load %arg2[%c0, %c0_0, %c0_1, %c0_2] : memref<1x8x16x4xf32, #tpu.memory_space<vmem>>, vector<1x8x16x4xf32>
    %1 = vector.shape_cast %0 : vector<1x8x16x4xf32> to vector<128x4xf32>
    %cst = arith.constant dense<0.000000e+00> : vector<4xf32>
    %2 = vector.multi_reduction <add>, %1, %cst [0] : vector<128x4xf32> to vector<4xf32>
    %3 = vector.shape_cast %2 : vector<4xf32> to vector<1x4xf32>
    %4 = arith.mulf %1, %1 : vector<128x4xf32>
    %cst_3 = arith.constant dense<0.000000e+00> : vector<4xf32>
    %5 = vector.multi_reduction <add>, %4, %cst_3 [0] : vector<128x4xf32> to vector<4xf32>
    %6 = vector.shape_cast %5 : vector<4xf32> to vector<1x4xf32>
    %7 = tpu.concatenate %3, %6 in 0 : vector<1x4xf32>, vector<1x4xf32> -> vector<2x4xf32>
    %8 = vector.shape_cast %7 : vector<2x4xf32> to vector<1x1x2x4xf32>
    %c0_4 = arith.constant 0 : index
    %c0_5 = arith.constant 0 : index
    %c0_6 = arith.constant 0 : index
    %c0_7 = arith.constant 0 : index
    %9 = vector.load %arg3[%c0_4, %c0_5, %c0_6, %c0_7] : memref<1x1x2x4xf32, #tpu.memory_space<vmem>>, vector<1x1x2x4xf32>
    tpu.vector_store %arg3[%c0_4, %c0_5, %c0_6, %c0_7], %8 {strides = array<i32>} : memref<1x1x2x4xf32, #tpu.memory_space<vmem>>, vector<1x1x2x4xf32>,
    return
  }
  func.func @transform_0(%arg0: i32, %arg1: i32) -> (i32, i32, i32, i32) {
    %c0_i32 = arith.constant 0 : i32
    %c0_i32_0 = arith.constant 0 : i32
    %c0_i32_1 = arith.constant 0 : i32
    return %arg0, %arg1, %c0_i32, %c0_i32_0 : i32, i32, i32, i32
  }
  func.func @transform_1(%arg0: i32, %arg1: i32) -> (i32, i32, i32, i32) {
    %c0_i32 = arith.constant 0 : i32
    %c0_i32_0 = arith.constant 0 : i32
    %c0_i32_1 = arith.constant 0 : i32
    return %arg0, %arg1, %c0_i32, %c0_i32_0 : i32, i32, i32, i32
  }
}

module attributes {stable_mosaic.version = 11 : i64} {
  func.func @_bn_relu_conv1_kernel(%arg0: i32, %arg1: i32, %arg2: memref<1x4xf32, #tpu.memory_space<vmem>>, %arg3: memref<1x4xf32, #tpu.memory_space<vmem>>, %arg4: memref<1x1x16x4xf32, #tpu.memory_space<vmem>>, %arg5: memref<1x8x16x4xf32, #tpu.memory_space<vmem>>, %arg6: memref<1x1x16x4xf32, #tpu.memory_space<vmem>>, %arg7: memref<36x8xbf16, #tpu.memory_space<vmem>>, %arg8: memref<1x8x16x8xbf16, #tpu.memory_space<vmem>>, %arg9: memref<1x1x2x8xf32, #tpu.memory_space<vmem>>, %arg10: memref<10x18x4xbf16, #tpu.memory_space<vmem>>) attributes {dimension_semantics = [#tpu.dimension_semantics<parallel>, #tpu.dimension_semantics<parallel>], iteration_bounds = array<i64: 2, 2>, scalar_prefetch = 0 : i64, scratch_operands = 1 : i64, tpu.core_type = #tpu.core_type<tc>, window_params = [{pipeline_mode = #tpu.pipeline_mode<synchronous>, transform_indices = @transform_0, window_bounds = array<i64: 1, 4>}, {pipeline_mode = #tpu.pipeline_mode<synchronous>, transform_indices = @transform_1, window_bounds = array<i64: 1, 4>}, {transform_indices = @transform_2, window_bounds = array<i64: 1, 1, 16, 4>}, {transform_indices = @transform_3, window_bounds = array<i64: 1, 8, 16, 4>}, {transform_indices = @transform_4, window_bounds = array<i64: 1, 1, 16, 4>}, {pipeline_mode = #tpu.pipeline_mode<synchronous>, transform_indices = @transform_5, window_bounds = array<i64: 36, 8>}, {transform_indices = @transform_6, window_bounds = array<i64: 1, 8, 16, 8>}, {transform_indices = @transform_7, window_bounds = array<i64: 1, 1, 2, 8>}]} {
    %c0 = arith.constant 0 : index
    %c0_0 = arith.constant 0 : index
    %0 = vector.load %arg2[%c0, %c0_0] : memref<1x4xf32, #tpu.memory_space<vmem>>, vector<1x4xf32>
    %c0_1 = arith.constant 0 : index
    %c0_2 = arith.constant 0 : index
    %1 = vector.load %arg3[%c0_1, %c0_2] : memref<1x4xf32, #tpu.memory_space<vmem>>, vector<1x4xf32>
    %cst = arith.constant 0.000000e+00 : bf16
    %2 = vector.broadcast %cst : bf16 to vector<10x1x4xbf16>
    %c0_3 = arith.constant 0 : index
    %c0_4 = arith.constant 0 : index
    %c0_5 = arith.constant 0 : index
    %3 = vector.load %arg10[%c0_3, %c0_4, %c0_5] : memref<10x18x4xbf16, #tpu.memory_space<vmem>>, vector<10x1x4xbf16>
    tpu.vector_store %arg10[%c0_3, %c0_4, %c0_5], %2 {strides = array<i32>} : memref<10x18x4xbf16, #tpu.memory_space<vmem>>, vector<10x1x4xbf16>,
    %c0_6 = arith.constant 0 : index
    %c17 = arith.constant 17 : index
    %c0_7 = arith.constant 0 : index
    %4 = vector.load %arg10[%c0_6, %c17, %c0_7] : memref<10x18x4xbf16, #tpu.memory_space<vmem>>, vector<10x1x4xbf16>
    tpu.vector_store %arg10[%c0_6, %c17, %c0_7], %2 {strides = array<i32>} : memref<10x18x4xbf16, #tpu.memory_space<vmem>>, vector<10x1x4xbf16>,
    %c0_8 = arith.constant 0 : index
    %c0_9 = arith.constant 0 : index
    %c0_10 = arith.constant 0 : index
    %c0_11 = arith.constant 0 : index
    %5 = vector.load %arg5[%c0_8, %c0_9, %c0_10, %c0_11] : memref<1x8x16x4xf32, #tpu.memory_space<vmem>>, vector<1x8x16x4xf32>
    %6 = vector.shape_cast %5 : vector<1x8x16x4xf32> to vector<8x16x4xf32>
    %7 = vector.shape_cast %0 : vector<1x4xf32> to vector<1x1x4xf32>
    %8 = vector.broadcast %7 : vector<1x1x4xf32> to vector<8x16x4xf32>
    %9 = arith.mulf %6, %8 : vector<8x16x4xf32>
    %10 = vector.shape_cast %1 : vector<1x4xf32> to vector<1x1x4xf32>
    %11 = vector.broadcast %10 : vector<1x1x4xf32> to vector<8x16x4xf32>
    %12 = arith.addf %9, %11 : vector<8x16x4xf32>
    %cst_12 = arith.constant 0.000000e+00 : f32
    %13 = vector.broadcast %cst_12 : f32 to vector<8x16x4xf32>
    %14 = arith.maximumf %12, %13 : vector<8x16x4xf32>
    %15 = arith.truncf %14 : vector<8x16x4xf32> to vector<8x16x4xbf16>
    %c1 = arith.constant 1 : index
    %c1_13 = arith.constant 1 : index
    %c0_14 = arith.constant 0 : index
    %16 = vector.load %arg10[%c1, %c1_13, %c0_14] : memref<10x18x4xbf16, #tpu.memory_space<vmem>>, vector<8x16x4xbf16>
    tpu.vector_store %arg10[%c1, %c1_13, %c0_14], %15 {strides = array<i32>} : memref<10x18x4xbf16, #tpu.memory_space<vmem>>, vector<8x16x4xbf16>,
    %c0_15 = arith.constant 0 : index
    %c0_16 = arith.constant 0 : index
    %c0_17 = arith.constant 0 : index
    %c0_18 = arith.constant 0 : index
    %17 = vector.load %arg4[%c0_15, %c0_16, %c0_17, %c0_18] : memref<1x1x16x4xf32, #tpu.memory_space<vmem>>, vector<1x1x16x4xf32>
    %18 = vector.shape_cast %17 : vector<1x1x16x4xf32> to vector<1x16x4xf32>
    %19 = vector.shape_cast %0 : vector<1x4xf32> to vector<1x1x4xf32>
    %20 = vector.broadcast %19 : vector<1x1x4xf32> to vector<1x16x4xf32>
    %21 = arith.mulf %18, %20 : vector<1x16x4xf32>
    %22 = vector.shape_cast %1 : vector<1x4xf32> to vector<1x1x4xf32>
    %23 = vector.broadcast %22 : vector<1x1x4xf32> to vector<1x16x4xf32>
    %24 = arith.addf %21, %23 : vector<1x16x4xf32>
    %cst_19 = arith.constant 0.000000e+00 : f32
    %25 = vector.broadcast %cst_19 : f32 to vector<1x16x4xf32>
    %26 = arith.maximumf %24, %25 : vector<1x16x4xf32>
    %c0_i32 = arith.constant 0 : i32
    %27 = arith.cmpi sgt, %arg1, %c0_i32 : i32
    %28 = arith.extui %27 : i1 to i32
    %29 = arith.sitofp %28 : i32 to f32
    %30 = vector.broadcast %29 : f32 to vector<1x16x4xf32>
    %31 = arith.mulf %26, %30 : vector<1x16x4xf32>
    %32 = arith.truncf %31 : vector<1x16x4xf32> to vector<1x16x4xbf16>
    %c0_20 = arith.constant 0 : index
    %c1_21 = arith.constant 1 : index
    %c0_22 = arith.constant 0 : index
    %33 = vector.load %arg10[%c0_20, %c1_21, %c0_22] : memref<10x18x4xbf16, #tpu.memory_space<vmem>>, vector<1x16x4xbf16>
    tpu.vector_store %arg10[%c0_20, %c1_21, %c0_22], %32 {strides = array<i32>} : memref<10x18x4xbf16, #tpu.memory_space<vmem>>, vector<1x16x4xbf16>,
    %c0_23 = arith.constant 0 : index
    %c0_24 = arith.constant 0 : index
    %c0_25 = arith.constant 0 : index
    %c0_26 = arith.constant 0 : index
    %34 = vector.load %arg6[%c0_23, %c0_24, %c0_25, %c0_26] : memref<1x1x16x4xf32, #tpu.memory_space<vmem>>, vector<1x1x16x4xf32>
    %35 = vector.shape_cast %34 : vector<1x1x16x4xf32> to vector<1x16x4xf32>
    %36 = vector.shape_cast %0 : vector<1x4xf32> to vector<1x1x4xf32>
    %37 = vector.broadcast %36 : vector<1x1x4xf32> to vector<1x16x4xf32>
    %38 = arith.mulf %35, %37 : vector<1x16x4xf32>
    %39 = vector.shape_cast %1 : vector<1x4xf32> to vector<1x1x4xf32>
    %40 = vector.broadcast %39 : vector<1x1x4xf32> to vector<1x16x4xf32>
    %41 = arith.addf %38, %40 : vector<1x16x4xf32>
    %cst_27 = arith.constant 0.000000e+00 : f32
    %42 = vector.broadcast %cst_27 : f32 to vector<1x16x4xf32>
    %43 = arith.maximumf %41, %42 : vector<1x16x4xf32>
    %c1_i32 = arith.constant 1 : i32
    %44 = arith.cmpi slt, %arg1, %c1_i32 : i32
    %45 = arith.extui %44 : i1 to i32
    %46 = arith.sitofp %45 : i32 to f32
    %47 = vector.broadcast %46 : f32 to vector<1x16x4xf32>
    %48 = arith.mulf %43, %47 : vector<1x16x4xf32>
    %49 = arith.truncf %48 : vector<1x16x4xf32> to vector<1x16x4xbf16>
    %c9 = arith.constant 9 : index
    %c1_28 = arith.constant 1 : index
    %c0_29 = arith.constant 0 : index
    %50 = vector.load %arg10[%c9, %c1_28, %c0_29] : memref<10x18x4xbf16, #tpu.memory_space<vmem>>, vector<1x16x4xbf16>
    tpu.vector_store %arg10[%c9, %c1_28, %c0_29], %49 {strides = array<i32>} : memref<10x18x4xbf16, #tpu.memory_space<vmem>>, vector<1x16x4xbf16>,
    %c0_30 = arith.constant 0 : index
    %c0_31 = arith.constant 0 : index
    %c0_32 = arith.constant 0 : index
    %51 = vector.load %arg10[%c0_30, %c0_31, %c0_32] : memref<10x18x4xbf16, #tpu.memory_space<vmem>>, vector<8x16x4xbf16>
    %52 = vector.shape_cast %51 : vector<8x16x4xbf16> to vector<128x4xbf16>
    %c0_33 = arith.constant 0 : index
    %c1_34 = arith.constant 1 : index
    %c0_35 = arith.constant 0 : index
    %53 = vector.load %arg10[%c0_33, %c1_34, %c0_35] : memref<10x18x4xbf16, #tpu.memory_space<vmem>>, vector<8x16x4xbf16>
    %54 = vector.shape_cast %53 : vector<8x16x4xbf16> to vector<128x4xbf16>
    %c0_36 = arith.constant 0 : index
    %c2 = arith.constant 2 : index
    %c0_37 = arith.constant 0 : index
    %55 = vector.load %arg10[%c0_36, %c2, %c0_37] : memref<10x18x4xbf16, #tpu.memory_space<vmem>>, vector<8x16x4xbf16>
    %56 = vector.shape_cast %55 : vector<8x16x4xbf16> to vector<128x4xbf16>
    %c1_38 = arith.constant 1 : index
    %c0_39 = arith.constant 0 : index
    %c0_40 = arith.constant 0 : index
    %57 = vector.load %arg10[%c1_38, %c0_39, %c0_40] : memref<10x18x4xbf16, #tpu.memory_space<vmem>>, vector<8x16x4xbf16>
    %58 = vector.shape_cast %57 : vector<8x16x4xbf16> to vector<128x4xbf16>
    %c1_41 = arith.constant 1 : index
    %c1_42 = arith.constant 1 : index
    %c0_43 = arith.constant 0 : index
    %59 = vector.load %arg10[%c1_41, %c1_42, %c0_43] : memref<10x18x4xbf16, #tpu.memory_space<vmem>>, vector<8x16x4xbf16>
    %60 = vector.shape_cast %59 : vector<8x16x4xbf16> to vector<128x4xbf16>
    %c1_44 = arith.constant 1 : index
    %c2_45 = arith.constant 2 : index
    %c0_46 = arith.constant 0 : index
    %61 = vector.load %arg10[%c1_44, %c2_45, %c0_46] : memref<10x18x4xbf16, #tpu.memory_space<vmem>>, vector<8x16x4xbf16>
    %62 = vector.shape_cast %61 : vector<8x16x4xbf16> to vector<128x4xbf16>
    %c2_47 = arith.constant 2 : index
    %c0_48 = arith.constant 0 : index
    %c0_49 = arith.constant 0 : index
    %63 = vector.load %arg10[%c2_47, %c0_48, %c0_49] : memref<10x18x4xbf16, #tpu.memory_space<vmem>>, vector<8x16x4xbf16>
    %64 = vector.shape_cast %63 : vector<8x16x4xbf16> to vector<128x4xbf16>
    %c2_50 = arith.constant 2 : index
    %c1_51 = arith.constant 1 : index
    %c0_52 = arith.constant 0 : index
    %65 = vector.load %arg10[%c2_50, %c1_51, %c0_52] : memref<10x18x4xbf16, #tpu.memory_space<vmem>>, vector<8x16x4xbf16>
    %66 = vector.shape_cast %65 : vector<8x16x4xbf16> to vector<128x4xbf16>
    %c2_53 = arith.constant 2 : index
    %c2_54 = arith.constant 2 : index
    %c0_55 = arith.constant 0 : index
    %67 = vector.load %arg10[%c2_53, %c2_54, %c0_55] : memref<10x18x4xbf16, #tpu.memory_space<vmem>>, vector<8x16x4xbf16>
    %68 = vector.shape_cast %67 : vector<8x16x4xbf16> to vector<128x4xbf16>
    %69 = tpu.concatenate %52, %54, %56, %58, %60, %62, %64, %66, %68 in 1 : vector<128x4xbf16>, vector<128x4xbf16>, vector<128x4xbf16>, vector<128x4xbf16>, vector<128x4xbf16>, vector<128x4xbf16>, vector<128x4xbf16>, vector<128x4xbf16>, vector<128x4xbf16> -> vector<128x36xbf16>
    %c0_56 = arith.constant 0 : index
    %c0_57 = arith.constant 0 : index
    %70 = vector.load %arg7[%c0_56, %c0_57] : memref<36x8xbf16, #tpu.memory_space<vmem>>, vector<36x8xbf16>
    %cst_58 = arith.constant dense<0.000000e+00> : vector<128x8xf32>
    %71 = tpu.matmul %69, %70, %cst_58 {dimension_numbers = #tpu.dot_dimension_numbers<[1], [0], [0], [1], [0, 0, 1, 1], [], []>} : vector<128x36xbf16>, vector<36x8xbf16>, vector<128x8xf32> -> vector<128x8xf32>
    %72 = vector.shape_cast %71 : vector<128x8xf32> to vector<1x8x16x8xf32>
    %73 = arith.truncf %72 : vector<1x8x16x8xf32> to vector<1x8x16x8xbf16>
    %c0_59 = arith.constant 0 : index
    %c0_60 = arith.constant 0 : index
    %c0_61 = arith.constant 0 : index
    %c0_62 = arith.constant 0 : index
    %74 = vector.load %arg8[%c0_59, %c0_60, %c0_61, %c0_62] : memref<1x8x16x8xbf16, #tpu.memory_space<vmem>>, vector<1x8x16x8xbf16>
    tpu.vector_store %arg8[%c0_59, %c0_60, %c0_61, %c0_62], %73 {strides = array<i32>} : memref<1x8x16x8xbf16, #tpu.memory_space<vmem>>, vector<1x8x16x8xbf16>,
    %cst_63 = arith.constant dense<0.000000e+00> : vector<8xf32>
    %75 = vector.multi_reduction <add>, %71, %cst_63 [0] : vector<128x8xf32> to vector<8xf32>
    %76 = vector.shape_cast %75 : vector<8xf32> to vector<1x8xf32>
    %77 = arith.mulf %71, %71 : vector<128x8xf32>
    %cst_64 = arith.constant dense<0.000000e+00> : vector<8xf32>
    %78 = vector.multi_reduction <add>, %77, %cst_64 [0] : vector<128x8xf32> to vector<8xf32>
    %79 = vector.shape_cast %78 : vector<8xf32> to vector<1x8xf32>
    %80 = tpu.concatenate %76, %79 in 0 : vector<1x8xf32>, vector<1x8xf32> -> vector<2x8xf32>
    %81 = vector.shape_cast %80 : vector<2x8xf32> to vector<1x1x2x8xf32>
    %c0_65 = arith.constant 0 : index
    %c0_66 = arith.constant 0 : index
    %c0_67 = arith.constant 0 : index
    %c0_68 = arith.constant 0 : index
    %82 = vector.load %arg9[%c0_65, %c0_66, %c0_67, %c0_68] : memref<1x1x2x8xf32, #tpu.memory_space<vmem>>, vector<1x1x2x8xf32>
    tpu.vector_store %arg9[%c0_65, %c0_66, %c0_67, %c0_68], %81 {strides = array<i32>} : memref<1x1x2x8xf32, #tpu.memory_space<vmem>>, vector<1x1x2x8xf32>,
    return
  }
  func.func @transform_0(%arg0: i32, %arg1: i32) -> (i32, i32) {
    %c0_i32 = arith.constant 0 : i32
    %c0_i32_0 = arith.constant 0 : i32
    %c0_i32_1 = arith.constant 0 : i32
    return %c0_i32, %c0_i32_0 : i32, i32
  }
  func.func @transform_1(%arg0: i32, %arg1: i32) -> (i32, i32) {
    %c0_i32 = arith.constant 0 : i32
    %c0_i32_0 = arith.constant 0 : i32
    %c0_i32_1 = arith.constant 0 : i32
    return %c0_i32, %c0_i32_0 : i32, i32
  }
  func.func @transform_2(%arg0: i32, %arg1: i32) -> (i32, i32, i32, i32) {
    %c8_i32 = arith.constant 8 : i32
    %0 = arith.muli %arg1, %c8_i32 : i32
    %c1_i32 = arith.constant 1 : i32
    %1 = arith.subi %0, %c1_i32 : i32
    %c0_i32 = arith.constant 0 : i32
    %2 = arith.maxsi %1, %c0_i32 : i32
    %c0_i32_0 = arith.constant 0 : i32
    %c0_i32_1 = arith.constant 0 : i32
    %c0_i32_2 = arith.constant 0 : i32
    return %arg0, %2, %c0_i32_0, %c0_i32_1 : i32, i32, i32, i32
  }
  func.func @transform_3(%arg0: i32, %arg1: i32) -> (i32, i32, i32, i32) {
    %c0_i32 = arith.constant 0 : i32
    %c0_i32_0 = arith.constant 0 : i32
    %c0_i32_1 = arith.constant 0 : i32
    return %arg0, %arg1, %c0_i32, %c0_i32_0 : i32, i32, i32, i32
  }
  func.func @transform_4(%arg0: i32, %arg1: i32) -> (i32, i32, i32, i32) {
    %c8_i32 = arith.constant 8 : i32
    %0 = arith.muli %arg1, %c8_i32 : i32
    %c8_i32_0 = arith.constant 8 : i32
    %1 = arith.addi %0, %c8_i32_0 : i32
    %c15_i32 = arith.constant 15 : i32
    %2 = arith.minsi %1, %c15_i32 : i32
    %c0_i32 = arith.constant 0 : i32
    %c0_i32_1 = arith.constant 0 : i32
    %c0_i32_2 = arith.constant 0 : i32
    return %arg0, %2, %c0_i32, %c0_i32_1 : i32, i32, i32, i32
  }
  func.func @transform_5(%arg0: i32, %arg1: i32) -> (i32, i32) {
    %c0_i32 = arith.constant 0 : i32
    %c0_i32_0 = arith.constant 0 : i32
    %c0_i32_1 = arith.constant 0 : i32
    return %c0_i32, %c0_i32_0 : i32, i32
  }
  func.func @transform_6(%arg0: i32, %arg1: i32) -> (i32, i32, i32, i32) {
    %c0_i32 = arith.constant 0 : i32
    %c0_i32_0 = arith.constant 0 : i32
    %c0_i32_1 = arith.constant 0 : i32
    return %arg0, %arg1, %c0_i32, %c0_i32_0 : i32, i32, i32, i32
  }
  func.func @transform_7(%arg0: i32, %arg1: i32) -> (i32, i32, i32, i32) {
    %c0_i32 = arith.constant 0 : i32
    %c0_i32_0 = arith.constant 0 : i32
    %c0_i32_1 = arith.constant 0 : i32
    return %arg0, %arg1, %c0_i32, %c0_i32_0 : i32, i32, i32, i32
  }
}

module attributes {stable_mosaic.version = 11 : i64} {
  func.func @_bn_relu_conv2_add_kernel(%arg0: i32, %arg1: i32, %arg2: memref<1x8xf32, #tpu.memory_space<vmem>>, %arg3: memref<1x8xf32, #tpu.memory_space<vmem>>, %arg4: memref<1x1x16x8xbf16, #tpu.memory_space<vmem>>, %arg5: memref<1x8x16x8xbf16, #tpu.memory_space<vmem>>, %arg6: memref<1x1x16x8xbf16, #tpu.memory_space<vmem>>, %arg7: memref<72x8xbf16, #tpu.memory_space<vmem>>, %arg8: memref<1x8xf32, #tpu.memory_space<vmem>>, %arg9: memref<1x8x16x4xf32, #tpu.memory_space<vmem>>, %arg10: memref<4x8xbf16, #tpu.memory_space<vmem>>, %arg11: memref<1x8xf32, #tpu.memory_space<vmem>>, %arg12: memref<1x8x16x8xf32, #tpu.memory_space<vmem>>, %arg13: memref<10x18x8xbf16, #tpu.memory_space<vmem>>) attributes {dimension_semantics = [#tpu.dimension_semantics<parallel>, #tpu.dimension_semantics<parallel>], iteration_bounds = array<i64: 2, 2>, scalar_prefetch = 0 : i64, scratch_operands = 1 : i64, tpu.core_type = #tpu.core_type<tc>, window_params = [{pipeline_mode = #tpu.pipeline_mode<synchronous>, transform_indices = @transform_0, window_bounds = array<i64: 1, 8>}, {pipeline_mode = #tpu.pipeline_mode<synchronous>, transform_indices = @transform_1, window_bounds = array<i64: 1, 8>}, {transform_indices = @transform_2, window_bounds = array<i64: 1, 1, 16, 8>}, {transform_indices = @transform_3, window_bounds = array<i64: 1, 8, 16, 8>}, {transform_indices = @transform_4, window_bounds = array<i64: 1, 1, 16, 8>}, {pipeline_mode = #tpu.pipeline_mode<synchronous>, transform_indices = @transform_5, window_bounds = array<i64: 72, 8>}, {pipeline_mode = #tpu.pipeline_mode<synchronous>, transform_indices = @transform_6, window_bounds = array<i64: 1, 8>}, {transform_indices = @transform_7, window_bounds = array<i64: 1, 8, 16, 4>}, {pipeline_mode = #tpu.pipeline_mode<synchronous>, transform_indices = @transform_8, window_bounds = array<i64: 4, 8>}, {pipeline_mode = #tpu.pipeline_mode<synchronous>, transform_indices = @transform_9, window_bounds = array<i64: 1, 8>}, {transform_indices = @transform_10, window_bounds = array<i64: 1, 8, 16, 8>}]} {
    %c0 = arith.constant 0 : index
    %c0_0 = arith.constant 0 : index
    %0 = vector.load %arg2[%c0, %c0_0] : memref<1x8xf32, #tpu.memory_space<vmem>>, vector<1x8xf32>
    %c0_1 = arith.constant 0 : index
    %c0_2 = arith.constant 0 : index
    %1 = vector.load %arg3[%c0_1, %c0_2] : memref<1x8xf32, #tpu.memory_space<vmem>>, vector<1x8xf32>
    %cst = arith.constant 0.000000e+00 : bf16
    %2 = vector.broadcast %cst : bf16 to vector<10x1x8xbf16>
    %c0_3 = arith.constant 0 : index
    %c0_4 = arith.constant 0 : index
    %c0_5 = arith.constant 0 : index
    %3 = vector.load %arg13[%c0_3, %c0_4, %c0_5] : memref<10x18x8xbf16, #tpu.memory_space<vmem>>, vector<10x1x8xbf16>
    tpu.vector_store %arg13[%c0_3, %c0_4, %c0_5], %2 {strides = array<i32>} : memref<10x18x8xbf16, #tpu.memory_space<vmem>>, vector<10x1x8xbf16>,
    %c0_6 = arith.constant 0 : index
    %c17 = arith.constant 17 : index
    %c0_7 = arith.constant 0 : index
    %4 = vector.load %arg13[%c0_6, %c17, %c0_7] : memref<10x18x8xbf16, #tpu.memory_space<vmem>>, vector<10x1x8xbf16>
    tpu.vector_store %arg13[%c0_6, %c17, %c0_7], %2 {strides = array<i32>} : memref<10x18x8xbf16, #tpu.memory_space<vmem>>, vector<10x1x8xbf16>,
    %c0_8 = arith.constant 0 : index
    %c0_9 = arith.constant 0 : index
    %c0_10 = arith.constant 0 : index
    %c0_11 = arith.constant 0 : index
    %5 = vector.load %arg5[%c0_8, %c0_9, %c0_10, %c0_11] : memref<1x8x16x8xbf16, #tpu.memory_space<vmem>>, vector<1x8x16x8xbf16>
    %6 = vector.shape_cast %5 : vector<1x8x16x8xbf16> to vector<8x16x8xbf16>
    %7 = arith.extf %6 : vector<8x16x8xbf16> to vector<8x16x8xf32>
    %8 = vector.shape_cast %0 : vector<1x8xf32> to vector<1x1x8xf32>
    %9 = vector.broadcast %8 : vector<1x1x8xf32> to vector<8x16x8xf32>
    %10 = arith.mulf %7, %9 : vector<8x16x8xf32>
    %11 = vector.shape_cast %1 : vector<1x8xf32> to vector<1x1x8xf32>
    %12 = vector.broadcast %11 : vector<1x1x8xf32> to vector<8x16x8xf32>
    %13 = arith.addf %10, %12 : vector<8x16x8xf32>
    %cst_12 = arith.constant 0.000000e+00 : f32
    %14 = vector.broadcast %cst_12 : f32 to vector<8x16x8xf32>
    %15 = arith.maximumf %13, %14 : vector<8x16x8xf32>
    %16 = arith.truncf %15 : vector<8x16x8xf32> to vector<8x16x8xbf16>
    %c1 = arith.constant 1 : index
    %c1_13 = arith.constant 1 : index
    %c0_14 = arith.constant 0 : index
    %17 = vector.load %arg13[%c1, %c1_13, %c0_14] : memref<10x18x8xbf16, #tpu.memory_space<vmem>>, vector<8x16x8xbf16>
    tpu.vector_store %arg13[%c1, %c1_13, %c0_14], %16 {strides = array<i32>} : memref<10x18x8xbf16, #tpu.memory_space<vmem>>, vector<8x16x8xbf16>,
    %c0_15 = arith.constant 0 : index
    %c0_16 = arith.constant 0 : index
    %c0_17 = arith.constant 0 : index
    %c0_18 = arith.constant 0 : index
    %18 = vector.load %arg4[%c0_15, %c0_16, %c0_17, %c0_18] : memref<1x1x16x8xbf16, #tpu.memory_space<vmem>>, vector<1x1x16x8xbf16>
    %19 = vector.shape_cast %18 : vector<1x1x16x8xbf16> to vector<1x16x8xbf16>
    %20 = arith.extf %19 : vector<1x16x8xbf16> to vector<1x16x8xf32>
    %21 = vector.shape_cast %0 : vector<1x8xf32> to vector<1x1x8xf32>
    %22 = vector.broadcast %21 : vector<1x1x8xf32> to vector<1x16x8xf32>
    %23 = arith.mulf %20, %22 : vector<1x16x8xf32>
    %24 = vector.shape_cast %1 : vector<1x8xf32> to vector<1x1x8xf32>
    %25 = vector.broadcast %24 : vector<1x1x8xf32> to vector<1x16x8xf32>
    %26 = arith.addf %23, %25 : vector<1x16x8xf32>
    %cst_19 = arith.constant 0.000000e+00 : f32
    %27 = vector.broadcast %cst_19 : f32 to vector<1x16x8xf32>
    %28 = arith.maximumf %26, %27 : vector<1x16x8xf32>
    %c0_i32 = arith.constant 0 : i32
    %29 = arith.cmpi sgt, %arg1, %c0_i32 : i32
    %30 = arith.extui %29 : i1 to i32
    %31 = arith.sitofp %30 : i32 to f32
    %32 = vector.broadcast %31 : f32 to vector<1x16x8xf32>
    %33 = arith.mulf %28, %32 : vector<1x16x8xf32>
    %34 = arith.truncf %33 : vector<1x16x8xf32> to vector<1x16x8xbf16>
    %c0_20 = arith.constant 0 : index
    %c1_21 = arith.constant 1 : index
    %c0_22 = arith.constant 0 : index
    %35 = vector.load %arg13[%c0_20, %c1_21, %c0_22] : memref<10x18x8xbf16, #tpu.memory_space<vmem>>, vector<1x16x8xbf16>
    tpu.vector_store %arg13[%c0_20, %c1_21, %c0_22], %34 {strides = array<i32>} : memref<10x18x8xbf16, #tpu.memory_space<vmem>>, vector<1x16x8xbf16>,
    %c0_23 = arith.constant 0 : index
    %c0_24 = arith.constant 0 : index
    %c0_25 = arith.constant 0 : index
    %c0_26 = arith.constant 0 : index
    %36 = vector.load %arg6[%c0_23, %c0_24, %c0_25, %c0_26] : memref<1x1x16x8xbf16, #tpu.memory_space<vmem>>, vector<1x1x16x8xbf16>
    %37 = vector.shape_cast %36 : vector<1x1x16x8xbf16> to vector<1x16x8xbf16>
    %38 = arith.extf %37 : vector<1x16x8xbf16> to vector<1x16x8xf32>
    %39 = vector.shape_cast %0 : vector<1x8xf32> to vector<1x1x8xf32>
    %40 = vector.broadcast %39 : vector<1x1x8xf32> to vector<1x16x8xf32>
    %41 = arith.mulf %38, %40 : vector<1x16x8xf32>
    %42 = vector.shape_cast %1 : vector<1x8xf32> to vector<1x1x8xf32>
    %43 = vector.broadcast %42 : vector<1x1x8xf32> to vector<1x16x8xf32>
    %44 = arith.addf %41, %43 : vector<1x16x8xf32>
    %cst_27 = arith.constant 0.000000e+00 : f32
    %45 = vector.broadcast %cst_27 : f32 to vector<1x16x8xf32>
    %46 = arith.maximumf %44, %45 : vector<1x16x8xf32>
    %c1_i32 = arith.constant 1 : i32
    %47 = arith.cmpi slt, %arg1, %c1_i32 : i32
    %48 = arith.extui %47 : i1 to i32
    %49 = arith.sitofp %48 : i32 to f32
    %50 = vector.broadcast %49 : f32 to vector<1x16x8xf32>
    %51 = arith.mulf %46, %50 : vector<1x16x8xf32>
    %52 = arith.truncf %51 : vector<1x16x8xf32> to vector<1x16x8xbf16>
    %c9 = arith.constant 9 : index
    %c1_28 = arith.constant 1 : index
    %c0_29 = arith.constant 0 : index
    %53 = vector.load %arg13[%c9, %c1_28, %c0_29] : memref<10x18x8xbf16, #tpu.memory_space<vmem>>, vector<1x16x8xbf16>
    tpu.vector_store %arg13[%c9, %c1_28, %c0_29], %52 {strides = array<i32>} : memref<10x18x8xbf16, #tpu.memory_space<vmem>>, vector<1x16x8xbf16>,
    %c0_30 = arith.constant 0 : index
    %c0_31 = arith.constant 0 : index
    %c0_32 = arith.constant 0 : index
    %54 = vector.load %arg13[%c0_30, %c0_31, %c0_32] : memref<10x18x8xbf16, #tpu.memory_space<vmem>>, vector<8x16x8xbf16>
    %55 = vector.shape_cast %54 : vector<8x16x8xbf16> to vector<128x8xbf16>
    %c0_33 = arith.constant 0 : index
    %c1_34 = arith.constant 1 : index
    %c0_35 = arith.constant 0 : index
    %56 = vector.load %arg13[%c0_33, %c1_34, %c0_35] : memref<10x18x8xbf16, #tpu.memory_space<vmem>>, vector<8x16x8xbf16>
    %57 = vector.shape_cast %56 : vector<8x16x8xbf16> to vector<128x8xbf16>
    %c0_36 = arith.constant 0 : index
    %c2 = arith.constant 2 : index
    %c0_37 = arith.constant 0 : index
    %58 = vector.load %arg13[%c0_36, %c2, %c0_37] : memref<10x18x8xbf16, #tpu.memory_space<vmem>>, vector<8x16x8xbf16>
    %59 = vector.shape_cast %58 : vector<8x16x8xbf16> to vector<128x8xbf16>
    %c1_38 = arith.constant 1 : index
    %c0_39 = arith.constant 0 : index
    %c0_40 = arith.constant 0 : index
    %60 = vector.load %arg13[%c1_38, %c0_39, %c0_40] : memref<10x18x8xbf16, #tpu.memory_space<vmem>>, vector<8x16x8xbf16>
    %61 = vector.shape_cast %60 : vector<8x16x8xbf16> to vector<128x8xbf16>
    %c1_41 = arith.constant 1 : index
    %c1_42 = arith.constant 1 : index
    %c0_43 = arith.constant 0 : index
    %62 = vector.load %arg13[%c1_41, %c1_42, %c0_43] : memref<10x18x8xbf16, #tpu.memory_space<vmem>>, vector<8x16x8xbf16>
    %63 = vector.shape_cast %62 : vector<8x16x8xbf16> to vector<128x8xbf16>
    %c1_44 = arith.constant 1 : index
    %c2_45 = arith.constant 2 : index
    %c0_46 = arith.constant 0 : index
    %64 = vector.load %arg13[%c1_44, %c2_45, %c0_46] : memref<10x18x8xbf16, #tpu.memory_space<vmem>>, vector<8x16x8xbf16>
    %65 = vector.shape_cast %64 : vector<8x16x8xbf16> to vector<128x8xbf16>
    %c2_47 = arith.constant 2 : index
    %c0_48 = arith.constant 0 : index
    %c0_49 = arith.constant 0 : index
    %66 = vector.load %arg13[%c2_47, %c0_48, %c0_49] : memref<10x18x8xbf16, #tpu.memory_space<vmem>>, vector<8x16x8xbf16>
    %67 = vector.shape_cast %66 : vector<8x16x8xbf16> to vector<128x8xbf16>
    %c2_50 = arith.constant 2 : index
    %c1_51 = arith.constant 1 : index
    %c0_52 = arith.constant 0 : index
    %68 = vector.load %arg13[%c2_50, %c1_51, %c0_52] : memref<10x18x8xbf16, #tpu.memory_space<vmem>>, vector<8x16x8xbf16>
    %69 = vector.shape_cast %68 : vector<8x16x8xbf16> to vector<128x8xbf16>
    %c2_53 = arith.constant 2 : index
    %c2_54 = arith.constant 2 : index
    %c0_55 = arith.constant 0 : index
    %70 = vector.load %arg13[%c2_53, %c2_54, %c0_55] : memref<10x18x8xbf16, #tpu.memory_space<vmem>>, vector<8x16x8xbf16>
    %71 = vector.shape_cast %70 : vector<8x16x8xbf16> to vector<128x8xbf16>
    %72 = tpu.concatenate %55, %57, %59, %61, %63, %65, %67, %69, %71 in 1 : vector<128x8xbf16>, vector<128x8xbf16>, vector<128x8xbf16>, vector<128x8xbf16>, vector<128x8xbf16>, vector<128x8xbf16>, vector<128x8xbf16>, vector<128x8xbf16>, vector<128x8xbf16> -> vector<128x72xbf16>
    %c0_56 = arith.constant 0 : index
    %c0_57 = arith.constant 0 : index
    %73 = vector.load %arg7[%c0_56, %c0_57] : memref<72x8xbf16, #tpu.memory_space<vmem>>, vector<72x8xbf16>
    %cst_58 = arith.constant dense<0.000000e+00> : vector<128x8xf32>
    %74 = tpu.matmul %72, %73, %cst_58 {dimension_numbers = #tpu.dot_dimension_numbers<[1], [0], [0], [1], [0, 0, 1, 1], [], []>} : vector<128x72xbf16>, vector<72x8xbf16>, vector<128x8xf32> -> vector<128x8xf32>
    %c0_59 = arith.constant 0 : index
    %c0_60 = arith.constant 0 : index
    %75 = vector.load %arg8[%c0_59, %c0_60] : memref<1x8xf32, #tpu.memory_space<vmem>>, vector<1x8xf32>
    %76 = vector.broadcast %75 : vector<1x8xf32> to vector<128x8xf32>
    %77 = arith.addf %74, %76 : vector<128x8xf32>
    %c0_61 = arith.constant 0 : index
    %c0_62 = arith.constant 0 : index
    %c0_63 = arith.constant 0 : index
    %c0_64 = arith.constant 0 : index
    %78 = vector.load %arg9[%c0_61, %c0_62, %c0_63, %c0_64] : memref<1x8x16x4xf32, #tpu.memory_space<vmem>>, vector<1x8x16x4xf32>
    %79 = vector.shape_cast %78 : vector<1x8x16x4xf32> to vector<8x16x4xf32>
    %80 = vector.shape_cast %79 : vector<8x16x4xf32> to vector<128x4xf32>
    %81 = arith.truncf %80 : vector<128x4xf32> to vector<128x4xbf16>
    %c0_65 = arith.constant 0 : index
    %c0_66 = arith.constant 0 : index
    %82 = vector.load %arg10[%c0_65, %c0_66] : memref<4x8xbf16, #tpu.memory_space<vmem>>, vector<4x8xbf16>
    %cst_67 = arith.constant dense<0.000000e+00> : vector<128x8xf32>
    %83 = tpu.matmul %81, %82, %cst_67 {dimension_numbers = #tpu.dot_dimension_numbers<[1], [0], [0], [1], [0, 0, 1, 1], [], []>} : vector<128x4xbf16>, vector<4x8xbf16>, vector<128x8xf32> -> vector<128x8xf32>
    %c0_68 = arith.constant 0 : index
    %c0_69 = arith.constant 0 : index
    %84 = vector.load %arg11[%c0_68, %c0_69] : memref<1x8xf32, #tpu.memory_space<vmem>>, vector<1x8xf32>
    %85 = vector.broadcast %84 : vector<1x8xf32> to vector<128x8xf32>
    %86 = arith.addf %83, %85 : vector<128x8xf32>
    %87 = arith.addf %77, %86 : vector<128x8xf32>
    %88 = vector.shape_cast %87 : vector<128x8xf32> to vector<1x8x16x8xf32>
    %c0_70 = arith.constant 0 : index
    %c0_71 = arith.constant 0 : index
    %c0_72 = arith.constant 0 : index
    %c0_73 = arith.constant 0 : index
    %89 = vector.load %arg12[%c0_70, %c0_71, %c0_72, %c0_73] : memref<1x8x16x8xf32, #tpu.memory_space<vmem>>, vector<1x8x16x8xf32>
    tpu.vector_store %arg12[%c0_70, %c0_71, %c0_72, %c0_73], %88 {strides = array<i32>} : memref<1x8x16x8xf32, #tpu.memory_space<vmem>>, vector<1x8x16x8xf32>,
    return
  }
  func.func @transform_0(%arg0: i32, %arg1: i32) -> (i32, i32) {
    %c0_i32 = arith.constant 0 : i32
    %c0_i32_0 = arith.constant 0 : i32
    %c0_i32_1 = arith.constant 0 : i32
    return %c0_i32, %c0_i32_0 : i32, i32
  }
  func.func @transform_1(%arg0: i32, %arg1: i32) -> (i32, i32) {
    %c0_i32 = arith.constant 0 : i32
    %c0_i32_0 = arith.constant 0 : i32
    %c0_i32_1 = arith.constant 0 : i32
    return %c0_i32, %c0_i32_0 : i32, i32
  }
  func.func @transform_2(%arg0: i32, %arg1: i32) -> (i32, i32, i32, i32) {
    %c8_i32 = arith.constant 8 : i32
    %0 = arith.muli %arg1, %c8_i32 : i32
    %c1_i32 = arith.constant 1 : i32
    %1 = arith.subi %0, %c1_i32 : i32
    %c0_i32 = arith.constant 0 : i32
    %2 = arith.maxsi %1, %c0_i32 : i32
    %c0_i32_0 = arith.constant 0 : i32
    %c0_i32_1 = arith.constant 0 : i32
    %c0_i32_2 = arith.constant 0 : i32
    return %arg0, %2, %c0_i32_0, %c0_i32_1 : i32, i32, i32, i32
  }
  func.func @transform_3(%arg0: i32, %arg1: i32) -> (i32, i32, i32, i32) {
    %c0_i32 = arith.constant 0 : i32
    %c0_i32_0 = arith.constant 0 : i32
    %c0_i32_1 = arith.constant 0 : i32
    return %arg0, %arg1, %c0_i32, %c0_i32_0 : i32, i32, i32, i32
  }
  func.func @transform_4(%arg0: i32, %arg1: i32) -> (i32, i32, i32, i32) {
    %c8_i32 = arith.constant 8 : i32
    %0 = arith.muli %arg1, %c8_i32 : i32
    %c8_i32_0 = arith.constant 8 : i32
    %1 = arith.addi %0, %c8_i32_0 : i32
    %c15_i32 = arith.constant 15 : i32
    %2 = arith.minsi %1, %c15_i32 : i32
    %c0_i32 = arith.constant 0 : i32
    %c0_i32_1 = arith.constant 0 : i32
    %c0_i32_2 = arith.constant 0 : i32
    return %arg0, %2, %c0_i32, %c0_i32_1 : i32, i32, i32, i32
  }
  func.func @transform_5(%arg0: i32, %arg1: i32) -> (i32, i32) {
    %c0_i32 = arith.constant 0 : i32
    %c0_i32_0 = arith.constant 0 : i32
    %c0_i32_1 = arith.constant 0 : i32
    return %c0_i32, %c0_i32_0 : i32, i32
  }
  func.func @transform_6(%arg0: i32, %arg1: i32) -> (i32, i32) {
    %c0_i32 = arith.constant 0 : i32
    %c0_i32_0 = arith.constant 0 : i32
    %c0_i32_1 = arith.constant 0 : i32
    return %c0_i32, %c0_i32_0 : i32, i32
  }
  func.func @transform_7(%arg0: i32, %arg1: i32) -> (i32, i32, i32, i32) {
    %c0_i32 = arith.constant 0 : i32
    %c0_i32_0 = arith.constant 0 : i32
    %c0_i32_1 = arith.constant 0 : i32
    return %arg0, %arg1, %c0_i32, %c0_i32_0 : i32, i32, i32, i32
  }
  func.func @transform_8(%arg0: i32, %arg1: i32) -> (i32, i32) {
    %c0_i32 = arith.constant 0 : i32
    %c0_i32_0 = arith.constant 0 : i32
    %c0_i32_1 = arith.constant 0 : i32
    return %c0_i32, %c0_i32_0 : i32, i32
  }
  func.func @transform_9(%arg0: i32, %arg1: i32) -> (i32, i32) {
    %c0_i32 = arith.constant 0 : i32
    %c0_i32_0 = arith.constant 0 : i32
    %c0_i32_1 = arith.constant 0 : i32
    return %c0_i32, %c0_i32_0 : i32, i32
  }
  func.func @transform_10(%arg0: i32, %arg1: i32) -> (i32, i32, i32, i32) {
    %c0_i32 = arith.constant 0 : i32
    %c0_i32_0 = arith.constant 0 : i32
    %c0_i32_1 = arith.constant 0 : i32
    return %arg0, %arg1, %c0_i32, %c0_i32_0 : i32, i32, i32, i32
  }
}

</mosaic_0001>

<llo_original>
// kernel: preact_basic.3
$region0: #{preact_basic.3}
  #allocation0 [shape = 'u32[]', space=smem, size = 0x4, offset = 0x4, fixed_abs, tag = 'smem constant byte address 0x4 - core index']
  #allocation1 [shape = 'u32[144,128]{1,0:T(1,128)}', space=vmem, size = 0x12000, scoped, tag = 'internal scratch']
  %s0 = inlined_call_operand.vmem [shape: f32[2,16,16,4], index: 0, kind: input, shape index: {}]
  %s1 = inlined_call_operand.vmem [shape: f32[2,2,2,4], index: 1, kind: output, shape index: {}]
  %s2 = sld [smem:[#allocation0]]
  $region37: #{preact_basic.3} parent=0
    _
  %s4 = ssub.s32 1, %s2
  %s5 = scalar_select 0, %s4, %s2
  loop: start=0, step=1, limit=6
  $region2: #{preact_basic.3} parent=0 // loop_pre_header
    _
  $region3: #{preact_basic.3} parent=0 // loop_header
    %s7 = sphi 0, %s11
    %p8 = scmp.ge.s32.totalorder %s7, 6
    %s14 = sphi 0, %s26
    %s15 = sphi 0, %s22
    %s16 = sphi 0, %s14
    %s17 = sphi 0, %s15
    %s18 = sphi 0, %s16
    %s19 = sphi 0, %s17
    %s31 = sphi 0, %s33
    %s34 = sphi 0, %s31
    %s35 = sphi 0, %s34
    %s51 = sphi 0, %s35
    %s59 = sphi 0, %s61
    %s62 = sphi 0, %s59
    %s63 = sphi 0, %s62
    %s79 = sphi 0, %s63
  $region4: #{preact_basic.3} parent=0 // loop_header_branch
    %10 = sbr.rel (%p8) target = $region8
  $region5: #{preact_basic.3} parent=0 // loop_body
    %s12 = ssub.s32 %s7, 1
    %s13 = ssub.s32 %s7, 2
    %s20 = sadd.s32 1, %s15
    %p21 = scmp.ge.s32.totalorder %s20, 2
    %s22 = scalar_select %p21, 0, %s20
    %s23 = sadd.s32 1, %s14
    %s24 = scalar_select %p21, %s23, %s14
    %p25 = scmp.ge.s32.totalorder %s24, 2
    %s26 = scalar_select %p25, 0, %s24
    %s27 = ssub.s32 %s14, %s26
    %s28 = ssub.s32 %s15, %s22
    %s29 = sor.u32 %s27, %s28
    %p30 = scmp.eq.s32.totalorder %s29, 0
    %s32 = sadd.s32 %s31, 1
    %s33 = scalar_select %p30, %s31, %s32
    %p36 = pneg %p30
    %p37 = scmp.eq.s32.totalorder %s7, 3
    %p38 = por %p36, %p37
    %p39 = scmp.ne.s32.totalorder %s31, %s34
    %p40 = scmp.eq.s32.totalorder %s7, 0
    %p41 = por %p39, %p40
    %p42 = scmp.ne.s32.totalorder %s31, %s34
    %p43 = scmp.eq.s32.totalorder %s12, 3
    %p44 = por %p42, %p43
    %p45 = scmp.ne.s32.totalorder %s34, %s35
    %p46 = scmp.eq.s32.totalorder %s12, 0
    %p47 = por %p45, %p46
    %p48 = scmp.ne.s32.totalorder %s34, %s35
    %p49 = scmp.eq.s32.totalorder %s13, 3
    %p50 = por %p48, %p49
    %p52 = scmp.ne.s32.totalorder %s35, %s51
    %p53 = scmp.eq.s32.totalorder %s13, 0
    %p54 = por %p52, %p53
    %s55 = ssub.s32 %s14, %s26
    %s56 = ssub.s32 %s15, %s22
    %s57 = sor.u32 %s55, %s56
    %p58 = scmp.eq.s32.totalorder %s57, 0
    %s60 = sadd.s32 %s59, 1
    %s61 = scalar_select %p58, %s59, %s60
    %p64 = pneg %p58
    %p65 = scmp.eq.s32.totalorder %s7, 3
    %p66 = por %p64, %p65
    %p67 = scmp.ne.s32.totalorder %s59, %s62
    %p68 = scmp.eq.s32.totalorder %s7, 0
    %p69 = por %p67, %p68
    %p70 = scmp.ne.s32.totalorder %s59, %s62
    %p71 = scmp.eq.s32.totalorder %s12, 3
    %p72 = por %p70, %p71
    %p73 = scmp.ne.s32.totalorder %s62, %s63
    %p74 = scmp.eq.s32.totalorder %s12, 0
    %p75 = por %p73, %p74
    %p76 = scmp.ne.s32.totalorder %s62, %s63
    %p77 = scmp.eq.s32.totalorder %s13, 3
    %p78 = por %p76, %p77
    %p80 = scmp.ne.s32.totalorder %s63, %s79
    %p81 = scmp.eq.s32.totalorder %s13, 0
    %p82 = por %p80, %p81
    %p83 = scmp.le.s32.totalorder 1, %s7
    %p84 = scmp.lt.s32.totalorder %s7, 5
    %p85 = pnand %p83, %p84
    %p86 = pneg %p85
    // Predicated region
    $region9: #{preact_basic.3} parent=5 // pred_check
      _
    $region10: #{preact_basic.3} parent=5 // pred_check_branch
      %88 = sbr.rel (%p85) target = $region12
    $region11: #{preact_basic.3} parent=5 // pred_region
      %s89 = ssub.s32 %s7, 1
    $region12: #{preact_basic.3} parent=5 // pred_fallthru
      _
    %p90 = scmp.lt.s32.totalorder %s7, 4
    // Predicated region
    $region13: #{preact_basic.3} parent=5 // pred_check
      %p91 = pneg %p90
    $region14: #{preact_basic.3} parent=5 // pred_check_branch
      %93 = sbr.rel (%p91) target = $region16
    $region15: #{preact_basic.3} parent=5 // pred_region
      // Predicated region
      $region17: #{preact_basic.3} parent=15 // pred_check
        %p94 = pneg %p41
      $region18: #{preact_basic.3} parent=15 // pred_check_branch
        %96 = sbr.rel (%p94) target = $region20
      $region19: #{preact_basic.3} parent=15 // pred_region
        %s97 = smul.u32 8, %s15
        %p98 = scmp.lt.s32.totalorder %s14, 1
        %s99 = scalar_select %p98, %s14, 1
        %p100 = scmp.lt.s32.totalorder %s97, 15
        %s101 = scalar_select %p100, %s97, 15
        %s102 = smul.addr %s101, 2
        %s103 = smul.addr %s99, 32
        %s104 = sadd.s32 %s102, %s103
        %s105 = smul.addr %s104, 8
        %s106 = scalar_lea.vmem %s0, %s105
        %s107 = smul.u32 8, %s15
      $region20: #{preact_basic.3} parent=15 // pred_fallthru
        _
    $region16: #{preact_basic.3} parent=5 // pred_fallthru
      _
    %p108 = scmp.le.s32.totalorder 1, %s7
    %p109 = scmp.lt.s32.totalorder %s7, 5
    %p110 = pnand %p108, %p109
    %p111 = pneg %p110
    // Predicated region
    $region21: #{preact_basic.3} parent=5 // pred_check
      _
    $region22: #{preact_basic.3} parent=5 // pred_check_branch
      %113 = sbr.rel (%p110) target = $region24
    $region23: #{preact_basic.3} parent=5 // pred_region
      %s114 = ssub.s32 %s7, 1
      %s115 = smul.u32 8, %s17
      %p116 = scmp.lt.s32.totalorder %s16, 1
      %s117 = scalar_select %p116, %s16, 1
      %p118 = scmp.lt.s32.totalorder %s115, 15
      %s119 = scalar_select %p118, %s115, 15
      %s120 = smul.addr %s119, 2
      %s121 = smul.addr %s117, 32
      %s122 = sadd.s32 %s120, %s121
      %s123 = smul.addr %s122, 8
      %s124 = scalar_lea.vmem %s0, %s123
      %p125 = pneg %p47
      %p126 = pneg %p44
      %p127 = pneg %p75
      %p128 = pneg %p72
      %p129 = scmp.lt.s32.totalorder %s16, 1
      %s130 = scalar_select %p129, %s16, 1
      %p131 = scmp.lt.s32.totalorder %s17, 1
      %s132 = scalar_select %p131, %s17, 1
      %s133 = smul.addr %s130, 2
      %s134 = sadd.s32 %s132, %s133
      %s135 = smul.addr %s134, 2
      %s136 = scalar_lea.vmem %s1, %s135
      %s137 = smul.u32 8, %s17
      %p138 = scmp.lt.s32.totalorder %s16, 1
      %s139 = scalar_select %p138, %s16, 1
      %p140 = scmp.lt.s32.totalorder %s137, 15
      %s141 = scalar_select %p140, %s137, 15
      %s142 = smul.addr %s141, 2
      %s143 = smul.addr %s139, 32
      %s144 = sadd.s32 %s142, %s143
      %s145 = smul.addr %s144, 8
      %s146 = scalar_lea.vmem %s0, %s145
      %s147 = smul.u32 8, %s17
      %p148 = scmp.lt.s32.totalorder %s16, 1
      %s149 = scalar_select %p148, %s16, 1
      %p150 = scmp.lt.s32.totalorder %s17, 1
      %s151 = scalar_select %p150, %s17, 1
      %s152 = smul.addr %s149, 2
      %s153 = sadd.s32 %s151, %s152
      %s154 = smul.addr %s153, 2
      %s155 = scalar_lea.vmem %s1, %s154
      %v156 = vld [vmem:[%s146] sm:$0xff]
      %v157 = vld [vmem:[%s146 + $0x8] sm:$0xff]
      %v158 = vld [vmem:[%s146 + $0x10] sm:$0xff]
      %v159 = vld [vmem:[%s146 + $0x18] sm:$0xff]
      %v160 = vld [vmem:[%s146 + $0x20] sm:$0xff]
      %v161 = vld [vmem:[%s146 + $0x28] sm:$0xff]
      %v162 = vld [vmem:[%s146 + $0x30] sm:$0xff]
      %v163 = vld [vmem:[%s146 + $0x38] sm:$0xff]
      %v164 = vld [vmem:[%s146 + $0x40] sm:$0xff]
      %v165 = vld [vmem:[%s146 + $0x48] sm:$0xff]
      %v166 = vld [vmem:[%s146 + $0x50] sm:$0xff]
      %v167 = vld [vmem:[%s146 + $0x58] sm:$0xff]
      %v168 = vld [vmem:[%s146 + $0x60] sm:$0xff]
      %v169 = vld [vmem:[%s146 + $0x68] sm:$0xff]
      %v170 = vld [vmem:[%s146 + $0x70] sm:$0xff]
      %v171 = vld [vmem:[%s146 + $0x78] sm:$0xff]
      %vm172 = vcmask 31744
      %v173 = vsel %vm172, %v156, 0.0
      %v174 = vsel %vm172, %v157, 0.0
      %v175 = vadd.f32 %v173, %v174
      %v176 = vsel %vm172, %v158, 0.0
      %v177 = vadd.f32 %v175, %v176
      %v178 = vsel %vm172, %v159, 0.0
      %v179 = vadd.f32 %v177, %v178
      %v180 = vsel %vm172, %v160, 0.0
      %v181 = vadd.f32 %v179, %v180
      %v182 = vsel %vm172, %v161, 0.0
      %v183 = vadd.f32 %v181, %v182
      %v184 = vsel %vm172, %v162, 0.0
      %v185 = vadd.f32 %v183, %v184
      %v186 = vsel %vm172, %v163, 0.0
      %v187 = vadd.f32 %v185, %v186
      %v188 = vsel %vm172, %v164, 0.0
      %v189 = vadd.f32 %v187, %v188
      %v190 = vsel %vm172, %v165, 0.0
      %v191 = vadd.f32 %v189, %v190
      %v192 = vsel %vm172, %v166, 0.0
      %v193 = vadd.f32 %v191, %v192
      %v194 = vsel %vm172, %v167, 0.0
      %v195 = vadd.f32 %v193, %v194
      %v196 = vsel %vm172, %v168, 0.0
      %v197 = vadd.f32 %v195, %v196
      %v198 = vsel %vm172, %v169, 0.0
      %v199 = vadd.f32 %v197, %v198
      %v200 = vsel %vm172, %v170, 0.0
      %v201 = vadd.f32 %v199, %v200
      %v202 = vsel %vm172, %v171, 0.0
      %v203 = vadd.f32 %v201, %v202
      %v204 = vrot.slane %v203, 4
      %v205 = vadd.f32 %v203, %v204
      %v206 = vrot.slane %v205, 2
      %v207 = vadd.f32 %v205, %v206
      %v208 = vrot.slane %v207, 1
      %v209 = vadd.f32 %v207, %v208
      %v210 = vmul.f32 %v156, %v156
      %v211 = vmul.f32 %v157, %v157
      %v212 = vmul.f32 %v158, %v158
      %v213 = vmul.f32 %v159, %v159
      %v214 = vmul.f32 %v160, %v160
      %v215 = vmul.f32 %v161, %v161
      %v216 = vmul.f32 %v162, %v162
      %v217 = vmul.f32 %v163, %v163
      %v218 = vmul.f32 %v164, %v164
      %v219 = vmul.f32 %v165, %v165
      %v220 = vmul.f32 %v166, %v166
      %v221 = vmul.f32 %v167, %v167
      %v222 = vmul.f32 %v168, %v168
      %v223 = vmul.f32 %v169, %v169
      %v224 = vmul.f32 %v170, %v170
      %v225 = vmul.f32 %v171, %v171
      %v226 = vsel %vm172, %v210, 0.0
      %v227 = vsel %vm172, %v211, 0.0
      %v228 = vadd.f32 %v226, %v227
      %v229 = vsel %vm172, %v212, 0.0
      %v230 = vadd.f32 %v228, %v229
      %v231 = vsel %vm172, %v213, 0.0
      %v232 = vadd.f32 %v230, %v231
      %v233 = vsel %vm172, %v214, 0.0
      %v234 = vadd.f32 %v232, %v233
      %v235 = vsel %vm172, %v215, 0.0
      %v236 = vadd.f32 %v234, %v235
      %v237 = vsel %vm172, %v216, 0.0
      %v238 = vadd.f32 %v236, %v237
      %v239 = vsel %vm172, %v217, 0.0
      %v240 = vadd.f32 %v238, %v239
      %v241 = vsel %vm172, %v218, 0.0
      %v242 = vadd.f32 %v240, %v241
      %v243 = vsel %vm172, %v219, 0.0
      %v244 = vadd.f32 %v242, %v243
      %v245 = vsel %vm172, %v220, 0.0
      %v246 = vadd.f32 %v244, %v245
      %v247 = vsel %vm172, %v221, 0.0
      %v248 = vadd.f32 %v246, %v247
      %v249 = vsel %vm172, %v222, 0.0
      %v250 = vadd.f32 %v248, %v249
      %v251 = vsel %vm172, %v223, 0.0
      %v252 = vadd.f32 %v250, %v251
      %v253 = vsel %vm172, %v224, 0.0
      %v254 = vadd.f32 %v252, %v253
      %v255 = vsel %vm172, %v225, 0.0
      %v256 = vadd.f32 %v254, %v255
      %v257 = vrot.slane %v256, 4
      %v258 = vadd.f32 %v256, %v257
      %v259 = vrot.slane %v258, 2
      %v260 = vadd.f32 %v258, %v259
      %v261 = vrot.slane %v260, 1
      %v262 = vadd.f32 %v260, %v261
      %vm263 = vcmask 1040384
      %v264 = vsel %vm263, %v209, %v262
      %vm265 = vcmask 25600
      %266 = vst.msk [vmem:[%s155] sm:$0x3] %vm265, %v264
      %p267 = scmp.lt.s32.totalorder %s16, 1
      %s268 = scalar_select %p267, %s16, 1
      %p269 = scmp.lt.s32.totalorder %s17, 1
      %s270 = scalar_select %p269, %s17, 1
      %s271 = smul.addr %s268, 2
      %s272 = sadd.s32 %s270, %s271
      %s273 = smul.addr %s272, 2
      %s274 = scalar_lea.vmem %s1, %s273
      // Predicated region
      $region25: #{preact_basic.3} parent=23 // pred_check
        %p275 = pneg %p72
      $region26: #{preact_basic.3} parent=23 // pred_check_branch
        %277 = sbr.rel (%p275) target = $region28
      $region27: #{preact_basic.3} parent=23 // pred_region
        _
      $region28: #{preact_basic.3} parent=23 // pred_fallthru
        _
    $region24: #{preact_basic.3} parent=5 // pred_fallthru
      _
    %p278 = scmp.le.s32.totalorder 2, %s7
    // Predicated region
    $region29: #{preact_basic.3} parent=5 // pred_check
      %p279 = pneg %p278
    $region30: #{preact_basic.3} parent=5 // pred_check_branch
      %281 = sbr.rel (%p279) target = $region32
    $region31: #{preact_basic.3} parent=5 // pred_region
      %s282 = ssub.s32 %s7, 2
      // Predicated region
      $region33: #{preact_basic.3} parent=31 // pred_check
        %p283 = pneg %p78
      $region34: #{preact_basic.3} parent=31 // pred_check_branch
        %285 = sbr.rel (%p283) target = $region36
      $region35: #{preact_basic.3} parent=31 // pred_region
        %p286 = scmp.lt.s32.totalorder %s18, 1
        %s287 = scalar_select %p286, %s18, 1
        %p288 = scmp.lt.s32.totalorder %s19, 1
        %s289 = scalar_select %p288, %s19, 1
        %s290 = smul.addr %s287, 2
        %s291 = sadd.s32 %s289, %s290
        %s292 = smul.addr %s291, 2
        %s293 = scalar_lea.vmem %s1, %s292
      $region36: #{preact_basic.3} parent=31 // pred_fallthru
        _
    $region32: #{preact_basic.3} parent=5 // pred_fallthru
      _
  $region6: #{preact_basic.3} parent=0 // loop_footer
    %s11 = sadd.s32 1, %s7
  $region7: #{preact_basic.3} parent=0 // loop_footer_branch
    %6 = sbr.rel target = $region3
  $region8: #{preact_basic.3} parent=0 // loop_exit
    _

// kernel: preact_basic.4
$region0: #{preact_basic.4}
  #allocation0 [shape = 'u32[]', space=smem, size = 0x4, offset = 0x4, fixed_abs, tag = 'smem constant byte address 0x4 - core index']
  #allocation1 [shape = 'u32[144,128]{1,0:T(1,128)}', space=vmem, size = 0x12000, scoped, tag = 'internal scratch']
  #allocation2 [shape = 'bf16[10,18,4]{2,1,0:T(8,128)(2,1)}', space=vmem, size = 0xf000, scoped, tag = 'scratch operand']
  %s0 = inlined_call_operand.vmem [shape: f32[1,4], index: 0, kind: input, shape index: {}]
  %s1 = inlined_call_operand.vmem [shape: f32[1,4], index: 1, kind: input, shape index: {}]
  %s2 = inlined_call_operand.vmem [shape: f32[2,16,16,4], index: 2, kind: input, shape index: {}, may-alias: {2,3,4}]
  %s3 = inlined_call_operand.vmem [shape: f32[2,16,16,4], index: 3, kind: input, shape index: {}, may-alias: {2,3,4}]
  %s4 = inlined_call_operand.vmem [shape: f32[2,16,16,4], index: 4, kind: input, shape index: {}, may-alias: {2,3,4}]
  %s5 = inlined_call_operand.vmem [shape: bf16[36,8], index: 5, kind: input, shape index: {}]
  %s6 = inlined_call_operand.vmem [shape: bf16[2,16,16,8], index: 6, kind: output, shape index: {0}]
  %s7 = inlined_call_operand.vmem [shape: f32[2,2,2,8], index: 7, kind: output, shape index: {1}]
  %8 = xla_tuple %s6, %s7
  %s9 = sld [smem:[#allocation0]]
  $region65: #{preact_basic.4} parent=0
    _
  %s11 = ssub.s32 1, %s9
  %s12 = scalar_select 0, %s11, %s9
  loop: start=0, step=1, limit=6
  $region2: #{preact_basic.4} parent=0 // loop_pre_header
    _
  $region3: #{preact_basic.4} parent=0 // loop_header
    %s14 = sphi 0, %s18
    %p15 = scmp.ge.s32.totalorder %s14, 6
    %s21 = sphi 0, %s33
    %s22 = sphi 0, %s29
    %s23 = sphi 0, %s21
    %s24 = sphi 0, %s22
    %s25 = sphi 0, %s23
    %s26 = sphi 0, %s24
    %s34 = sphi 0, %s34
    %s36 = sphi 0, %s34
    %s37 = sphi 0, %s36
    %s51 = sphi 0, %s37
    %s55 = sphi 0, %s55
    %s57 = sphi 0, %s55
    %s58 = sphi 0, %s57
    %s72 = sphi 0, %s58
    %s88 = sphi 0, %s90
    %s91 = sphi 0, %s88
    %s92 = sphi 0, %s91
    %s108 = sphi 0, %s92
    %s116 = sphi 0, %s118
    %s119 = sphi 0, %s116
    %s120 = sphi 0, %s119
    %s136 = sphi 0, %s120
    %s152 = sphi 0, %s154
    %s155 = sphi 0, %s152
    %s156 = sphi 0, %s155
    %s172 = sphi 0, %s156
    %s176 = sphi 0, %s176
    %s178 = sphi 0, %s176
    %s179 = sphi 0, %s178
    %s193 = sphi 0, %s179
    %s201 = sphi 0, %s203
    %s204 = sphi 0, %s201
    %s205 = sphi 0, %s204
    %s221 = sphi 0, %s205
    %s229 = sphi 0, %s231
    %s232 = sphi 0, %s229
    %s233 = sphi 0, %s232
    %s249 = sphi 0, %s233
  $region4: #{preact_basic.4} parent=0 // loop_header_branch
    %17 = sbr.rel (%p15) target = $region8
  $region5: #{preact_basic.4} parent=0 // loop_body
    %s19 = ssub.s32 %s14, 1
    %s20 = ssub.s32 %s14, 2
    %s27 = sadd.s32 1, %s22
    %p28 = scmp.ge.s32.totalorder %s27, 2
    %s29 = scalar_select %p28, 0, %s27
    %s30 = sadd.s32 1, %s21
    %s31 = scalar_select %p28, %s30, %s21
    %p32 = scmp.ge.s32.totalorder %s31, 2
    %s33 = scalar_select %p32, 0, %s31
    %s35 = sadd.s32 %s34, 1
    %p38 = scmp.eq.s32.totalorder %s14, 3
    %p39 = scmp.ne.s32.totalorder %s34, %s36
    %p40 = scmp.eq.s32.totalorder %s14, 0
    %p41 = por %p39, %p40
    %p42 = scmp.ne.s32.totalorder %s34, %s36
    %p43 = scmp.eq.s32.totalorder %s19, 3
    %p44 = por %p42, %p43
    %p45 = scmp.ne.s32.totalorder %s36, %s37
    %p46 = scmp.eq.s32.totalorder %s19, 0
    %p47 = por %p45, %p46
    %p48 = scmp.ne.s32.totalorder %s36, %s37
    %p49 = scmp.eq.s32.totalorder %s20, 3
    %p50 = por %p48, %p49
    %p52 = scmp.ne.s32.totalorder %s37, %s51
    %p53 = scmp.eq.s32.totalorder %s20, 0
    %p54 = por %p52, %p53
    %s56 = sadd.s32 %s55, 1
    %p59 = scmp.eq.s32.totalorder %s14, 3
    %p60 = scmp.ne.s32.totalorder %s55, %s57
    %p61 = scmp.eq.s32.totalorder %s14, 0
    %p62 = por %p60, %p61
    %p63 = scmp.ne.s32.totalorder %s55, %s57
    %p64 = scmp.eq.s32.totalorder %s19, 3
    %p65 = por %p63, %p64
    %p66 = scmp.ne.s32.totalorder %s57, %s58
    %p67 = scmp.eq.s32.totalorder %s19, 0
    %p68 = por %p66, %p67
    %p69 = scmp.ne.s32.totalorder %s57, %s58
    %p70 = scmp.eq.s32.totalorder %s20, 3
    %p71 = por %p69, %p70
    %p73 = scmp.ne.s32.totalorder %s58, %s72
    %p74 = scmp.eq.s32.totalorder %s20, 0
    %p75 = por %p73, %p74
    %s76 = smul.u32 %s22, 8
    %s77 = ssub.s32 %s76, 1
    %p78 = scmp.gt.s32.totalorder %s77, 0
    %s79 = scalar_select %p78, %s77, 0
    %s80 = smul.u32 %s29, 8
    %s81 = ssub.s32 %s80, 1
    %p82 = scmp.gt.s32.totalorder %s81, 0
    %s83 = scalar_select %p82, %s81, 0
    %s84 = ssub.s32 %s21, %s33
    %s85 = ssub.s32 %s79, %s83
    %s86 = sor.u32 %s84, %s85
    %p87 = scmp.eq.s32.totalorder %s86, 0
    %s89 = sadd.s32 %s88, 1
    %s90 = scalar_select %p87, %s88, %s89
    %p93 = pneg %p87
    %p94 = scmp.eq.s32.totalorder %s14, 3
    %p95 = por %p93, %p94
    %p96 = scmp.ne.s32.totalorder %s88, %s91
    %p97 = scmp.eq.s32.totalorder %s14, 0
    %p98 = por %p96, %p97
    %p99 = scmp.ne.s32.totalorder %s88, %s91
    %p100 = scmp.eq.s32.totalorder %s19, 3
    %p101 = por %p99, %p100
    %p102 = scmp.ne.s32.totalorder %s91, %s92
    %p103 = scmp.eq.s32.totalorder %s19, 0
    %p104 = por %p102, %p103
    %p105 = scmp.ne.s32.totalorder %s91, %s92
    %p106 = scmp.eq.s32.totalorder %s20, 3
    %p107 = por %p105, %p106
    %p109 = scmp.ne.s32.totalorder %s92, %s108
    %p110 = scmp.eq.s32.totalorder %s20, 0
    %p111 = por %p109, %p110
    %s112 = ssub.s32 %s21, %s33
    %s113 = ssub.s32 %s22, %s29
    %s114 = sor.u32 %s112, %s113
    %p115 = scmp.eq.s32.totalorder %s114, 0
    %s117 = sadd.s32 %s116, 1
    %s118 = scalar_select %p115, %s116, %s117
    %p121 = pneg %p115
    %p122 = scmp.eq.s32.totalorder %s14, 3
    %p123 = por %p121, %p122
    %p124 = scmp.ne.s32.totalorder %s116, %s119
    %p125 = scmp.eq.s32.totalorder %s14, 0
    %p126 = por %p124, %p125
    %p127 = scmp.ne.s32.totalorder %s116, %s119
    %p128 = scmp.eq.s32.totalorder %s19, 3
    %p129 = por %p127, %p128
    %p130 = scmp.ne.s32.totalorder %s119, %s120
    %p131 = scmp.eq.s32.totalorder %s19, 0
    %p132 = por %p130, %p131
    %p133 = scmp.ne.s32.totalorder %s119, %s120
    %p134 = scmp.eq.s32.totalorder %s20, 3
    %p135 = por %p133, %p134
    %p137 = scmp.ne.s32.totalorder %s120, %s136
    %p138 = scmp.eq.s32.totalorder %s20, 0
    %p139 = por %p137, %p138
    %s140 = smul.u32 %s22, 8
    %s141 = sadd.s32 %s140, 8
    %p142 = scmp.lt.s32.totalorder %s141, 15
    %s143 = scalar_select %p142, %s141, 15
    %s144 = smul.u32 %s29, 8
    %s145 = sadd.s32 %s144, 8
    %p146 = scmp.lt.s32.totalorder %s145, 15
    %s147 = scalar_select %p146, %s145, 15
    %s148 = ssub.s32 %s21, %s33
    %s149 = ssub.s32 %s143, %s147
    %s150 = sor.u32 %s148, %s149
    %p151 = scmp.eq.s32.totalorder %s150, 0
    %s153 = sadd.s32 %s152, 1
    %s154 = scalar_select %p151, %s152, %s153
    %p157 = pneg %p151
    %p158 = scmp.eq.s32.totalorder %s14, 3
    %p159 = por %p157, %p158
    %p160 = scmp.ne.s32.totalorder %s152, %s155
    %p161 = scmp.eq.s32.totalorder %s14, 0
    %p162 = por %p160, %p161
    %p163 = scmp.ne.s32.totalorder %s152, %s155
    %p164 = scmp.eq.s32.totalorder %s19, 3
    %p165 = por %p163, %p164
    %p166 = scmp.ne.s32.totalorder %s155, %s156
    %p167 = scmp.eq.s32.totalorder %s19, 0
    %p168 = por %p166, %p167
    %p169 = scmp.ne.s32.totalorder %s155, %s156
    %p170 = scmp.eq.s32.totalorder %s20, 3
    %p171 = por %p169, %p170
    %p173 = scmp.ne.s32.totalorder %s156, %s172
    %p174 = scmp.eq.s32.totalorder %s20, 0
    %p175 = por %p173, %p174
    %s177 = sadd.s32 %s176, 1
    %p180 = scmp.eq.s32.totalorder %s14, 3
    %p181 = scmp.ne.s32.totalorder %s176, %s178
    %p182 = scmp.eq.s32.totalorder %s14, 0
    %p183 = por %p181, %p182
    %p184 = scmp.ne.s32.totalorder %s176, %s178
    %p185 = scmp.eq.s32.totalorder %s19, 3
    %p186 = por %p184, %p185
    %p187 = scmp.ne.s32.totalorder %s178, %s179
    %p188 = scmp.eq.s32.totalorder %s19, 0
    %p189 = por %p187, %p188
    %p190 = scmp.ne.s32.totalorder %s178, %s179
    %p191 = scmp.eq.s32.totalorder %s20, 3
    %p192 = por %p190, %p191
    %p194 = scmp.ne.s32.totalorder %s179, %s193
    %p195 = scmp.eq.s32.totalorder %s20, 0
    %p196 = por %p194, %p195
    %s197 = ssub.s32 %s21, %s33
    %s198 = ssub.s32 %s22, %s29
    %s199 = sor.u32 %s197, %s198
    %p200 = scmp.eq.s32.totalorder %s199, 0
    %s202 = sadd.s32 %s201, 1
    %s203 = scalar_select %p200, %s201, %s202
    %p206 = pneg %p200
    %p207 = scmp.eq.s32.totalorder %s14, 3
    %p208 = por %p206, %p207
    %p209 = scmp.ne.s32.totalorder %s201, %s204
    %p210 = scmp.eq.s32.totalorder %s14, 0
    %p211 = por %p209, %p210
    %p212 = scmp.ne.s32.totalorder %s201, %s204
    %p213 = scmp.eq.s32.totalorder %s19, 3
    %p214 = por %p212, %p213
    %p215 = scmp.ne.s32.totalorder %s204, %s205
    %p216 = scmp.eq.s32.totalorder %s19, 0
    %p217 = por %p215, %p216
    %p218 = scmp.ne.s32.totalorder %s204, %s205
    %p219 = scmp.eq.s32.totalorder %s20, 3
    %p220 = por %p218, %p219
    %p222 = scmp.ne.s32.totalorder %s205, %s221
    %p223 = scmp.eq.s32.totalorder %s20, 0
    %p224 = por %p222, %p223
    %s225 = ssub.s32 %s21, %s33
    %s226 = ssub.s32 %s22, %s29
    %s227 = sor.u32 %s225, %s226
    %p228 = scmp.eq.s32.totalorder %s227, 0
    %s230 = sadd.s32 %s229, 1
    %s231 = scalar_select %p228, %s229, %s230
    %p234 = pneg %p228
    %p235 = scmp.eq.s32.totalorder %s14, 3
    %p236 = por %p234, %p235
    %p237 = scmp.ne.s32.totalorder %s229, %s232
    %p238 = scmp.eq.s32.totalorder %s14, 0
    %p239 = por %p237, %p238
    %p240 = scmp.ne.s32.totalorder %s229, %s232
    %p241 = scmp.eq.s32.totalorder %s19, 3
    %p242 = por %p240, %p241
    %p243 = scmp.ne.s32.totalorder %s232, %s233
    %p244 = scmp.eq.s32.totalorder %s19, 0
    %p245 = por %p243, %p244
    %p246 = scmp.ne.s32.totalorder %s232, %s233
    %p247 = scmp.eq.s32.totalorder %s20, 3
    %p248 = por %p246, %p247
    %p250 = scmp.ne.s32.totalorder %s233, %s249
    %p251 = scmp.eq.s32.totalorder %s20, 0
    %p252 = por %p250, %p251
    %p253 = scmp.le.s32.totalorder 1, %s14
    %p254 = scmp.lt.s32.totalorder %s14, 5
    %p255 = pnand %p253, %p254
    %p256 = pneg %p255
    // Predicated region
    $region9: #{preact_basic.4} parent=5 // pred_check
      _
    $region10: #{preact_basic.4} parent=5 // pred_check_branch
      %258 = sbr.rel (%p255) target = $region12
    $region11: #{preact_basic.4} parent=5 // pred_region
      %s259 = ssub.s32 %s14, 1
      // Predicated region
      $region13: #{preact_basic.4} parent=11 // pred_check
        %p260 = pneg %p47
      $region14: #{preact_basic.4} parent=11 // pred_check_branch
        %262 = sbr.rel (%p260) target = $region16
      $region15: #{preact_basic.4} parent=11 // pred_region
        _
      $region16: #{preact_basic.4} parent=11 // pred_fallthru
        _
      // Predicated region
      $region17: #{preact_basic.4} parent=11 // pred_check
        %p263 = pneg %p68
      $region18: #{preact_basic.4} parent=11 // pred_check_branch
        %265 = sbr.rel (%p263) target = $region20
      $region19: #{preact_basic.4} parent=11 // pred_region
        _
      $region20: #{preact_basic.4} parent=11 // pred_fallthru
        _
      // Predicated region
      $region21: #{preact_basic.4} parent=11 // pred_check
        %p266 = pneg %p189
      $region22: #{preact_basic.4} parent=11 // pred_check_branch
        %268 = sbr.rel (%p266) target = $region24
      $region23: #{preact_basic.4} parent=11 // pred_region
        _
      $region24: #{preact_basic.4} parent=11 // pred_fallthru
        _
    $region12: #{preact_basic.4} parent=5 // pred_fallthru
      _
    %p269 = scmp.lt.s32.totalorder %s14, 4
    // Predicated region
    $region25: #{preact_basic.4} parent=5 // pred_check
      %p270 = pneg %p269
    $region26: #{preact_basic.4} parent=5 // pred_check_branch
      %272 = sbr.rel (%p270) target = $region28
    $region27: #{preact_basic.4} parent=5 // pred_region
      // Predicated region
      $region29: #{preact_basic.4} parent=27 // pred_check
        %p273 = pneg %p98
      $region30: #{preact_basic.4} parent=27 // pred_check_branch
        %275 = sbr.rel (%p273) target = $region32
      $region31: #{preact_basic.4} parent=27 // pred_region
        %s276 = smul.u32 %s22, 8
        %s277 = ssub.s32 %s276, 1
        %p278 = scmp.gt.s32.totalorder %s277, 0
        %s279 = scalar_select %p278, %s277, 0
        %p280 = scmp.lt.s32.totalorder %s21, 1
        %s281 = scalar_select %p280, %s21, 1
        %p282 = scmp.lt.s32.totalorder %s279, 15
        %s283 = scalar_select %p282, %s279, 15
        %s284 = smul.addr %s283, 2
        %s285 = smul.addr %s281, 32
        %s286 = sadd.s32 %s284, %s285
        %s287 = smul.addr %s286, 8
        %s288 = scalar_lea.vmem %s2, %s287
        %s289 = smul.u32 %s22, 8
        %s290 = ssub.s32 %s289, 1
        %p291 = scmp.gt.s32.totalorder %s290, 0
        %s292 = scalar_select %p291, %s290, 0
      $region32: #{preact_basic.4} parent=27 // pred_fallthru
        _
      // Predicated region
      $region33: #{preact_basic.4} parent=27 // pred_check
        %p293 = pneg %p126
      $region34: #{preact_basic.4} parent=27 // pred_check_branch
        %295 = sbr.rel (%p293) target = $region36
      $region35: #{preact_basic.4} parent=27 // pred_region
        %s296 = smul.u32 8, %s22
        %p297 = scmp.lt.s32.totalorder %s21, 1
        %s298 = scalar_select %p297, %s21, 1
        %p299 = scmp.lt.s32.totalorder %s296, 15
        %s300 = scalar_select %p299, %s296, 15
        %s301 = smul.addr %s300, 2
        %s302 = smul.addr %s298, 32
        %s303 = sadd.s32 %s301, %s302
        %s304 = smul.addr %s303, 8
        %s305 = scalar_lea.vmem %s3, %s304
        %s306 = smul.u32 8, %s22
      $region36: #{preact_basic.4} parent=27 // pred_fallthru
        _
      // Predicated region
      $region37: #{preact_basic.4} parent=27 // pred_check
        %p307 = pneg %p162
      $region38: #{preact_basic.4} parent=27 // pred_check_branch
        %309 = sbr.rel (%p307) target = $region40
      $region39: #{preact_basic.4} parent=27 // pred_region
        %s310 = smul.u32 %s22, 8
        %s311 = sadd.s32 %s310, 8
        %p312 = scmp.lt.s32.totalorder %s311, 15
        %s313 = scalar_select %p312, %s311, 15
        %p314 = scmp.lt.s32.totalorder %s21, 1
        %s315 = scalar_select %p314, %s21, 1
        %p316 = scmp.lt.s32.totalorder %s313, 15
        %s317 = scalar_select %p316, %s313, 15
        %s318 = smul.addr %s317, 2
        %s319 = smul.addr %s315, 32
        %s320 = sadd.s32 %s318, %s319
        %s321 = smul.addr %s320, 8
        %s322 = scalar_lea.vmem %s4, %s321
        %s323 = smul.u32 %s22, 8
        %s324 = sadd.s32 %s323, 8
        %p325 = scmp.lt.s32.totalorder %s324, 15
        %s326 = scalar_select %p325, %s324, 15
      $region40: #{preact_basic.4} parent=27 // pred_fallthru
        _
    $region28: #{preact_basic.4} parent=5 // pred_fallthru
      _
    %p327 = scmp.le.s32.totalorder 1, %s14
    %p328 = scmp.lt.s32.totalorder %s14, 5
    %p329 = pnand %p327, %p328
    %p330 = pneg %p329
    // Predicated region
    $region41: #{preact_basic.4} parent=5 // pred_check
      _
    $region42: #{preact_basic.4} parent=5 // pred_check_branch
      %332 = sbr.rel (%p329) target = $region44
    $region43: #{preact_basic.4} parent=5 // pred_region
      %s333 = ssub.s32 %s14, 1
      %p334 = pneg %p47
      %p335 = pneg %p44
      %p336 = pneg %p68
      %p337 = pneg %p65
      %s338 = smul.u32 %s24, 8
      %s339 = ssub.s32 %s338, 1
      %p340 = scmp.gt.s32.totalorder %s339, 0
      %s341 = scalar_select %p340, %s339, 0
      %p342 = scmp.lt.s32.totalorder %s23, 1
      %s343 = scalar_select %p342, %s23, 1
      %p344 = scmp.lt.s32.totalorder %s341, 15
      %s345 = scalar_select %p344, %s341, 15
      %s346 = smul.addr %s345, 2
      %s347 = smul.addr %s343, 32
      %s348 = sadd.s32 %s346, %s347
      %s349 = smul.addr %s348, 8
      %s350 = scalar_lea.vmem %s2, %s349
      %p351 = pneg %p104
      %p352 = pneg %p101
      %s353 = smul.u32 8, %s24
      %p354 = scmp.lt.s32.totalorder %s23, 1
      %s355 = scalar_select %p354, %s23, 1
      %p356 = scmp.lt.s32.totalorder %s353, 15
      %s357 = scalar_select %p356, %s353, 15
      %s358 = smul.addr %s357, 2
      %s359 = smul.addr %s355, 32
      %s360 = sadd.s32 %s358, %s359
      %s361 = smul.addr %s360, 8
      %s362 = scalar_lea.vmem %s3, %s361
      %p363 = pneg %p132
      %p364 = pneg %p129
      %s365 = smul.u32 %s24, 8
      %s366 = sadd.s32 %s365, 8
      %p367 = scmp.lt.s32.totalorder %s366, 15
      %s368 = scalar_select %p367, %s366, 15
      %p369 = scmp.lt.s32.totalorder %s23, 1
      %s370 = scalar_select %p369, %s23, 1
      %p371 = scmp.lt.s32.totalorder %s368, 15
      %s372 = scalar_select %p371, %s368, 15
      %s373 = smul.addr %s372, 2
      %s374 = smul.addr %s370, 32
      %s375 = sadd.s32 %s373, %s374
      %s376 = smul.addr %s375, 8
      %s377 = scalar_lea.vmem %s4, %s376
      %p378 = pneg %p168
      %p379 = pneg %p165
      %p380 = pneg %p189
      %p381 = pneg %p186
      %p382 = pneg %p217
      %p383 = pneg %p214
      %s384 = smul.u32 8, %s24
      %p385 = scmp.lt.s32.totalorder %s23, 1
      %s386 = scalar_select %p385, %s23, 1
      %p387 = scmp.lt.s32.totalorder %s384, 15
      %s388 = scalar_select %p387, %s384, 15
      %s389 = smul.addr %s388, 2
      %s390 = smul.addr %s386, 32
      %s391 = sadd.s32 %s389, %s390
      %s392 = smul.addr %s391, 4
      %s393 = scalar_lea.vmem %s6, %s392
      %p394 = pneg %p245
      %p395 = pneg %p242
      %p396 = scmp.lt.s32.totalorder %s23, 1
      %s397 = scalar_select %p396, %s23, 1
      %p398 = scmp.lt.s32.totalorder %s24, 1
      %s399 = scalar_select %p398, %s24, 1
      %s400 = smul.addr %s397, 2
      %s401 = sadd.s32 %s399, %s400
      %s402 = smul.addr %s401, 2
      %s403 = scalar_lea.vmem %s7, %s402
      %s404 = smul.u32 %s24, 8
      %s405 = ssub.s32 %s404, 1
      %p406 = scmp.gt.s32.totalorder %s405, 0
      %s407 = scalar_select %p406, %s405, 0
      %p408 = scmp.lt.s32.totalorder %s23, 1
      %s409 = scalar_select %p408, %s23, 1
      %p410 = scmp.lt.s32.totalorder %s407, 15
      %s411 = scalar_select %p410, %s407, 15
      %s412 = smul.addr %s411, 2
      %s413 = smul.addr %s409, 32
      %s414 = sadd.s32 %s412, %s413
      %s415 = smul.addr %s414, 8
      %s416 = scalar_lea.vmem %s2, %s415
      %s417 = smul.u32 %s24, 8
      %s418 = ssub.s32 %s417, 1
      %p419 = scmp.gt.s32.totalorder %s418, 0
      %s420 = scalar_select %p419, %s418, 0
      %s421 = smul.u32 8, %s24
      %p422 = scmp.lt.s32.totalorder %s23, 1
      %s423 = scalar_select %p422, %s23, 1
      %p424 = scmp.lt.s32.totalorder %s421, 15
      %s425 = scalar_select %p424, %s421, 15
      %s426 = smul.addr %s425, 2
      %s427 = smul.addr %s423, 32
      %s428 = sadd.s32 %s426, %s427
      %s429 = smul.addr %s428, 8
      %s430 = scalar_lea.vmem %s3, %s429
      %s431 = smul.u32 8, %s24
      %s432 = smul.u32 %s24, 8
      %s433 = sadd.s32 %s432, 8
      %p434 = scmp.lt.s32.totalorder %s433, 15
      %s435 = scalar_select %p434, %s433, 15
      %p436 = scmp.lt.s32.totalorder %s23, 1
      %s437 = scalar_select %p436, %s23, 1
      %p438 = scmp.lt.s32.totalorder %s435, 15
      %s439 = scalar_select %p438, %s435, 15
      %s440 = smul.addr %s439, 2
      %s441 = smul.addr %s437, 32
      %s442 = sadd.s32 %s440, %s441
      %s443 = smul.addr %s442, 8
      %s444 = scalar_lea.vmem %s4, %s443
      %s445 = smul.u32 %s24, 8
      %s446 = sadd.s32 %s445, 8
      %p447 = scmp.lt.s32.totalorder %s446, 15
      %s448 = scalar_select %p447, %s446, 15
      %s449 = smul.u32 8, %s24
      %p450 = scmp.lt.s32.totalorder %s23, 1
      %s451 = scalar_select %p450, %s23, 1
      %p452 = scmp.lt.s32.totalorder %s449, 15
      %s453 = scalar_select %p452, %s449, 15
      %s454 = smul.addr %s453, 2
      %s455 = smul.addr %s451, 32
      %s456 = sadd.s32 %s454, %s455
      %s457 = smul.addr %s456, 4
      %s458 = scalar_lea.vmem %s6, %s457
      %s459 = smul.u32 8, %s24
      %p460 = scmp.lt.s32.totalorder %s23, 1
      %s461 = scalar_select %p460, %s23, 1
      %p462 = scmp.lt.s32.totalorder %s24, 1
      %s463 = scalar_select %p462, %s24, 1
      %s464 = smul.addr %s461, 2
      %s465 = sadd.s32 %s463, %s464
      %s466 = smul.addr %s465, 2
      %s467 = scalar_lea.vmem %s7, %s466
      %v469 = vld [vmem:[%s0] sm:$0x1]
      %v470 = vld [vmem:[%s1] sm:$0x1]
      %vm471 = vcmask 24576
      %vm472 = vsmask.f32 256
      %vm473 = vmand %vm471, %vm472
      %v474 = vld [vmem:[#allocation2] sm:$0x1]
      %v475 = vsel %vm473, 0, %v474
      %476 = vst [vmem:[#allocation2] sm:$0x1] %v475
      %v477 = vld [vmem:[#allocation2 + $0xc] sm:$0x1]
      %v478 = vsel %vm473, 0, %v477
      %479 = vst [vmem:[#allocation2 + $0xc] sm:$0x1] %v478
      %v480 = vld [vmem:[#allocation2 + $0x18] sm:$0x1]
      %v481 = vsel %vm473, 0, %v480
      %482 = vst [vmem:[#allocation2 + $0x18] sm:$0x1] %v481
      %v483 = vld [vmem:[#allocation2 + $0x24] sm:$0x1]
      %v484 = vsel %vm473, 0, %v483
      %485 = vst [vmem:[#allocation2 + $0x24] sm:$0x1] %v484
      %v486 = vld [vmem:[#allocation2 + $0x30] sm:$0x1]
      %v487 = vsel %vm473, 0, %v486
      %488 = vst [vmem:[#allocation2 + $0x30] sm:$0x1] %v487
      %v489 = vld [vmem:[#allocation2 + $0x3c] sm:$0x1]
      %v490 = vsel %vm473, 0, %v489
      %491 = vst [vmem:[#allocation2 + $0x3c] sm:$0x1] %v490
      %v492 = vld [vmem:[#allocation2 + $0x48] sm:$0x1]
      %v493 = vsel %vm473, 0, %v492
      %494 = vst [vmem:[#allocation2 + $0x48] sm:$0x1] %v493
      %v495 = vld [vmem:[#allocation2 + $0x54] sm:$0x1]
      %v496 = vsel %vm473, 0, %v495
      %497 = vst [vmem:[#allocation2 + $0x54] sm:$0x1] %v496
      %v498 = vld [vmem:[#allocation2 + $0x60] sm:$0x1]
      %v499 = vsel %vm473, 0, %v498
      %500 = vst [vmem:[#allocation2 + $0x60] sm:$0x1] %v499
      %v501 = vld [vmem:[#allocation2 + $0x6c] sm:$0x1]
      %v502 = vsel %vm473, 0, %v501
      %503 = vst [vmem:[#allocation2 + $0x6c] sm:$0x1] %v502
      %vm504 = vsmask.f32 7938
      %vm505 = vmand %vm471, %vm504
      %v506 = vld [vmem:[#allocation2 + $0x8] sm:$0x1]
      %v507 = vsel %vm505, 0, %v506
      %508 = vst [vmem:[#allocation2 + $0x8] sm:$0x1] %v507
      %v509 = vld [vmem:[#allocation2 + $0x14] sm:$0x1]
      %v510 = vsel %vm505, 0, %v509
      %511 = vst [vmem:[#allocation2 + $0x14] sm:$0x1] %v510
      %v512 = vld [vmem:[#allocation2 + $0x20] sm:$0x1]
      %v513 = vsel %vm505, 0, %v512
      %514 = vst [vmem:[#allocation2 + $0x20] sm:$0x1] %v513
      %v515 = vld [vmem:[#allocation2 + $0x2c] sm:$0x1]
      %v516 = vsel %vm505, 0, %v515
      %517 = vst [vmem:[#allocation2 + $0x2c] sm:$0x1] %v516
      %v518 = vld [vmem:[#allocation2 + $0x38] sm:$0x1]
      %v519 = vsel %vm505, 0, %v518
      %520 = vst [vmem:[#allocation2 + $0x38] sm:$0x1] %v519
      %v521 = vld [vmem:[#allocation2 + $0x44] sm:$0x1]
      %v522 = vsel %vm505, 0, %v521
      %523 = vst [vmem:[#allocation2 + $0x44] sm:$0x1] %v522
      %v524 = vld [vmem:[#allocation2 + $0x50] sm:$0x1]
      %v525 = vsel %vm505, 0, %v524
      %526 = vst [vmem:[#allocation2 + $0x50] sm:$0x1] %v525
      %v527 = vld [vmem:[#allocation2 + $0x5c] sm:$0x1]
      %v528 = vsel %vm505, 0, %v527
      %529 = vst [vmem:[#allocation2 + $0x5c] sm:$0x1] %v528
      %v530 = vld [vmem:[#allocation2 + $0x68] sm:$0x1]
      %v531 = vsel %vm505, 0, %v530
      %532 = vst [vmem:[#allocation2 + $0x68] sm:$0x1] %v531
      %v533 = vld [vmem:[#allocation2 + $0x74] sm:$0x1]
      %v534 = vsel %vm505, 0, %v533
      %535 = vst [vmem:[#allocation2 + $0x74] sm:$0x1] %v534
      %v536 = vld [vmem:[%s430] sm:$0xff]
      %v537 = vld [vmem:[%s430 + $0x8] sm:$0xff]
      %v538 = vld [vmem:[%s430 + $0x10] sm:$0xff]
      %v539 = vld [vmem:[%s430 + $0x18] sm:$0xff]
      %v540 = vld [vmem:[%s430 + $0x20] sm:$0xff]
      %v541 = vld [vmem:[%s430 + $0x28] sm:$0xff]
      %v542 = vld [vmem:[%s430 + $0x30] sm:$0xff]
      %v543 = vld [vmem:[%s430 + $0x38] sm:$0xff]
      %v544 = vld [vmem:[%s430 + $0x40] sm:$0xff]
      %v545 = vld [vmem:[%s430 + $0x48] sm:$0xff]
      %v546 = vld [vmem:[%s430 + $0x50] sm:$0xff]
      %v547 = vld [vmem:[%s430 + $0x58] sm:$0xff]
      %v548 = vld [vmem:[%s430 + $0x60] sm:$0xff]
      %v549 = vld [vmem:[%s430 + $0x68] sm:$0xff]
      %v550 = vld [vmem:[%s430 + $0x70] sm:$0xff]
      %v551 = vld [vmem:[%s430 + $0x78] sm:$0xff]
      %v553 = vlaneseq
      %v554 = vshrl.u32 %v553, 7
      %v555 = vsub.s32 0, %v554
      %v556 = vrot.slane %v469, %v555
      %v558 = vmul.f32 %v536, %v556
      %v559 = vmul.f32 %v537, %v556
      %v560 = vmul.f32 %v538, %v556
      %v561 = vmul.f32 %v539, %v556
      %v562 = vmul.f32 %v540, %v556
      %v563 = vmul.f32 %v541, %v556
      %v564 = vmul.f32 %v542, %v556
      %v565 = vmul.f32 %v543, %v556
      %v566 = vmul.f32 %v544, %v556
      %v567 = vmul.f32 %v545, %v556
      %v568 = vmul.f32 %v546, %v556
      %v569 = vmul.f32 %v547, %v556
      %v570 = vmul.f32 %v548, %v556
      %v571 = vmul.f32 %v549, %v556
      %v572 = vmul.f32 %v550, %v556
      %v573 = vmul.f32 %v551, %v556
      %v575 = vlaneseq
      %v576 = vshrl.u32 %v575, 7
      %v577 = vsub.s32 0, %v576
      %v578 = vrot.slane %v470, %v577
      %v580 = vadd.f32 %v558, %v578
      %v581 = vadd.f32 %v559, %v578
      %v582 = vadd.f32 %v560, %v578
      %v583 = vadd.f32 %v561, %v578
      %v584 = vadd.f32 %v562, %v578
      %v585 = vadd.f32 %v563, %v578
      %v586 = vadd.f32 %v564, %v578
      %v587 = vadd.f32 %v565, %v578
      %v588 = vadd.f32 %v566, %v578
      %v589 = vadd.f32 %v567, %v578
      %v590 = vadd.f32 %v568, %v578
      %v591 = vadd.f32 %v569, %v578
      %v592 = vadd.f32 %v570, %v578
      %v593 = vadd.f32 %v571, %v578
      %v594 = vadd.f32 %v572, %v578
      %v595 = vadd.f32 %v573, %v578
      %v596 = vmax.f32 %v580, 0.0
      %v597 = vmax.f32 %v581, 0.0
      %v598 = vmax.f32 %v582, 0.0
      %v599 = vmax.f32 %v583, 0.0
      %v600 = vmax.f32 %v584, 0.0
      %v601 = vmax.f32 %v585, 0.0
      %v602 = vmax.f32 %v586, 0.0
      %v603 = vmax.f32 %v587, 0.0
      %v604 = vmax.f32 %v588, 0.0
      %v605 = vmax.f32 %v589, 0.0
      %v606 = vmax.f32 %v590, 0.0
      %v607 = vmax.f32 %v591, 0.0
      %v608 = vmax.f32 %v592, 0.0
      %v609 = vmax.f32 %v593, 0.0
      %v610 = vmax.f32 %v594, 0.0
      %v611 = vmax.f32 %v595, 0.0
      %v612 = vpack.c.bf16 %v597, %v596
      %v613 = vpack.c.bf16 %v599, %v598
      %v614 = vpack.c.bf16 %v601, %v600
      %v615 = vpack.c.bf16 %v603, %v602
      %v616 = vpack.c.bf16 %v605, %v604
      %v617 = vpack.c.bf16 %v607, %v606
      %v618 = vpack.c.bf16 %v609, %v608
      %v619 = vpack.c.bf16 %v611, %v610
      %v628 = vunpack.c.l.b16 %v612
      %v629 = vunpack.c.h.b16 %v612
      %v630 = vunpack.c.l.b16 %v613
      %v631 = vunpack.c.h.b16 %v613
      %v632 = vunpack.c.l.b16 %v614
      %v633 = vunpack.c.h.b16 %v614
      %v634 = vunpack.c.l.b16 %v615
      %v635 = vunpack.c.h.b16 %v615
      %v636 = vunpack.c.l.b16 %v616
      %v637 = vunpack.c.h.b16 %v616
      %v638 = vunpack.c.l.b16 %v617
      %v639 = vunpack.c.h.b16 %v617
      %v640 = vunpack.c.l.b16 %v618
      %v641 = vunpack.c.h.b16 %v618
      %v642 = vunpack.c.l.b16 %v619
      %v643 = vunpack.c.h.b16 %v619
      %v644 = vpack.c.b16 %v628, %v628
      %v645 = vpack.c.b16 %v629, %v629
      %v646 = vpack.c.b16 %v630, %v630
      %v647 = vpack.c.b16 %v631, %v631
      %v648 = vpack.c.b16 %v632, %v632
      %v649 = vpack.c.b16 %v633, %v633
      %v650 = vpack.c.b16 %v634, %v634
      %v651 = vpack.c.b16 %v635, %v635
      %v652 = vpack.c.b16 %v636, %v636
      %v653 = vpack.c.b16 %v637, %v637
      %v654 = vpack.c.b16 %v638, %v638
      %v655 = vpack.c.b16 %v639, %v639
      %v656 = vpack.c.b16 %v640, %v640
      %v657 = vpack.c.b16 %v641, %v641
      %v658 = vpack.c.b16 %v642, %v642
      %v659 = vpack.c.b16 %v643, %v643
      %vm660 = vsmask.f32 4368
      %vm661 = vmor %vm472, %vm660
      %v663 = vshrl.u32 %v644, 16
      %v665 = vrot.slane %v663, 7
      %v666 = vshll.u32 %v644, 16
      %v668 = vor.u32 %v665, %v666
      %v669 = vrot.slane %v665, 4
      %v671 = vshrl.u32 %v645, 16
      %v673 = vrot.slane %v671, 7
      %v674 = vshll.u32 %v645, 16
      %v676 = vor.u32 %v673, %v674
      %v677 = vsel %vm661, %v669, %v676
      %v678 = vrot.slane %v673, 4
      %v680 = vshrl.u32 %v646, 16
      %v682 = vrot.slane %v680, 7
      %v683 = vshll.u32 %v646, 16
      %v685 = vor.u32 %v682, %v683
      %v686 = vrot.slane %v682, 4
      %v688 = vshrl.u32 %v647, 16
      %v690 = vrot.slane %v688, 7
      %v691 = vshll.u32 %v647, 16
      %v693 = vor.u32 %v690, %v691
      %v694 = vsel %vm661, %v686, %v693
      %v695 = vrot.slane %v690, 4
      %v697 = vshrl.u32 %v648, 16
      %v699 = vrot.slane %v697, 7
      %v700 = vshll.u32 %v648, 16
      %v702 = vor.u32 %v699, %v700
      %v703 = vrot.slane %v699, 4
      %v705 = vshrl.u32 %v649, 16
      %v707 = vrot.slane %v705, 7
      %v708 = vshll.u32 %v649, 16
      %v710 = vor.u32 %v707, %v708
      %v711 = vsel %vm661, %v703, %v710
      %v712 = vrot.slane %v707, 4
      %v714 = vshrl.u32 %v650, 16
      %v716 = vrot.slane %v714, 7
      %v717 = vshll.u32 %v650, 16
      %v719 = vor.u32 %v716, %v717
      %v720 = vrot.slane %v716, 4
      %v722 = vshrl.u32 %v651, 16
      %v724 = vrot.slane %v722, 7
      %v725 = vshll.u32 %v651, 16
      %v727 = vor.u32 %v724, %v725
      %v728 = vsel %vm661, %v720, %v727
      %v729 = vrot.slane %v724, 4
      %v731 = vshrl.u32 %v652, 16
      %v733 = vrot.slane %v731, 7
      %v734 = vshll.u32 %v652, 16
      %v736 = vor.u32 %v733, %v734
      %v737 = vrot.slane %v733, 4
      %v739 = vshrl.u32 %v653, 16
      %v741 = vrot.slane %v739, 7
      %v742 = vshll.u32 %v653, 16
      %v744 = vor.u32 %v741, %v742
      %v745 = vsel %vm661, %v737, %v744
      %v746 = vrot.slane %v741, 4
      %v748 = vshrl.u32 %v654, 16
      %v750 = vrot.slane %v748, 7
      %v751 = vshll.u32 %v654, 16
      %v753 = vor.u32 %v750, %v751
      %v754 = vrot.slane %v750, 4
      %v756 = vshrl.u32 %v655, 16
      %v758 = vrot.slane %v756, 7
      %v759 = vshll.u32 %v655, 16
      %v761 = vor.u32 %v758, %v759
      %v762 = vsel %vm661, %v754, %v761
      %v763 = vrot.slane %v758, 4
      %v765 = vshrl.u32 %v656, 16
      %v767 = vrot.slane %v765, 7
      %v768 = vshll.u32 %v656, 16
      %v770 = vor.u32 %v767, %v768
      %v771 = vrot.slane %v767, 4
      %v773 = vshrl.u32 %v657, 16
      %v775 = vrot.slane %v773, 7
      %v776 = vshll.u32 %v657, 16
      %v778 = vor.u32 %v775, %v776
      %v779 = vsel %vm661, %v771, %v778
      %v780 = vrot.slane %v775, 4
      %v782 = vshrl.u32 %v658, 16
      %v784 = vrot.slane %v782, 7
      %v785 = vshll.u32 %v658, 16
      %v787 = vor.u32 %v784, %v785
      %v788 = vrot.slane %v784, 4
      %v790 = vshrl.u32 %v659, 16
      %v792 = vrot.slane %v790, 7
      %v793 = vshll.u32 %v659, 16
      %v795 = vor.u32 %v792, %v793
      %v796 = vsel %vm661, %v788, %v795
      %v797 = vrot.slane %v792, 4
      %s822 = scalar_lea.vmem [#allocation2], 12
      %vm823 = vcmask 27648
      %vm824 = vmand %vm823, %vm504
      %v825 = vld [vmem:[%s822] sm:$0xf]
      %v826 = vsel %vm824, %v668, %v825
      %827 = vst [vmem:[%s822] sm:$0xf] %v826
      %vm828 = vcmask 27648
      %829 = vst.msk [vmem:[%s822 + $0x4] sm:$0xf] %vm828, %v677
      %v830 = vld [vmem:[%s822 + $0x8] sm:$0x1]
      %v831 = vsel %vm473, %v678, %v830
      %832 = vst [vmem:[%s822 + $0x8] sm:$0x1] %v831
      %v833 = vld [vmem:[%s822 + $0xc] sm:$0xf]
      %v834 = vsel %vm824, %v685, %v833
      %835 = vst [vmem:[%s822 + $0xc] sm:$0xf] %v834
      %836 = vst.msk [vmem:[%s822 + $0x10] sm:$0xf] %vm828, %v694
      %v837 = vld [vmem:[%s822 + $0x14] sm:$0x1]
      %v838 = vsel %vm473, %v695, %v837
      %839 = vst [vmem:[%s822 + $0x14] sm:$0x1] %v838
      %v840 = vld [vmem:[%s822 + $0x18] sm:$0xf]
      %v841 = vsel %vm824, %v702, %v840
      %842 = vst [vmem:[%s822 + $0x18] sm:$0xf] %v841
      %843 = vst.msk [vmem:[%s822 + $0x1c] sm:$0xf] %vm828, %v711
      %v844 = vld [vmem:[%s822 + $0x20] sm:$0x1]
      %v845 = vsel %vm473, %v712, %v844
      %846 = vst [vmem:[%s822 + $0x20] sm:$0x1] %v845
      %v847 = vld [vmem:[%s822 + $0x24] sm:$0xf]
      %v848 = vsel %vm824, %v719, %v847
      %849 = vst [vmem:[%s822 + $0x24] sm:$0xf] %v848
      %850 = vst.msk [vmem:[%s822 + $0x28] sm:$0xf] %vm828, %v728
      %v851 = vld [vmem:[%s822 + $0x2c] sm:$0x1]
      %v852 = vsel %vm473, %v729, %v851
      %853 = vst [vmem:[%s822 + $0x2c] sm:$0x1] %v852
      %v854 = vld [vmem:[%s822 + $0x30] sm:$0xf]
      %v855 = vsel %vm824, %v736, %v854
      %856 = vst [vmem:[%s822 + $0x30] sm:$0xf] %v855
      %857 = vst.msk [vmem:[%s822 + $0x34] sm:$0xf] %vm828, %v745
      %v858 = vld [vmem:[%s822 + $0x38] sm:$0x1]
      %v859 = vsel %vm473, %v746, %v858
      %860 = vst [vmem:[%s822 + $0x38] sm:$0x1] %v859
      %v861 = vld [vmem:[%s822 + $0x3c] sm:$0xf]
      %v862 = vsel %vm824, %v753, %v861
      %863 = vst [vmem:[%s822 + $0x3c] sm:$0xf] %v862
      %864 = vst.msk [vmem:[%s822 + $0x40] sm:$0xf] %vm828, %v762
      %v865 = vld [vmem:[%s822 + $0x44] sm:$0x1]
      %v866 = vsel %vm473, %v763, %v865
      %867 = vst [vmem:[%s822 + $0x44] sm:$0x1] %v866
      %v868 = vld [vmem:[%s822 + $0x48] sm:$0xf]
      %v869 = vsel %vm824, %v770, %v868
      %870 = vst [vmem:[%s822 + $0x48] sm:$0xf] %v869
      %871 = vst.msk [vmem:[%s822 + $0x4c] sm:$0xf] %vm828, %v779
      %v872 = vld [vmem:[%s822 + $0x50] sm:$0x1]
      %v873 = vsel %vm473, %v780, %v872
      %874 = vst [vmem:[%s822 + $0x50] sm:$0x1] %v873
      %v875 = vld [vmem:[%s822 + $0x54] sm:$0xf]
      %v876 = vsel %vm824, %v787, %v875
      %877 = vst [vmem:[%s822 + $0x54] sm:$0xf] %v876
      %878 = vst.msk [vmem:[%s822 + $0x58] sm:$0xf] %vm828, %v796
      %v879 = vld [vmem:[%s822 + $0x5c] sm:$0x1]
      %v880 = vsel %vm473, %v797, %v879
      %881 = vst [vmem:[%s822 + $0x5c] sm:$0x1] %v880
      %v882 = vld [vmem:[%s416] sm:$0xff]
      %v883 = vld [vmem:[%s416 + $0x8] sm:$0xff]
      %v884 = vmul.f32 %v882, %v556
      %v885 = vmul.f32 %v883, %v556
      %v886 = vadd.f32 %v884, %v578
      %v887 = vadd.f32 %v885, %v578
      %v888 = vmax.f32 %v886, 0.0
      %v889 = vmax.f32 %v887, 0.0
      %p890 = scmp.gt.s32.totalorder %s24, 0
      %s891 = scalar_select %p890, 1, 0
      %s892 = scvt.s32.f32 %s891
      %v893 = vstv %s892
      %v894 = vmul.f32 %v888, %v893
      %v895 = vmul.f32 %v889, %v893
      %v896 = vpack.c.bf16 %v895, %v894
      %v898 = vunpack.c.l.b16 %v896
      %v899 = vunpack.c.h.b16 %v896
      %v900 = vpack.c.b16 %v898, %v898
      %v901 = vpack.c.b16 %v899, %v899
      %v903 = vshrl.u32 %v900, 16
      %v905 = vrot.slane %v903, 7
      %v906 = vshll.u32 %v900, 16
      %v908 = vor.u32 %v905, %v906
      %v909 = vrot.slane %v905, 4
      %v911 = vshrl.u32 %v901, 16
      %v913 = vrot.slane %v911, 7
      %v914 = vshll.u32 %v901, 16
      %v916 = vor.u32 %v913, %v914
      %v917 = vsel %vm661, %v909, %v916
      %v918 = vrot.slane %v913, 4
      %v922 = vld [vmem:[#allocation2] sm:$0xf]
      %v923 = vsel %vm824, %v908, %v922
      %924 = vst [vmem:[#allocation2] sm:$0xf] %v923
      %925 = vst.msk [vmem:[#allocation2 + $0x4] sm:$0xf] %vm828, %v917
      %v926 = vld [vmem:[#allocation2 + $0x8] sm:$0x1]
      %v927 = vsel %vm473, %v918, %v926
      %928 = vst [vmem:[#allocation2 + $0x8] sm:$0x1] %v927
      %v929 = vld [vmem:[%s444] sm:$0xff]
      %v930 = vld [vmem:[%s444 + $0x8] sm:$0xff]
      %v931 = vmul.f32 %v929, %v556
      %v932 = vmul.f32 %v930, %v556
      %v933 = vadd.f32 %v931, %v578
      %v934 = vadd.f32 %v932, %v578
      %v935 = vmax.f32 %v933, 0.0
      %v936 = vmax.f32 %v934, 0.0
      %p937 = scmp.lt.s32.totalorder %s24, 1
      %s938 = scalar_select %p937, 1, 0
      %s939 = scvt.s32.f32 %s938
      %v940 = vstv %s939
      %v941 = vmul.f32 %v935, %v940
      %v942 = vmul.f32 %v936, %v940
      %v943 = vpack.c.bf16 %v942, %v941
      %v945 = vunpack.c.l.b16 %v943
      %v946 = vunpack.c.h.b16 %v943
      %v947 = vpack.c.b16 %v945, %v945
      %v948 = vpack.c.b16 %v946, %v946
      %v950 = vshrl.u32 %v947, 16
      %v952 = vrot.slane %v950, 7
      %v953 = vshll.u32 %v947, 16
      %v955 = vor.u32 %v952, %v953
      %v956 = vrot.slane %v952, 4
      %v958 = vshrl.u32 %v948, 16
      %v960 = vrot.slane %v958, 7
      %v961 = vshll.u32 %v948, 16
      %v963 = vor.u32 %v960, %v961
      %v964 = vsel %vm661, %v956, %v963
      %v965 = vrot.slane %v960, 4
      %s969 = scalar_lea.vmem [#allocation2], 108
      %v970 = vld [vmem:[%s969] sm:$0xf]
      %v971 = vsel %vm824, %v955, %v970
      %972 = vst [vmem:[%s969] sm:$0xf] %v971
      %973 = vst.msk [vmem:[%s969 + $0x4] sm:$0xf] %vm828, %v964
      %v974 = vld [vmem:[%s969 + $0x8] sm:$0x1]
      %v975 = vsel %vm473, %v965, %v974
      %976 = vst [vmem:[%s969 + $0x8] sm:$0x1] %v975
      %v977 = vld [vmem:[#allocation2] sm:$0xf]
      %v978 = vld [vmem:[#allocation2 + $0x4] sm:$0xf]
      %v979 = vld [vmem:[#allocation2 + $0xc] sm:$0xf]
      %v980 = vld [vmem:[#allocation2 + $0x10] sm:$0xf]
      %v981 = vld [vmem:[#allocation2 + $0x18] sm:$0xf]
      %v982 = vld [vmem:[#allocation2 + $0x1c] sm:$0xf]
      %v983 = vld [vmem:[#allocation2 + $0x24] sm:$0xf]
      %v984 = vld [vmem:[#allocation2 + $0x28] sm:$0xf]
      %v985 = vld [vmem:[#allocation2 + $0x30] sm:$0xf]
      %v986 = vld [vmem:[#allocation2 + $0x34] sm:$0xf]
      %v987 = vld [vmem:[#allocation2 + $0x3c] sm:$0xf]
      %v988 = vld [vmem:[#allocation2 + $0x40] sm:$0xf]
      %v989 = vld [vmem:[#allocation2 + $0x48] sm:$0xf]
      %v990 = vld [vmem:[#allocation2 + $0x4c] sm:$0xf]
      %v991 = vld [vmem:[#allocation2 + $0x54] sm:$0xf]
      %v992 = vld [vmem:[#allocation2 + $0x58] sm:$0xf]
      %v993 = vld [vmem:[#allocation2 + $0x8] sm:$0x1]
      %v994 = vld [vmem:[#allocation2 + $0x14] sm:$0x1]
      %v995 = vld [vmem:[#allocation2 + $0x20] sm:$0x1]
      %v996 = vld [vmem:[#allocation2 + $0x2c] sm:$0x1]
      %v997 = vld [vmem:[#allocation2 + $0x38] sm:$0x1]
      %v998 = vld [vmem:[#allocation2 + $0x44] sm:$0x1]
      %v999 = vld [vmem:[#allocation2 + $0x50] sm:$0x1]
      %v1000 = vld [vmem:[#allocation2 + $0x5c] sm:$0x1]
      %vm1001 = vsmask.f32 3328
      %vm1002 = vsmask.f32 7440
      %vm1003 = vmor %vm1001, %vm1002
      %v1005 = vshrl.u32 %v977, 16
      %v1007 = vrot.slane %v1005, 4
      %v1008 = vshll.u32 %v977, 16
      %v1010 = vrot.slane %v1008, 5
      %v1011 = vor.u32 %v1007, %v1010
      %v1012 = vrot.slane %v1011, 4
      %v1014 = vshll.u32 %v978, 16
      %v1016 = vrot.slane %v1014, 5
      %v1017 = vsel %vm1003, %v1012, %v1016
      %v1018 = vshrl.u32 %v978, 16
      %v1020 = vrot.slane %v1018, 4
      %v1021 = vor.u32 %v1020, %v1016
      %v1022 = vrot.slane %v1021, 4
      %v1024 = vshll.u32 %v993, 16
      %v1026 = vrot.slane %v1024, 5
      %v1027 = vsel %vm1003, %v1022, %v1026
      %v1029 = vshrl.u32 %v979, 16
      %v1031 = vrot.slane %v1029, 4
      %v1032 = vshll.u32 %v979, 16
      %v1034 = vrot.slane %v1032, 5
      %v1035 = vor.u32 %v1031, %v1034
      %v1036 = vrot.slane %v1035, 4
      %v1038 = vshll.u32 %v980, 16
      %v1040 = vrot.slane %v1038, 5
      %v1041 = vsel %vm1003, %v1036, %v1040
      %v1042 = vshrl.u32 %v980, 16
      %v1044 = vrot.slane %v1042, 4
      %v1045 = vor.u32 %v1044, %v1040
      %v1046 = vrot.slane %v1045, 4
      %v1048 = vshll.u32 %v994, 16
      %v1050 = vrot.slane %v1048, 5
      %v1051 = vsel %vm1003, %v1046, %v1050
      %v1053 = vshrl.u32 %v981, 16
      %v1055 = vrot.slane %v1053, 4
      %v1056 = vshll.u32 %v981, 16
      %v1058 = vrot.slane %v1056, 5
      %v1059 = vor.u32 %v1055, %v1058
      %v1060 = vrot.slane %v1059, 4
      %v1062 = vshll.u32 %v982, 16
      %v1064 = vrot.slane %v1062, 5
      %v1065 = vsel %vm1003, %v1060, %v1064
      %v1066 = vshrl.u32 %v982, 16
      %v1068 = vrot.slane %v1066, 4
      %v1069 = vor.u32 %v1068, %v1064
      %v1070 = vrot.slane %v1069, 4
      %v1072 = vshll.u32 %v995, 16
      %v1074 = vrot.slane %v1072, 5
      %v1075 = vsel %vm1003, %v1070, %v1074
      %v1077 = vshrl.u32 %v983, 16
      %v1079 = vrot.slane %v1077, 4
      %v1080 = vshll.u32 %v983, 16
      %v1082 = vrot.slane %v1080, 5
      %v1083 = vor.u32 %v1079, %v1082
      %v1084 = vrot.slane %v1083, 4
      %v1086 = vshll.u32 %v984, 16
      %v1088 = vrot.slane %v1086, 5
      %v1089 = vsel %vm1003, %v1084, %v1088
      %v1090 = vshrl.u32 %v984, 16
      %v1092 = vrot.slane %v1090, 4
      %v1093 = vor.u32 %v1092, %v1088
      %v1094 = vrot.slane %v1093, 4
      %v1096 = vshll.u32 %v996, 16
      %v1098 = vrot.slane %v1096, 5
      %v1099 = vsel %vm1003, %v1094, %v1098
      %v1101 = vshrl.u32 %v985, 16
      %v1103 = vrot.slane %v1101, 4
      %v1104 = vshll.u32 %v985, 16
      %v1106 = vrot.slane %v1104, 5
      %v1107 = vor.u32 %v1103, %v1106
      %v1108 = vrot.slane %v1107, 4
      %v1110 = vshll.u32 %v986, 16
      %v1112 = vrot.slane %v1110, 5
      %v1113 = vsel %vm1003, %v1108, %v1112
      %v1114 = vshrl.u32 %v986, 16
      %v1116 = vrot.slane %v1114, 4
      %v1117 = vor.u32 %v1116, %v1112
      %v1118 = vrot.slane %v1117, 4
      %v1120 = vshll.u32 %v997, 16
      %v1122 = vrot.slane %v1120, 5
      %v1123 = vsel %vm1003, %v1118, %v1122
      %v1125 = vshrl.u32 %v987, 16
      %v1127 = vrot.slane %v1125, 4
      %v1128 = vshll.u32 %v987, 16
      %v1130 = vrot.slane %v1128, 5
      %v1131 = vor.u32 %v1127, %v1130
      %v1132 = vrot.slane %v1131, 4
      %v1134 = vshll.u32 %v988, 16
      %v1136 = vrot.slane %v1134, 5
      %v1137 = vsel %vm1003, %v1132, %v1136
      %v1138 = vshrl.u32 %v988, 16
      %v1140 = vrot.slane %v1138, 4
      %v1141 = vor.u32 %v1140, %v1136
      %v1142 = vrot.slane %v1141, 4
      %v1144 = vshll.u32 %v998, 16
      %v1146 = vrot.slane %v1144, 5
      %v1147 = vsel %vm1003, %v1142, %v1146
      %v1149 = vshrl.u32 %v989, 16
      %v1151 = vrot.slane %v1149, 4
      %v1152 = vshll.u32 %v989, 16
      %v1154 = vrot.slane %v1152, 5
      %v1155 = vor.u32 %v1151, %v1154
      %v1156 = vrot.slane %v1155, 4
      %v1158 = vshll.u32 %v990, 16
      %v1160 = vrot.slane %v1158, 5
      %v1161 = vsel %vm1003, %v1156, %v1160
      %v1162 = vshrl.u32 %v990, 16
      %v1164 = vrot.slane %v1162, 4
      %v1165 = vor.u32 %v1164, %v1160
      %v1166 = vrot.slane %v1165, 4
      %v1168 = vshll.u32 %v999, 16
      %v1170 = vrot.slane %v1168, 5
      %v1171 = vsel %vm1003, %v1166, %v1170
      %v1173 = vshrl.u32 %v991, 16
      %v1175 = vrot.slane %v1173, 4
      %v1176 = vshll.u32 %v991, 16
      %v1178 = vrot.slane %v1176, 5
      %v1179 = vor.u32 %v1175, %v1178
      %v1180 = vrot.slane %v1179, 4
      %v1182 = vshll.u32 %v992, 16
      %v1184 = vrot.slane %v1182, 5
      %v1185 = vsel %vm1003, %v1180, %v1184
      %v1186 = vshrl.u32 %v992, 16
      %v1188 = vrot.slane %v1186, 4
      %v1189 = vor.u32 %v1188, %v1184
      %v1190 = vrot.slane %v1189, 4
      %v1192 = vshll.u32 %v1000, 16
      %v1194 = vrot.slane %v1192, 5
      %v1195 = vsel %vm1003, %v1190, %v1194
      %v1196 = vld [vmem:[#allocation2] sm:$0xe]
      %v1197 = vld [vmem:[#allocation2 + $0xc] sm:$0xe]
      %v1198 = vld [vmem:[#allocation2 + $0x18] sm:$0xe]
      %v1199 = vld [vmem:[#allocation2 + $0x24] sm:$0xe]
      %v1200 = vld [vmem:[#allocation2 + $0x30] sm:$0xe]
      %v1201 = vld [vmem:[#allocation2 + $0x3c] sm:$0xe]
      %v1202 = vld [vmem:[#allocation2 + $0x48] sm:$0xe]
      %v1203 = vld [vmem:[#allocation2 + $0x54] sm:$0xe]
      %vm1228 = vcmask 1042432
      %vm1229 = vcmask 1046532
      %vm1230 = vmor %vm1228, %vm1229
      %v1231 = vrot.slane %v1196, 5
      %v1232 = vrot.slane %v1231, 4
      %v1233 = vrot.slane %v978, 5
      %v1234 = vsel %vm1230, %v1232, %v1233
      %v1235 = vrot.slane %v1233, 4
      %v1236 = vrot.slane %v993, 5
      %v1237 = vsel %vm1230, %v1235, %v1236
      %v1238 = vrot.slane %v1197, 5
      %v1239 = vrot.slane %v1238, 4
      %v1240 = vrot.slane %v980, 5
      %v1241 = vsel %vm1230, %v1239, %v1240
      %v1242 = vrot.slane %v1240, 4
      %v1243 = vrot.slane %v994, 5
      %v1244 = vsel %vm1230, %v1242, %v1243
      %v1245 = vrot.slane %v1198, 5
      %v1246 = vrot.slane %v1245, 4
      %v1247 = vrot.slane %v982, 5
      %v1248 = vsel %vm1230, %v1246, %v1247
      %v1249 = vrot.slane %v1247, 4
      %v1250 = vrot.slane %v995, 5
      %v1251 = vsel %vm1230, %v1249, %v1250
      %v1252 = vrot.slane %v1199, 5
      %v1253 = vrot.slane %v1252, 4
      %v1254 = vrot.slane %v984, 5
      %v1255 = vsel %vm1230, %v1253, %v1254
      %v1256 = vrot.slane %v1254, 4
      %v1257 = vrot.slane %v996, 5
      %v1258 = vsel %vm1230, %v1256, %v1257
      %v1259 = vrot.slane %v1200, 5
      %v1260 = vrot.slane %v1259, 4
      %v1261 = vrot.slane %v986, 5
      %v1262 = vsel %vm1230, %v1260, %v1261
      %v1263 = vrot.slane %v1261, 4
      %v1264 = vrot.slane %v997, 5
      %v1265 = vsel %vm1230, %v1263, %v1264
      %v1266 = vrot.slane %v1201, 5
      %v1267 = vrot.slane %v1266, 4
      %v1268 = vrot.slane %v988, 5
      %v1269 = vsel %vm1230, %v1267, %v1268
      %v1270 = vrot.slane %v1268, 4
      %v1271 = vrot.slane %v998, 5
      %v1272 = vsel %vm1230, %v1270, %v1271
      %v1273 = vrot.slane %v1202, 5
      %v1274 = vrot.slane %v1273, 4
      %v1275 = vrot.slane %v990, 5
      %v1276 = vsel %vm1230, %v1274, %v1275
      %v1277 = vrot.slane %v1275, 4
      %v1278 = vrot.slane %v999, 5
      %v1279 = vsel %vm1230, %v1277, %v1278
      %v1280 = vrot.slane %v1203, 5
      %v1281 = vrot.slane %v1280, 4
      %v1282 = vrot.slane %v992, 5
      %v1283 = vsel %vm1230, %v1281, %v1282
      %v1284 = vrot.slane %v1282, 4
      %v1285 = vrot.slane %v1000, 5
      %v1286 = vsel %vm1230, %v1284, %v1285
      %v1287 = vld [vmem:[%s822] sm:$0xf]
      %v1288 = vld [vmem:[%s822 + $0x4] sm:$0xf]
      %v1289 = vld [vmem:[%s822 + $0xc] sm:$0xf]
      %v1290 = vld [vmem:[%s822 + $0x10] sm:$0xf]
      %v1291 = vld [vmem:[%s822 + $0x18] sm:$0xf]
      %v1292 = vld [vmem:[%s822 + $0x1c] sm:$0xf]
      %v1293 = vld [vmem:[%s822 + $0x24] sm:$0xf]
      %v1294 = vld [vmem:[%s822 + $0x28] sm:$0xf]
      %v1295 = vld [vmem:[%s822 + $0x30] sm:$0xf]
      %v1296 = vld [vmem:[%s822 + $0x34] sm:$0xf]
      %v1297 = vld [vmem:[%s822 + $0x3c] sm:$0xf]
      %v1298 = vld [vmem:[%s822 + $0x40] sm:$0xf]
      %v1299 = vld [vmem:[%s822 + $0x48] sm:$0xf]
      %v1300 = vld [vmem:[%s822 + $0x4c] sm:$0xf]
      %v1301 = vld [vmem:[%s822 + $0x54] sm:$0xf]
      %v1302 = vld [vmem:[%s822 + $0x58] sm:$0xf]
      %v1303 = vld [vmem:[%s822 + $0x8] sm:$0x1]
      %v1304 = vld [vmem:[%s822 + $0x14] sm:$0x1]
      %v1305 = vld [vmem:[%s822 + $0x20] sm:$0x1]
      %v1306 = vld [vmem:[%s822 + $0x2c] sm:$0x1]
      %v1307 = vld [vmem:[%s822 + $0x38] sm:$0x1]
      %v1308 = vld [vmem:[%s822 + $0x44] sm:$0x1]
      %v1309 = vld [vmem:[%s822 + $0x50] sm:$0x1]
      %v1310 = vld [vmem:[%s822 + $0x5c] sm:$0x1]
      %v1312 = vshrl.u32 %v1287, 16
      %v1314 = vrot.slane %v1312, 4
      %v1315 = vshll.u32 %v1287, 16
      %v1317 = vrot.slane %v1315, 5
      %v1318 = vor.u32 %v1314, %v1317
      %v1319 = vrot.slane %v1318, 4
      %v1321 = vshll.u32 %v1288, 16
      %v1323 = vrot.slane %v1321, 5
      %v1324 = vsel %vm1003, %v1319, %v1323
      %v1325 = vshrl.u32 %v1288, 16
      %v1327 = vrot.slane %v1325, 4
      %v1328 = vor.u32 %v1327, %v1323
      %v1329 = vrot.slane %v1328, 4
      %v1331 = vshll.u32 %v1303, 16
      %v1333 = vrot.slane %v1331, 5
      %v1334 = vsel %vm1003, %v1329, %v1333
      %v1336 = vshrl.u32 %v1289, 16
      %v1338 = vrot.slane %v1336, 4
      %v1339 = vshll.u32 %v1289, 16
      %v1341 = vrot.slane %v1339, 5
      %v1342 = vor.u32 %v1338, %v1341
      %v1343 = vrot.slane %v1342, 4
      %v1345 = vshll.u32 %v1290, 16
      %v1347 = vrot.slane %v1345, 5
      %v1348 = vsel %vm1003, %v1343, %v1347
      %v1349 = vshrl.u32 %v1290, 16
      %v1351 = vrot.slane %v1349, 4
      %v1352 = vor.u32 %v1351, %v1347
      %v1353 = vrot.slane %v1352, 4
      %v1355 = vshll.u32 %v1304, 16
      %v1357 = vrot.slane %v1355, 5
      %v1358 = vsel %vm1003, %v1353, %v1357
      %v1360 = vshrl.u32 %v1291, 16
      %v1362 = vrot.slane %v1360, 4
      %v1363 = vshll.u32 %v1291, 16
      %v1365 = vrot.slane %v1363, 5
      %v1366 = vor.u32 %v1362, %v1365
      %v1367 = vrot.slane %v1366, 4
      %v1369 = vshll.u32 %v1292, 16
      %v1371 = vrot.slane %v1369, 5
      %v1372 = vsel %vm1003, %v1367, %v1371
      %v1373 = vshrl.u32 %v1292, 16
      %v1375 = vrot.slane %v1373, 4
      %v1376 = vor.u32 %v1375, %v1371
      %v1377 = vrot.slane %v1376, 4
      %v1379 = vshll.u32 %v1305, 16
      %v1381 = vrot.slane %v1379, 5
      %v1382 = vsel %vm1003, %v1377, %v1381
      %v1384 = vshrl.u32 %v1293, 16
      %v1386 = vrot.slane %v1384, 4
      %v1387 = vshll.u32 %v1293, 16
      %v1389 = vrot.slane %v1387, 5
      %v1390 = vor.u32 %v1386, %v1389
      %v1391 = vrot.slane %v1390, 4
      %v1393 = vshll.u32 %v1294, 16
      %v1395 = vrot.slane %v1393, 5
      %v1396 = vsel %vm1003, %v1391, %v1395
      %v1397 = vshrl.u32 %v1294, 16
      %v1399 = vrot.slane %v1397, 4
      %v1400 = vor.u32 %v1399, %v1395
      %v1401 = vrot.slane %v1400, 4
      %v1403 = vshll.u32 %v1306, 16
      %v1405 = vrot.slane %v1403, 5
      %v1406 = vsel %vm1003, %v1401, %v1405
      %v1408 = vshrl.u32 %v1295, 16
      %v1410 = vrot.slane %v1408, 4
      %v1411 = vshll.u32 %v1295, 16
      %v1413 = vrot.slane %v1411, 5
      %v1414 = vor.u32 %v1410, %v1413
      %v1415 = vrot.slane %v1414, 4
      %v1417 = vshll.u32 %v1296, 16
      %v1419 = vrot.slane %v1417, 5
      %v1420 = vsel %vm1003, %v1415, %v1419
      %v1421 = vshrl.u32 %v1296, 16
      %v1423 = vrot.slane %v1421, 4
      %v1424 = vor.u32 %v1423, %v1419
      %v1425 = vrot.slane %v1424, 4
      %v1427 = vshll.u32 %v1307, 16
      %v1429 = vrot.slane %v1427, 5
      %v1430 = vsel %vm1003, %v1425, %v1429
      %v1432 = vshrl.u32 %v1297, 16
      %v1434 = vrot.slane %v1432, 4
      %v1435 = vshll.u32 %v1297, 16
      %v1437 = vrot.slane %v1435, 5
      %v1438 = vor.u32 %v1434, %v1437
      %v1439 = vrot.slane %v1438, 4
      %v1441 = vshll.u32 %v1298, 16
      %v1443 = vrot.slane %v1441, 5
      %v1444 = vsel %vm1003, %v1439, %v1443
      %v1445 = vshrl.u32 %v1298, 16
      %v1447 = vrot.slane %v1445, 4
      %v1448 = vor.u32 %v1447, %v1443
      %v1449 = vrot.slane %v1448, 4
      %v1451 = vshll.u32 %v1308, 16
      %v1453 = vrot.slane %v1451, 5
      %v1454 = vsel %vm1003, %v1449, %v1453
      %v1456 = vshrl.u32 %v1299, 16
      %v1458 = vrot.slane %v1456, 4
      %v1459 = vshll.u32 %v1299, 16
      %v1461 = vrot.slane %v1459, 5
      %v1462 = vor.u32 %v1458, %v1461
      %v1463 = vrot.slane %v1462, 4
      %v1465 = vshll.u32 %v1300, 16
      %v1467 = vrot.slane %v1465, 5
      %v1468 = vsel %vm1003, %v1463, %v1467
      %v1469 = vshrl.u32 %v1300, 16
      %v1471 = vrot.slane %v1469, 4
      %v1472 = vor.u32 %v1471, %v1467
      %v1473 = vrot.slane %v1472, 4
      %v1475 = vshll.u32 %v1309, 16
      %v1477 = vrot.slane %v1475, 5
      %v1478 = vsel %vm1003, %v1473, %v1477
      %v1480 = vshrl.u32 %v1301, 16
      %v1482 = vrot.slane %v1480, 4
      %v1483 = vshll.u32 %v1301, 16
      %v1485 = vrot.slane %v1483, 5
      %v1486 = vor.u32 %v1482, %v1485
      %v1487 = vrot.slane %v1486, 4
      %v1489 = vshll.u32 %v1302, 16
      %v1491 = vrot.slane %v1489, 5
      %v1492 = vsel %vm1003, %v1487, %v1491
      %v1493 = vshrl.u32 %v1302, 16
      %v1495 = vrot.slane %v1493, 4
      %v1496 = vor.u32 %v1495, %v1491
      %v1497 = vrot.slane %v1496, 4
      %v1499 = vshll.u32 %v1310, 16
      %v1501 = vrot.slane %v1499, 5
      %v1502 = vsel %vm1003, %v1497, %v1501
      %v1503 = vld [vmem:[%s822] sm:$0xe]
      %v1504 = vld [vmem:[%s822 + $0xc] sm:$0xe]
      %v1505 = vld [vmem:[%s822 + $0x18] sm:$0xe]
      %v1506 = vld [vmem:[%s822 + $0x24] sm:$0xe]
      %v1507 = vld [vmem:[%s822 + $0x30] sm:$0xe]
      %v1508 = vld [vmem:[%s822 + $0x3c] sm:$0xe]
      %v1509 = vld [vmem:[%s822 + $0x48] sm:$0xe]
      %v1510 = vld [vmem:[%s822 + $0x54] sm:$0xe]
      %v1535 = vrot.slane %v1503, 5
      %v1536 = vrot.slane %v1535, 4
      %v1537 = vrot.slane %v1288, 5
      %v1538 = vsel %vm1230, %v1536, %v1537
      %v1539 = vrot.slane %v1537, 4
      %v1540 = vrot.slane %v1303, 5
      %v1541 = vsel %vm1230, %v1539, %v1540
      %v1542 = vrot.slane %v1504, 5
      %v1543 = vrot.slane %v1542, 4
      %v1544 = vrot.slane %v1290, 5
      %v1545 = vsel %vm1230, %v1543, %v1544
      %v1546 = vrot.slane %v1544, 4
      %v1547 = vrot.slane %v1304, 5
      %v1548 = vsel %vm1230, %v1546, %v1547
      %v1549 = vrot.slane %v1505, 5
      %v1550 = vrot.slane %v1549, 4
      %v1551 = vrot.slane %v1292, 5
      %v1552 = vsel %vm1230, %v1550, %v1551
      %v1553 = vrot.slane %v1551, 4
      %v1554 = vrot.slane %v1305, 5
      %v1555 = vsel %vm1230, %v1553, %v1554
      %v1556 = vrot.slane %v1506, 5
      %v1557 = vrot.slane %v1556, 4
      %v1558 = vrot.slane %v1294, 5
      %v1559 = vsel %vm1230, %v1557, %v1558
      %v1560 = vrot.slane %v1558, 4
      %v1561 = vrot.slane %v1306, 5
      %v1562 = vsel %vm1230, %v1560, %v1561
      %v1563 = vrot.slane %v1507, 5
      %v1564 = vrot.slane %v1563, 4
      %v1565 = vrot.slane %v1296, 5
      %v1566 = vsel %vm1230, %v1564, %v1565
      %v1567 = vrot.slane %v1565, 4
      %v1568 = vrot.slane %v1307, 5
      %v1569 = vsel %vm1230, %v1567, %v1568
      %v1570 = vrot.slane %v1508, 5
      %v1571 = vrot.slane %v1570, 4
      %v1572 = vrot.slane %v1298, 5
      %v1573 = vsel %vm1230, %v1571, %v1572
      %v1574 = vrot.slane %v1572, 4
      %v1575 = vrot.slane %v1308, 5
      %v1576 = vsel %vm1230, %v1574, %v1575
      %v1577 = vrot.slane %v1509, 5
      %v1578 = vrot.slane %v1577, 4
      %v1579 = vrot.slane %v1300, 5
      %v1580 = vsel %vm1230, %v1578, %v1579
      %v1581 = vrot.slane %v1579, 4
      %v1582 = vrot.slane %v1309, 5
      %v1583 = vsel %vm1230, %v1581, %v1582
      %v1584 = vrot.slane %v1510, 5
      %v1585 = vrot.slane %v1584, 4
      %v1586 = vrot.slane %v1302, 5
      %v1587 = vsel %vm1230, %v1585, %v1586
      %v1588 = vrot.slane %v1586, 4
      %v1589 = vrot.slane %v1310, 5
      %v1590 = vsel %vm1230, %v1588, %v1589
      %s1591 = scalar_lea.vmem [#allocation2], 24
      %v1592 = vld [vmem:[%s1591] sm:$0xf]
      %v1593 = vld [vmem:[%s1591 + $0x4] sm:$0xf]
      %v1594 = vld [vmem:[%s1591 + $0xc] sm:$0xf]
      %v1595 = vld [vmem:[%s1591 + $0x10] sm:$0xf]
      %v1596 = vld [vmem:[%s1591 + $0x18] sm:$0xf]
      %v1597 = vld [vmem:[%s1591 + $0x1c] sm:$0xf]
      %v1598 = vld [vmem:[%s1591 + $0x24] sm:$0xf]
      %v1599 = vld [vmem:[%s1591 + $0x28] sm:$0xf]
      %v1600 = vld [vmem:[%s1591 + $0x30] sm:$0xf]
      %v1601 = vld [vmem:[%s1591 + $0x34] sm:$0xf]
      %v1602 = vld [vmem:[%s1591 + $0x3c] sm:$0xf]
      %v1603 = vld [vmem:[%s1591 + $0x40] sm:$0xf]
      %v1604 = vld [vmem:[%s1591 + $0x48] sm:$0xf]
      %v1605 = vld [vmem:[%s1591 + $0x4c] sm:$0xf]
      %v1606 = vld [vmem:[%s1591 + $0x54] sm:$0xf]
      %v1607 = vld [vmem:[%s1591 + $0x58] sm:$0xf]
      %v1608 = vld [vmem:[%s1591 + $0x8] sm:$0x1]
      %v1609 = vld [vmem:[%s1591 + $0x14] sm:$0x1]
      %v1610 = vld [vmem:[%s1591 + $0x20] sm:$0x1]
      %v1611 = vld [vmem:[%s1591 + $0x2c] sm:$0x1]
      %v1612 = vld [vmem:[%s1591 + $0x38] sm:$0x1]
      %v1613 = vld [vmem:[%s1591 + $0x44] sm:$0x1]
      %v1614 = vld [vmem:[%s1591 + $0x50] sm:$0x1]
      %v1615 = vld [vmem:[%s1591 + $0x5c] sm:$0x1]
      %v1617 = vshrl.u32 %v1592, 16
      %v1619 = vrot.slane %v1617, 4
      %v1620 = vshll.u32 %v1592, 16
      %v1622 = vrot.slane %v1620, 5
      %v1623 = vor.u32 %v1619, %v1622
      %v1624 = vrot.slane %v1623, 4
      %v1626 = vshll.u32 %v1593, 16
      %v1628 = vrot.slane %v1626, 5
      %v1629 = vsel %vm1003, %v1624, %v1628
      %v1630 = vshrl.u32 %v1593, 16
      %v1632 = vrot.slane %v1630, 4
      %v1633 = vor.u32 %v1632, %v1628
      %v1634 = vrot.slane %v1633, 4
      %v1636 = vshll.u32 %v1608, 16
      %v1638 = vrot.slane %v1636, 5
      %v1639 = vsel %vm1003, %v1634, %v1638
      %v1641 = vshrl.u32 %v1594, 16
      %v1643 = vrot.slane %v1641, 4
      %v1644 = vshll.u32 %v1594, 16
      %v1646 = vrot.slane %v1644, 5
      %v1647 = vor.u32 %v1643, %v1646
      %v1648 = vrot.slane %v1647, 4
      %v1650 = vshll.u32 %v1595, 16
      %v1652 = vrot.slane %v1650, 5
      %v1653 = vsel %vm1003, %v1648, %v1652
      %v1654 = vshrl.u32 %v1595, 16
      %v1656 = vrot.slane %v1654, 4
      %v1657 = vor.u32 %v1656, %v1652
      %v1658 = vrot.slane %v1657, 4
      %v1660 = vshll.u32 %v1609, 16
      %v1662 = vrot.slane %v1660, 5
      %v1663 = vsel %vm1003, %v1658, %v1662
      %v1665 = vshrl.u32 %v1596, 16
      %v1667 = vrot.slane %v1665, 4
      %v1668 = vshll.u32 %v1596, 16
      %v1670 = vrot.slane %v1668, 5
      %v1671 = vor.u32 %v1667, %v1670
      %v1672 = vrot.slane %v1671, 4
      %v1674 = vshll.u32 %v1597, 16
      %v1676 = vrot.slane %v1674, 5
      %v1677 = vsel %vm1003, %v1672, %v1676
      %v1678 = vshrl.u32 %v1597, 16
      %v1680 = vrot.slane %v1678, 4
      %v1681 = vor.u32 %v1680, %v1676
      %v1682 = vrot.slane %v1681, 4
      %v1684 = vshll.u32 %v1610, 16
      %v1686 = vrot.slane %v1684, 5
      %v1687 = vsel %vm1003, %v1682, %v1686
      %v1689 = vshrl.u32 %v1598, 16
      %v1691 = vrot.slane %v1689, 4
      %v1692 = vshll.u32 %v1598, 16
      %v1694 = vrot.slane %v1692, 5
      %v1695 = vor.u32 %v1691, %v1694
      %v1696 = vrot.slane %v1695, 4
      %v1698 = vshll.u32 %v1599, 16
      %v1700 = vrot.slane %v1698, 5
      %v1701 = vsel %vm1003, %v1696, %v1700
      %v1702 = vshrl.u32 %v1599, 16
      %v1704 = vrot.slane %v1702, 4
      %v1705 = vor.u32 %v1704, %v1700
      %v1706 = vrot.slane %v1705, 4
      %v1708 = vshll.u32 %v1611, 16
      %v1710 = vrot.slane %v1708, 5
      %v1711 = vsel %vm1003, %v1706, %v1710
      %v1713 = vshrl.u32 %v1600, 16
      %v1715 = vrot.slane %v1713, 4
      %v1716 = vshll.u32 %v1600, 16
      %v1718 = vrot.slane %v1716, 5
      %v1719 = vor.u32 %v1715, %v1718
      %v1720 = vrot.slane %v1719, 4
      %v1722 = vshll.u32 %v1601, 16
      %v1724 = vrot.slane %v1722, 5
      %v1725 = vsel %vm1003, %v1720, %v1724
      %v1726 = vshrl.u32 %v1601, 16
      %v1728 = vrot.slane %v1726, 4
      %v1729 = vor.u32 %v1728, %v1724
      %v1730 = vrot.slane %v1729, 4
      %v1732 = vshll.u32 %v1612, 16
      %v1734 = vrot.slane %v1732, 5
      %v1735 = vsel %vm1003, %v1730, %v1734
      %v1737 = vshrl.u32 %v1602, 16
      %v1739 = vrot.slane %v1737, 4
      %v1740 = vshll.u32 %v1602, 16
      %v1742 = vrot.slane %v1740, 5
      %v1743 = vor.u32 %v1739, %v1742
      %v1744 = vrot.slane %v1743, 4
      %v1746 = vshll.u32 %v1603, 16
      %v1748 = vrot.slane %v1746, 5
      %v1749 = vsel %vm1003, %v1744, %v1748
      %v1750 = vshrl.u32 %v1603, 16
      %v1752 = vrot.slane %v1750, 4
      %v1753 = vor.u32 %v1752, %v1748
      %v1754 = vrot.slane %v1753, 4
      %v1756 = vshll.u32 %v1613, 16
      %v1758 = vrot.slane %v1756, 5
      %v1759 = vsel %vm1003, %v1754, %v1758
      %v1761 = vshrl.u32 %v1604, 16
      %v1763 = vrot.slane %v1761, 4
      %v1764 = vshll.u32 %v1604, 16
      %v1766 = vrot.slane %v1764, 5
      %v1767 = vor.u32 %v1763, %v1766
      %v1768 = vrot.slane %v1767, 4
      %v1770 = vshll.u32 %v1605, 16
      %v1772 = vrot.slane %v1770, 5
      %v1773 = vsel %vm1003, %v1768, %v1772
      %v1774 = vshrl.u32 %v1605, 16
      %v1776 = vrot.slane %v1774, 4
      %v1777 = vor.u32 %v1776, %v1772
      %v1778 = vrot.slane %v1777, 4
      %v1780 = vshll.u32 %v1614, 16
      %v1782 = vrot.slane %v1780, 5
      %v1783 = vsel %vm1003, %v1778, %v1782
      %v1785 = vshrl.u32 %v1606, 16
      %v1787 = vrot.slane %v1785, 4
      %v1788 = vshll.u32 %v1606, 16
      %v1790 = vrot.slane %v1788, 5
      %v1791 = vor.u32 %v1787, %v1790
      %v1792 = vrot.slane %v1791, 4
      %v1794 = vshll.u32 %v1607, 16
      %v1796 = vrot.slane %v1794, 5
      %v1797 = vsel %vm1003, %v1792, %v1796
      %v1798 = vshrl.u32 %v1607, 16
      %v1800 = vrot.slane %v1798, 4
      %v1801 = vor.u32 %v1800, %v1796
      %v1802 = vrot.slane %v1801, 4
      %v1804 = vshll.u32 %v1615, 16
      %v1806 = vrot.slane %v1804, 5
      %v1807 = vsel %vm1003, %v1802, %v1806
      %v1808 = vld [vmem:[%s1591] sm:$0xe]
      %v1809 = vld [vmem:[%s1591 + $0xc] sm:$0xe]
      %v1810 = vld [vmem:[%s1591 + $0x18] sm:$0xe]
      %v1811 = vld [vmem:[%s1591 + $0x24] sm:$0xe]
      %v1812 = vld [vmem:[%s1591 + $0x30] sm:$0xe]
      %v1813 = vld [vmem:[%s1591 + $0x3c] sm:$0xe]
      %v1814 = vld [vmem:[%s1591 + $0x48] sm:$0xe]
      %v1815 = vld [vmem:[%s1591 + $0x54] sm:$0xe]
      %v1840 = vrot.slane %v1808, 5
      %v1841 = vrot.slane %v1840, 4
      %v1842 = vrot.slane %v1593, 5
      %v1843 = vsel %vm1230, %v1841, %v1842
      %v1844 = vrot.slane %v1842, 4
      %v1845 = vrot.slane %v1608, 5
      %v1846 = vsel %vm1230, %v1844, %v1845
      %v1847 = vrot.slane %v1809, 5
      %v1848 = vrot.slane %v1847, 4
      %v1849 = vrot.slane %v1595, 5
      %v1850 = vsel %vm1230, %v1848, %v1849
      %v1851 = vrot.slane %v1849, 4
      %v1852 = vrot.slane %v1609, 5
      %v1853 = vsel %vm1230, %v1851, %v1852
      %v1854 = vrot.slane %v1810, 5
      %v1855 = vrot.slane %v1854, 4
      %v1856 = vrot.slane %v1597, 5
      %v1857 = vsel %vm1230, %v1855, %v1856
      %v1858 = vrot.slane %v1856, 4
      %v1859 = vrot.slane %v1610, 5
      %v1860 = vsel %vm1230, %v1858, %v1859
      %v1861 = vrot.slane %v1811, 5
      %v1862 = vrot.slane %v1861, 4
      %v1863 = vrot.slane %v1599, 5
      %v1864 = vsel %vm1230, %v1862, %v1863
      %v1865 = vrot.slane %v1863, 4
      %v1866 = vrot.slane %v1611, 5
      %v1867 = vsel %vm1230, %v1865, %v1866
      %v1868 = vrot.slane %v1812, 5
      %v1869 = vrot.slane %v1868, 4
      %v1870 = vrot.slane %v1601, 5
      %v1871 = vsel %vm1230, %v1869, %v1870
      %v1872 = vrot.slane %v1870, 4
      %v1873 = vrot.slane %v1612, 5
      %v1874 = vsel %vm1230, %v1872, %v1873
      %v1875 = vrot.slane %v1813, 5
      %v1876 = vrot.slane %v1875, 4
      %v1877 = vrot.slane %v1603, 5
      %v1878 = vsel %vm1230, %v1876, %v1877
      %v1879 = vrot.slane %v1877, 4
      %v1880 = vrot.slane %v1613, 5
      %v1881 = vsel %vm1230, %v1879, %v1880
      %v1882 = vrot.slane %v1814, 5
      %v1883 = vrot.slane %v1882, 4
      %v1884 = vrot.slane %v1605, 5
      %v1885 = vsel %vm1230, %v1883, %v1884
      %v1886 = vrot.slane %v1884, 4
      %v1887 = vrot.slane %v1614, 5
      %v1888 = vsel %vm1230, %v1886, %v1887
      %v1889 = vrot.slane %v1815, 5
      %v1890 = vrot.slane %v1889, 4
      %v1891 = vrot.slane %v1607, 5
      %v1892 = vsel %vm1230, %v1890, %v1891
      %v1893 = vrot.slane %v1891, 4
      %v1894 = vrot.slane %v1615, 5
      %v1895 = vsel %vm1230, %v1893, %v1894
      %v1904 = vunpack.c.l.b16 %v977
      %v1905 = vunpack.c.l.b16 %v978
      %v1906 = vunpack.c.l.b16 %v979
      %v1907 = vunpack.c.l.b16 %v980
      %v1908 = vunpack.c.l.b16 %v981
      %v1909 = vunpack.c.l.b16 %v982
      %v1910 = vunpack.c.l.b16 %v983
      %v1911 = vunpack.c.l.b16 %v984
      %v1912 = vunpack.c.l.b16 %v985
      %v1913 = vunpack.c.l.b16 %v986
      %v1914 = vunpack.c.l.b16 %v987
      %v1915 = vunpack.c.l.b16 %v988
      %v1916 = vunpack.c.l.b16 %v989
      %v1917 = vunpack.c.l.b16 %v990
      %v1918 = vunpack.c.l.b16 %v991
      %v1919 = vunpack.c.l.b16 %v992
      %v1920 = vpack.c.b16 %v1905, %v1904
      %v1921 = vpack.c.b16 %v1907, %v1906
      %v1922 = vpack.c.b16 %v1909, %v1908
      %v1923 = vpack.c.b16 %v1911, %v1910
      %v1924 = vpack.c.b16 %v1913, %v1912
      %v1925 = vpack.c.b16 %v1915, %v1914
      %v1926 = vpack.c.b16 %v1917, %v1916
      %v1927 = vpack.c.b16 %v1919, %v1918
      %v1928 = vunpack.c.l.b16 %v1017
      %v1929 = vunpack.c.l.b16 %v1027
      %v1930 = vunpack.c.l.b16 %v1041
      %v1931 = vunpack.c.l.b16 %v1051
      %v1932 = vunpack.c.l.b16 %v1065
      %v1933 = vunpack.c.l.b16 %v1075
      %v1934 = vunpack.c.l.b16 %v1089
      %v1935 = vunpack.c.l.b16 %v1099
      %v1936 = vunpack.c.l.b16 %v1113
      %v1937 = vunpack.c.l.b16 %v1123
      %v1938 = vunpack.c.l.b16 %v1137
      %v1939 = vunpack.c.l.b16 %v1147
      %v1940 = vunpack.c.l.b16 %v1161
      %v1941 = vunpack.c.l.b16 %v1171
      %v1942 = vunpack.c.l.b16 %v1185
      %v1943 = vunpack.c.l.b16 %v1195
      %v1944 = vpack.c.b16 %v1929, %v1928
      %v1945 = vpack.c.b16 %v1931, %v1930
      %v1946 = vpack.c.b16 %v1933, %v1932
      %v1947 = vpack.c.b16 %v1935, %v1934
      %v1948 = vpack.c.b16 %v1937, %v1936
      %v1949 = vpack.c.b16 %v1939, %v1938
      %v1950 = vpack.c.b16 %v1941, %v1940
      %v1951 = vpack.c.b16 %v1943, %v1942
      %1952 = vrot.lane.b32.xlu0 %v1944, 4
      %v1953 = vpop.permute.xlu0 %1952
      %1954 = vrot.lane.b32.xlu0 %v1945, 4
      %v1955 = vpop.permute.xlu0 %1954
      %1956 = vrot.lane.b32.xlu0 %v1946, 4
      %v1957 = vpop.permute.xlu0 %1956
      %1958 = vrot.lane.b32.xlu0 %v1947, 4
      %v1959 = vpop.permute.xlu0 %1958
      %1960 = vrot.lane.b32.xlu0 %v1948, 4
      %v1961 = vpop.permute.xlu0 %1960
      %1962 = vrot.lane.b32.xlu0 %v1949, 4
      %v1963 = vpop.permute.xlu0 %1962
      %1964 = vrot.lane.b32.xlu0 %v1950, 4
      %v1965 = vpop.permute.xlu0 %1964
      %1966 = vrot.lane.b32.xlu0 %v1951, 4
      %v1967 = vpop.permute.xlu0 %1966
      %v1968 = vunpack.c.l.b16 %v1234
      %v1969 = vunpack.c.l.b16 %v1237
      %v1970 = vunpack.c.l.b16 %v1241
      %v1971 = vunpack.c.l.b16 %v1244
      %v1972 = vunpack.c.l.b16 %v1248
      %v1973 = vunpack.c.l.b16 %v1251
      %v1974 = vunpack.c.l.b16 %v1255
      %v1975 = vunpack.c.l.b16 %v1258
      %v1976 = vunpack.c.l.b16 %v1262
      %v1977 = vunpack.c.l.b16 %v1265
      %v1978 = vunpack.c.l.b16 %v1269
      %v1979 = vunpack.c.l.b16 %v1272
      %v1980 = vunpack.c.l.b16 %v1276
      %v1981 = vunpack.c.l.b16 %v1279
      %v1982 = vunpack.c.l.b16 %v1283
      %v1983 = vunpack.c.l.b16 %v1286
      %v1984 = vpack.c.b16 %v1969, %v1968
      %v1985 = vpack.c.b16 %v1971, %v1970
      %v1986 = vpack.c.b16 %v1973, %v1972
      %v1987 = vpack.c.b16 %v1975, %v1974
      %v1988 = vpack.c.b16 %v1977, %v1976
      %v1989 = vpack.c.b16 %v1979, %v1978
      %v1990 = vpack.c.b16 %v1981, %v1980
      %v1991 = vpack.c.b16 %v1983, %v1982
      %1992 = vrot.lane.b32.xlu0 %v1984, 8
      %v1993 = vpop.permute.xlu0 %1992
      %1994 = vrot.lane.b32.xlu0 %v1985, 8
      %v1995 = vpop.permute.xlu0 %1994
      %1996 = vrot.lane.b32.xlu0 %v1986, 8
      %v1997 = vpop.permute.xlu0 %1996
      %1998 = vrot.lane.b32.xlu0 %v1987, 8
      %v1999 = vpop.permute.xlu0 %1998
      %2000 = vrot.lane.b32.xlu0 %v1988, 8
      %v2001 = vpop.permute.xlu0 %2000
      %2002 = vrot.lane.b32.xlu0 %v1989, 8
      %v2003 = vpop.permute.xlu0 %2002
      %2004 = vrot.lane.b32.xlu0 %v1990, 8
      %v2005 = vpop.permute.xlu0 %2004
      %2006 = vrot.lane.b32.xlu0 %v1991, 8
      %v2007 = vpop.permute.xlu0 %2006
      %v2016 = vunpack.c.l.b16 %v1287
      %v2017 = vunpack.c.l.b16 %v1288
      %v2018 = vunpack.c.l.b16 %v1289
      %v2019 = vunpack.c.l.b16 %v1290
      %v2020 = vunpack.c.l.b16 %v1291
      %v2021 = vunpack.c.l.b16 %v1292
      %v2022 = vunpack.c.l.b16 %v1293
      %v2023 = vunpack.c.l.b16 %v1294
      %v2024 = vunpack.c.l.b16 %v1295
      %v2025 = vunpack.c.l.b16 %v1296
      %v2026 = vunpack.c.l.b16 %v1297
      %v2027 = vunpack.c.l.b16 %v1298
      %v2028 = vunpack.c.l.b16 %v1299
      %v2029 = vunpack.c.l.b16 %v1300
      %v2030 = vunpack.c.l.b16 %v1301
      %v2031 = vunpack.c.l.b16 %v1302
      %v2032 = vpack.c.b16 %v2017, %v2016
      %v2033 = vpack.c.b16 %v2019, %v2018
      %v2034 = vpack.c.b16 %v2021, %v2020
      %v2035 = vpack.c.b16 %v2023, %v2022
      %v2036 = vpack.c.b16 %v2025, %v2024
      %v2037 = vpack.c.b16 %v2027, %v2026
      %v2038 = vpack.c.b16 %v2029, %v2028
      %v2039 = vpack.c.b16 %v2031, %v2030
      %2040 = vrot.lane.b32.xlu0 %v2032, 12
      %v2041 = vpop.permute.xlu0 %2040
      %2042 = vrot.lane.b32.xlu0 %v2033, 12
      %v2043 = vpop.permute.xlu0 %2042
      %2044 = vrot.lane.b32.xlu0 %v2034, 12
      %v2045 = vpop.permute.xlu0 %2044
      %2046 = vrot.lane.b32.xlu0 %v2035, 12
      %v2047 = vpop.permute.xlu0 %2046
      %2048 = vrot.lane.b32.xlu0 %v2036, 12
      %v2049 = vpop.permute.xlu0 %2048
      %2050 = vrot.lane.b32.xlu0 %v2037, 12
      %v2051 = vpop.permute.xlu0 %2050
      %2052 = vrot.lane.b32.xlu0 %v2038, 12
      %v2053 = vpop.permute.xlu0 %2052
      %2054 = vrot.lane.b32.xlu0 %v2039, 12
      %v2055 = vpop.permute.xlu0 %2054
      %v2056 = vunpack.c.l.b16 %v1324
      %v2057 = vunpack.c.l.b16 %v1334
      %v2058 = vunpack.c.l.b16 %v1348
      %v2059 = vunpack.c.l.b16 %v1358
      %v2060 = vunpack.c.l.b16 %v1372
      %v2061 = vunpack.c.l.b16 %v1382
      %v2062 = vunpack.c.l.b16 %v1396
      %v2063 = vunpack.c.l.b16 %v1406
      %v2064 = vunpack.c.l.b16 %v1420
      %v2065 = vunpack.c.l.b16 %v1430
      %v2066 = vunpack.c.l.b16 %v1444
      %v2067 = vunpack.c.l.b16 %v1454
      %v2068 = vunpack.c.l.b16 %v1468
      %v2069 = vunpack.c.l.b16 %v1478
      %v2070 = vunpack.c.l.b16 %v1492
      %v2071 = vunpack.c.l.b16 %v1502
      %v2072 = vpack.c.b16 %v2057, %v2056
      %v2073 = vpack.c.b16 %v2059, %v2058
      %v2074 = vpack.c.b16 %v2061, %v2060
      %v2075 = vpack.c.b16 %v2063, %v2062
      %v2076 = vpack.c.b16 %v2065, %v2064
      %v2077 = vpack.c.b16 %v2067, %v2066
      %v2078 = vpack.c.b16 %v2069, %v2068
      %v2079 = vpack.c.b16 %v2071, %v2070
      %2080 = vrot.lane.b32.xlu0 %v2072, 16
      %v2081 = vpop.permute.xlu0 %2080
      %2082 = vrot.lane.b32.xlu0 %v2073, 16
      %v2083 = vpop.permute.xlu0 %2082
      %2084 = vrot.lane.b32.xlu0 %v2074, 16
      %v2085 = vpop.permute.xlu0 %2084
      %2086 = vrot.lane.b32.xlu0 %v2075, 16
      %v2087 = vpop.permute.xlu0 %2086
      %2088 = vrot.lane.b32.xlu0 %v2076, 16
      %v2089 = vpop.permute.xlu0 %2088
      %2090 = vrot.lane.b32.xlu0 %v2077, 16
      %v2091 = vpop.permute.xlu0 %2090
      %2092 = vrot.lane.b32.xlu0 %v2078, 16
      %v2093 = vpop.permute.xlu0 %2092
      %2094 = vrot.lane.b32.xlu0 %v2079, 16
      %v2095 = vpop.permute.xlu0 %2094
      %v2096 = vunpack.c.l.b16 %v1538
      %v2097 = vunpack.c.l.b16 %v1541
      %v2098 = vunpack.c.l.b16 %v1545
      %v2099 = vunpack.c.l.b16 %v1548
      %v2100 = vunpack.c.l.b16 %v1552
      %v2101 = vunpack.c.l.b16 %v1555
      %v2102 = vunpack.c.l.b16 %v1559
      %v2103 = vunpack.c.l.b16 %v1562
      %v2104 = vunpack.c.l.b16 %v1566
      %v2105 = vunpack.c.l.b16 %v1569
      %v2106 = vunpack.c.l.b16 %v1573
      %v2107 = vunpack.c.l.b16 %v1576
      %v2108 = vunpack.c.l.b16 %v1580
      %v2109 = vunpack.c.l.b16 %v1583
      %v2110 = vunpack.c.l.b16 %v1587
      %v2111 = vunpack.c.l.b16 %v1590
      %v2112 = vpack.c.b16 %v2097, %v2096
      %v2113 = vpack.c.b16 %v2099, %v2098
      %v2114 = vpack.c.b16 %v2101, %v2100
      %v2115 = vpack.c.b16 %v2103, %v2102
      %v2116 = vpack.c.b16 %v2105, %v2104
      %v2117 = vpack.c.b16 %v2107, %v2106
      %v2118 = vpack.c.b16 %v2109, %v2108
      %v2119 = vpack.c.b16 %v2111, %v2110
      %2120 = vrot.lane.b32.xlu0 %v2112, 20
      %v2121 = vpop.permute.xlu0 %2120
      %2122 = vrot.lane.b32.xlu0 %v2113, 20
      %v2123 = vpop.permute.xlu0 %2122
      %2124 = vrot.lane.b32.xlu0 %v2114, 20
      %v2125 = vpop.permute.xlu0 %2124
      %2126 = vrot.lane.b32.xlu0 %v2115, 20
      %v2127 = vpop.permute.xlu0 %2126
      %2128 = vrot.lane.b32.xlu0 %v2116, 20
      %v2129 = vpop.permute.xlu0 %2128
      %2130 = vrot.lane.b32.xlu0 %v2117, 20
      %v2131 = vpop.permute.xlu0 %2130
      %2132 = vrot.lane.b32.xlu0 %v2118, 20
      %v2133 = vpop.permute.xlu0 %2132
      %2134 = vrot.lane.b32.xlu0 %v2119, 20
      %v2135 = vpop.permute.xlu0 %2134
      %v2144 = vunpack.c.l.b16 %v1592
      %v2145 = vunpack.c.l.b16 %v1593
      %v2146 = vunpack.c.l.b16 %v1594
      %v2147 = vunpack.c.l.b16 %v1595
      %v2148 = vunpack.c.l.b16 %v1596
      %v2149 = vunpack.c.l.b16 %v1597
      %v2150 = vunpack.c.l.b16 %v1598
      %v2151 = vunpack.c.l.b16 %v1599
      %v2152 = vunpack.c.l.b16 %v1600
      %v2153 = vunpack.c.l.b16 %v1601
      %v2154 = vunpack.c.l.b16 %v1602
      %v2155 = vunpack.c.l.b16 %v1603
      %v2156 = vunpack.c.l.b16 %v1604
      %v2157 = vunpack.c.l.b16 %v1605
      %v2158 = vunpack.c.l.b16 %v1606
      %v2159 = vunpack.c.l.b16 %v1607
      %v2160 = vpack.c.b16 %v2145, %v2144
      %v2161 = vpack.c.b16 %v2147, %v2146
      %v2162 = vpack.c.b16 %v2149, %v2148
      %v2163 = vpack.c.b16 %v2151, %v2150
      %v2164 = vpack.c.b16 %v2153, %v2152
      %v2165 = vpack.c.b16 %v2155, %v2154
      %v2166 = vpack.c.b16 %v2157, %v2156
      %v2167 = vpack.c.b16 %v2159, %v2158
      %2168 = vrot.lane.b32.xlu0 %v2160, 24
      %v2169 = vpop.permute.xlu0 %2168
      %2170 = vrot.lane.b32.xlu0 %v2161, 24
      %v2171 = vpop.permute.xlu0 %2170
      %2172 = vrot.lane.b32.xlu0 %v2162, 24
      %v2173 = vpop.permute.xlu0 %2172
      %2174 = vrot.lane.b32.xlu0 %v2163, 24
      %v2175 = vpop.permute.xlu0 %2174
      %2176 = vrot.lane.b32.xlu0 %v2164, 24
      %v2177 = vpop.permute.xlu0 %2176
      %2178 = vrot.lane.b32.xlu0 %v2165, 24
      %v2179 = vpop.permute.xlu0 %2178
      %2180 = vrot.lane.b32.xlu0 %v2166, 24
      %v2181 = vpop.permute.xlu0 %2180
      %2182 = vrot.lane.b32.xlu0 %v2167, 24
      %v2183 = vpop.permute.xlu0 %2182
      %v2184 = vunpack.c.l.b16 %v1629
      %v2185 = vunpack.c.l.b16 %v1639
      %v2186 = vunpack.c.l.b16 %v1653
      %v2187 = vunpack.c.l.b16 %v1663
      %v2188 = vunpack.c.l.b16 %v1677
      %v2189 = vunpack.c.l.b16 %v1687
      %v2190 = vunpack.c.l.b16 %v1701
      %v2191 = vunpack.c.l.b16 %v1711
      %v2192 = vunpack.c.l.b16 %v1725
      %v2193 = vunpack.c.l.b16 %v1735
      %v2194 = vunpack.c.l.b16 %v1749
      %v2195 = vunpack.c.l.b16 %v1759
      %v2196 = vunpack.c.l.b16 %v1773
      %v2197 = vunpack.c.l.b16 %v1783
      %v2198 = vunpack.c.l.b16 %v1797
      %v2199 = vunpack.c.l.b16 %v1807
      %v2200 = vpack.c.b16 %v2185, %v2184
      %v2201 = vpack.c.b16 %v2187, %v2186
      %v2202 = vpack.c.b16 %v2189, %v2188
      %v2203 = vpack.c.b16 %v2191, %v2190
      %v2204 = vpack.c.b16 %v2193, %v2192
      %v2205 = vpack.c.b16 %v2195, %v2194
      %v2206 = vpack.c.b16 %v2197, %v2196
      %v2207 = vpack.c.b16 %v2199, %v2198
      %2208 = vrot.lane.b32.xlu0 %v2200, 28
      %v2209 = vpop.permute.xlu0 %2208
      %2210 = vrot.lane.b32.xlu0 %v2201, 28
      %v2211 = vpop.permute.xlu0 %2210
      %2212 = vrot.lane.b32.xlu0 %v2202, 28
      %v2213 = vpop.permute.xlu0 %2212
      %2214 = vrot.lane.b32.xlu0 %v2203, 28
      %v2215 = vpop.permute.xlu0 %2214
      %2216 = vrot.lane.b32.xlu0 %v2204, 28
      %v2217 = vpop.permute.xlu0 %2216
      %2218 = vrot.lane.b32.xlu0 %v2205, 28
      %v2219 = vpop.permute.xlu0 %2218
      %2220 = vrot.lane.b32.xlu0 %v2206, 28
      %v2221 = vpop.permute.xlu0 %2220
      %2222 = vrot.lane.b32.xlu0 %v2207, 28
      %v2223 = vpop.permute.xlu0 %2222
      %v2224 = vunpack.c.l.b16 %v1843
      %v2225 = vunpack.c.l.b16 %v1846
      %v2226 = vunpack.c.l.b16 %v1850
      %v2227 = vunpack.c.l.b16 %v1853
      %v2228 = vunpack.c.l.b16 %v1857
      %v2229 = vunpack.c.l.b16 %v1860
      %v2230 = vunpack.c.l.b16 %v1864
      %v2231 = vunpack.c.l.b16 %v1867
      %v2232 = vunpack.c.l.b16 %v1871
      %v2233 = vunpack.c.l.b16 %v1874
      %v2234 = vunpack.c.l.b16 %v1878
      %v2235 = vunpack.c.l.b16 %v1881
      %v2236 = vunpack.c.l.b16 %v1885
      %v2237 = vunpack.c.l.b16 %v1888
      %v2238 = vunpack.c.l.b16 %v1892
      %v2239 = vunpack.c.l.b16 %v1895
      %v2240 = vpack.c.b16 %v2225, %v2224
      %v2241 = vpack.c.b16 %v2227, %v2226
      %v2242 = vpack.c.b16 %v2229, %v2228
      %v2243 = vpack.c.b16 %v2231, %v2230
      %v2244 = vpack.c.b16 %v2233, %v2232
      %v2245 = vpack.c.b16 %v2235, %v2234
      %v2246 = vpack.c.b16 %v2237, %v2236
      %v2247 = vpack.c.b16 %v2239, %v2238
      %2248 = vrot.lane.b32.xlu0 %v2240, 32
      %v2249 = vpop.permute.xlu0 %2248
      %2250 = vrot.lane.b32.xlu0 %v2241, 32
      %v2251 = vpop.permute.xlu0 %2250
      %2252 = vrot.lane.b32.xlu0 %v2242, 32
      %v2253 = vpop.permute.xlu0 %2252
      %2254 = vrot.lane.b32.xlu0 %v2243, 32
      %v2255 = vpop.permute.xlu0 %2254
      %2256 = vrot.lane.b32.xlu0 %v2244, 32
      %v2257 = vpop.permute.xlu0 %2256
      %2258 = vrot.lane.b32.xlu0 %v2245, 32
      %v2259 = vpop.permute.xlu0 %2258
      %2260 = vrot.lane.b32.xlu0 %v2246, 32
      %v2261 = vpop.permute.xlu0 %2260
      %2262 = vrot.lane.b32.xlu0 %v2247, 32
      %v2263 = vpop.permute.xlu0 %2262
      %vm2264 = vcmask 31744
      %v2267 = vsel %vm2264, %v1920, %v1953
      %v2270 = vsel %vm2264, %v1921, %v1955
      %v2273 = vsel %vm2264, %v1922, %v1957
      %v2276 = vsel %vm2264, %v1923, %v1959
      %v2279 = vsel %vm2264, %v1924, %v1961
      %v2282 = vsel %vm2264, %v1925, %v1963
      %v2285 = vsel %vm2264, %v1926, %v1965
      %v2288 = vsel %vm2264, %v1927, %v1967
      %vm2289 = vcmask 64512
      %v2291 = vsel %vm2289, %v2267, %v1993
      %v2293 = vsel %vm2289, %v2270, %v1995
      %v2295 = vsel %vm2289, %v2273, %v1997
      %v2297 = vsel %vm2289, %v2276, %v1999
      %v2299 = vsel %vm2289, %v2279, %v2001
      %v2301 = vsel %vm2289, %v2282, %v2003
      %v2303 = vsel %vm2289, %v2285, %v2005
      %v2305 = vsel %vm2289, %v2288, %v2007
      %vm2306 = vcmask 97280
      %v2308 = vsel %vm2306, %v2291, %v2041
      %v2310 = vsel %vm2306, %v2293, %v2043
      %v2312 = vsel %vm2306, %v2295, %v2045
      %v2314 = vsel %vm2306, %v2297, %v2047
      %v2316 = vsel %vm2306, %v2299, %v2049
      %v2318 = vsel %vm2306, %v2301, %v2051
      %v2320 = vsel %vm2306, %v2303, %v2053
      %v2322 = vsel %vm2306, %v2305, %v2055
      %vm2323 = vcmask 130048
      %v2325 = vsel %vm2323, %v2308, %v2081
      %v2327 = vsel %vm2323, %v2310, %v2083
      %v2329 = vsel %vm2323, %v2312, %v2085
      %v2331 = vsel %vm2323, %v2314, %v2087
      %v2333 = vsel %vm2323, %v2316, %v2089
      %v2335 = vsel %vm2323, %v2318, %v2091
      %v2337 = vsel %vm2323, %v2320, %v2093
      %v2339 = vsel %vm2323, %v2322, %v2095
      %vm2340 = vcmask 162816
      %v2342 = vsel %vm2340, %v2325, %v2121
      %v2344 = vsel %vm2340, %v2327, %v2123
      %v2346 = vsel %vm2340, %v2329, %v2125
      %v2348 = vsel %vm2340, %v2331, %v2127
      %v2350 = vsel %vm2340, %v2333, %v2129
      %v2352 = vsel %vm2340, %v2335, %v2131
      %v2354 = vsel %vm2340, %v2337, %v2133
      %v2356 = vsel %vm2340, %v2339, %v2135
      %vm2357 = vcmask 195584
      %v2359 = vsel %vm2357, %v2342, %v2169
      %v2361 = vsel %vm2357, %v2344, %v2171
      %v2363 = vsel %vm2357, %v2346, %v2173
      %v2365 = vsel %vm2357, %v2348, %v2175
      %v2367 = vsel %vm2357, %v2350, %v2177
      %v2369 = vsel %vm2357, %v2352, %v2179
      %v2371 = vsel %vm2357, %v2354, %v2181
      %v2373 = vsel %vm2357, %v2356, %v2183
      %vm2374 = vcmask 228352
      %v2376 = vsel %vm2374, %v2359, %v2209
      %v2378 = vsel %vm2374, %v2361, %v2211
      %v2380 = vsel %vm2374, %v2363, %v2213
      %v2382 = vsel %vm2374, %v2365, %v2215
      %v2384 = vsel %vm2374, %v2367, %v2217
      %v2386 = vsel %vm2374, %v2369, %v2219
      %v2388 = vsel %vm2374, %v2371, %v2221
      %v2390 = vsel %vm2374, %v2373, %v2223
      %vm2391 = vcmask 261120
      %v2393 = vsel %vm2391, %v2376, %v2249
      %v2395 = vsel %vm2391, %v2378, %v2251
      %v2397 = vsel %vm2391, %v2380, %v2253
      %v2399 = vsel %vm2391, %v2382, %v2255
      %v2401 = vsel %vm2391, %v2384, %v2257
      %v2403 = vsel %vm2391, %v2386, %v2259
      %v2405 = vsel %vm2391, %v2388, %v2261
      %v2407 = vsel %vm2391, %v2390, %v2263
      %v2408 = vld [vmem:[%s5] sm:$0xf]
      %v2409 = vld [vmem:[%s5 + $0x4] sm:$0xf]
      %v2410 = vld [vmem:[%s5 + $0x8] sm:$0xf]
      %v2411 = vld [vmem:[%s5 + $0xc] sm:$0xf]
      %v2412 = vld [vmem:[%s5 + $0x10] sm:$0x3]
      %v2418 = vunpack.c.l.b16 %v2408
      %v2419 = vunpack.c.l.b16 %v2409
      %v2420 = vunpack.c.l.b16 %v2410
      %v2421 = vunpack.c.l.b16 %v2411
      %v2422 = vunpack.c.l.b16 %v2412
      %v2423 = vpack.c.b16 %v2419, %v2418
      %v2424 = vpack.c.b16 %v2421, %v2420
      %v2425 = vpack.c.b16 %v2422, %v2422
      %vm2428 = vcmask 293888
      %v2429 = vsel %vm2428, %v2393, 0
      %v2431 = vsel %vm2428, %v2395, 0
      %v2433 = vsel %vm2428, %v2397, 0
      %v2435 = vsel %vm2428, %v2399, 0
      %v2437 = vsel %vm2428, %v2401, 0
      %v2439 = vsel %vm2428, %v2403, 0
      %v2441 = vsel %vm2428, %v2405, 0
      %v2443 = vsel %vm2428, %v2407, 0
      %vm2445 = vcmask 1041408
      %v2447 = vsel %vm2445, %v2425, 0
      %2449 = vmatprep.subr.bf16.mxu0 0
      %2450 = vmatpush1.bf16.msra.mxu0 0
      %2451 = vmatprep.subr.bf16.mxu0 0
      %2452 = vmatpush1.bf16.msra.mxu0 0
      %2453 = vmatprep.subr.bf16.mxu0 0
      %2454 = vmatpush1.bf16.msra.mxu0 0
      %2455 = vmatprep.subr.bf16.mxu0 0
      %2456 = vmatpush1.bf16.msra.mxu0 0
      %2457 = vmatprep.subr.bf16.mxu0 0
      %2458 = vmatpush1.bf16.msra.mxu0 0
      %2459 = vmatprep.subr.bf16.mxu0 0
      %2460 = vmatpush1.bf16.msra.mxu0 %v2447
      %2461 = vmatprep.subr.bf16.mxu0 0
      %2462 = vmatpush1.bf16.msra.mxu0 %v2424
      %2463 = vmatprep.subr.bf16.mxu0 0
      %2464 = vmatpush1.bf16.msra.mxu0 %v2423
      %2465 = vmatprep.subr.bf16.mxu0 0
      %2466 = vmatpush2.bf16.msra.mxu0 0
      %2467 = vmatprep.subr.bf16.mxu0 0
      %2468 = vmatpush2.bf16.msra.mxu0 0
      %2469 = vmatprep.subr.bf16.mxu0 0
      %2470 = vmatpush2.bf16.msra.mxu0 0
      %2471 = vmatprep.subr.bf16.mxu0 0
      %2472 = vmatpush2.bf16.msra.mxu0 0
      %2473 = vmatprep.subr.bf16.mxu0 0
      %2474 = vmatpush2.bf16.msra.mxu0 0
      %2475 = vmatprep.subr.bf16.mxu0 0
      %2476 = vmatpush2.bf16.msra.mxu0 0
      %2477 = vmatprep.subr.bf16.mxu0 0
      %2478 = vmatpush2.bf16.msra.mxu0 0
      %2479 = vmatprep.subr.bf16.mxu0 0
      %2480 = vmatpush2.bf16.msra.mxu0 0
      %2481 = vmatprep.mubr.bf16.mxu0 0
      %2482 = vmatmul.mubr.bf16.gmra.mxu0 %v2429
      %v2483 = vpop.f32.mrf.mxu0
      %v2484 = vadd.f32 0.0, %v2483
      %v2485 = vpop.f32.mrf.mxu0
      %v2486 = vpop.f32.mrf.mxu0
      %v2487 = vadd.f32 0.0, %v2486
      %v2488 = vpop.f32.mrf.mxu0
      %2489 = vmatprep.mubr.bf16.mxu0 0
      %2490 = vmatmul.mubr.bf16.gmra.mxu0 %v2431
      %v2491 = vpop.f32.mrf.mxu0
      %v2492 = vadd.f32 0.0, %v2491
      %v2493 = vpop.f32.mrf.mxu0
      %v2494 = vpop.f32.mrf.mxu0
      %v2495 = vadd.f32 0.0, %v2494
      %v2496 = vpop.f32.mrf.mxu0
      %2497 = vmatprep.mubr.bf16.mxu0 0
      %2498 = vmatmul.mubr.bf16.gmra.mxu0 %v2433
      %v2499 = vpop.f32.mrf.mxu0
      %v2500 = vadd.f32 0.0, %v2499
      %v2501 = vpop.f32.mrf.mxu0
      %v2502 = vpop.f32.mrf.mxu0
      %v2503 = vadd.f32 0.0, %v2502
      %v2504 = vpop.f32.mrf.mxu0
      %2505 = vmatprep.mubr.bf16.mxu0 0
      %2506 = vmatmul.mubr.bf16.gmra.mxu0 %v2435
      %v2507 = vpop.f32.mrf.mxu0
      %v2508 = vadd.f32 0.0, %v2507
      %v2509 = vpop.f32.mrf.mxu0
      %v2510 = vpop.f32.mrf.mxu0
      %v2511 = vadd.f32 0.0, %v2510
      %v2512 = vpop.f32.mrf.mxu0
      %2513 = vmatprep.mubr.bf16.mxu0 0
      %2514 = vmatmul.mubr.bf16.gmra.mxu0 %v2437
      %v2515 = vpop.f32.mrf.mxu0
      %v2516 = vadd.f32 0.0, %v2515
      %v2517 = vpop.f32.mrf.mxu0
      %v2518 = vpop.f32.mrf.mxu0
      %v2519 = vadd.f32 0.0, %v2518
      %v2520 = vpop.f32.mrf.mxu0
      %2521 = vmatprep.mubr.bf16.mxu0 0
      %2522 = vmatmul.mubr.bf16.gmra.mxu0 %v2439
      %v2523 = vpop.f32.mrf.mxu0
      %v2524 = vadd.f32 0.0, %v2523
      %v2525 = vpop.f32.mrf.mxu0
      %v2526 = vpop.f32.mrf.mxu0
      %v2527 = vadd.f32 0.0, %v2526
      %v2528 = vpop.f32.mrf.mxu0
      %2529 = vmatprep.mubr.bf16.mxu0 0
      %2530 = vmatmul.mubr.bf16.gmra.mxu0 %v2441
      %v2531 = vpop.f32.mrf.mxu0
      %v2532 = vadd.f32 0.0, %v2531
      %v2533 = vpop.f32.mrf.mxu0
      %v2534 = vpop.f32.mrf.mxu0
      %v2535 = vadd.f32 0.0, %v2534
      %v2536 = vpop.f32.mrf.mxu0
      %2537 = vmatprep.mubr.bf16.mxu0 0
      %2538 = vmatmul.mubr.bf16.gmra.mxu0 %v2443
      %v2539 = vpop.f32.mrf.mxu0
      %v2540 = vadd.f32 0.0, %v2539
      %v2541 = vpop.f32.mrf.mxu0
      %v2542 = vpop.f32.mrf.mxu0
      %v2543 = vadd.f32 0.0, %v2542
      %v2544 = vpop.f32.mrf.mxu0
      %2545 = vdwg.mxu0
      %v2546 = vpack.c.bf16 %v2487, %v2484
      %v2547 = vpack.c.bf16 %v2495, %v2492
      %v2548 = vpack.c.bf16 %v2503, %v2500
      %v2549 = vpack.c.bf16 %v2511, %v2508
      %v2550 = vpack.c.bf16 %v2519, %v2516
      %v2551 = vpack.c.bf16 %v2527, %v2524
      %v2552 = vpack.c.bf16 %v2535, %v2532
      %v2553 = vpack.c.bf16 %v2543, %v2540
      %v2562 = vunpack.c.l.b16 %v2546
      %v2563 = vunpack.c.h.b16 %v2546
      %v2564 = vunpack.c.l.b16 %v2547
      %v2565 = vunpack.c.h.b16 %v2547
      %v2566 = vunpack.c.l.b16 %v2548
      %v2567 = vunpack.c.h.b16 %v2548
      %v2568 = vunpack.c.l.b16 %v2549
      %v2569 = vunpack.c.h.b16 %v2549
      %v2570 = vunpack.c.l.b16 %v2550
      %v2571 = vunpack.c.h.b16 %v2550
      %v2572 = vunpack.c.l.b16 %v2551
      %v2573 = vunpack.c.h.b16 %v2551
      %v2574 = vunpack.c.l.b16 %v2552
      %v2575 = vunpack.c.h.b16 %v2552
      %v2576 = vunpack.c.l.b16 %v2553
      %v2577 = vunpack.c.h.b16 %v2553
      %v2578 = vpack.c.b16 %v2562, %v2562
      %v2579 = vpack.c.b16 %v2563, %v2563
      %v2580 = vpack.c.b16 %v2564, %v2564
      %v2581 = vpack.c.b16 %v2565, %v2565
      %v2582 = vpack.c.b16 %v2566, %v2566
      %v2583 = vpack.c.b16 %v2567, %v2567
      %v2584 = vpack.c.b16 %v2568, %v2568
      %v2585 = vpack.c.b16 %v2569, %v2569
      %v2586 = vpack.c.b16 %v2570, %v2570
      %v2587 = vpack.c.b16 %v2571, %v2571
      %v2588 = vpack.c.b16 %v2572, %v2572
      %v2589 = vpack.c.b16 %v2573, %v2573
      %v2590 = vpack.c.b16 %v2574, %v2574
      %v2591 = vpack.c.b16 %v2575, %v2575
      %v2592 = vpack.c.b16 %v2576, %v2576
      %v2593 = vpack.c.b16 %v2577, %v2577
      %vm2610 = vcmask 60416
      %2611 = vst.msk [vmem:[%s458] sm:$0xf] %vm2610, %v2578
      %2612 = vst.msk [vmem:[%s458 + $0x4] sm:$0xf] %vm2610, %v2579
      %2613 = vst.msk [vmem:[%s458 + $0x8] sm:$0xf] %vm2610, %v2580
      %2614 = vst.msk [vmem:[%s458 + $0xc] sm:$0xf] %vm2610, %v2581
      %2615 = vst.msk [vmem:[%s458 + $0x10] sm:$0xf] %vm2610, %v2582
      %2616 = vst.msk [vmem:[%s458 + $0x14] sm:$0xf] %vm2610, %v2583
      %2617 = vst.msk [vmem:[%s458 + $0x18] sm:$0xf] %vm2610, %v2584
      %2618 = vst.msk [vmem:[%s458 + $0x1c] sm:$0xf] %vm2610, %v2585
      %2619 = vst.msk [vmem:[%s458 + $0x20] sm:$0xf] %vm2610, %v2586
      %2620 = vst.msk [vmem:[%s458 + $0x24] sm:$0xf] %vm2610, %v2587
      %2621 = vst.msk [vmem:[%s458 + $0x28] sm:$0xf] %vm2610, %v2588
      %2622 = vst.msk [vmem:[%s458 + $0x2c] sm:$0xf] %vm2610, %v2589
      %2623 = vst.msk [vmem:[%s458 + $0x30] sm:$0xf] %vm2610, %v2590
      %2624 = vst.msk [vmem:[%s458 + $0x34] sm:$0xf] %vm2610, %v2591
      %2625 = vst.msk [vmem:[%s458 + $0x38] sm:$0xf] %vm2610, %v2592
      %2626 = vst.msk [vmem:[%s458 + $0x3c] sm:$0xf] %vm2610, %v2593
      %v2627 = vsel %vm2289, %v2484, 0.0
      %v2628 = vsel %vm2289, %v2487, 0.0
      %v2629 = vadd.f32 %v2627, %v2628
      %v2630 = vsel %vm2289, %v2492, 0.0
      %v2631 = vadd.f32 %v2629, %v2630
      %v2632 = vsel %vm2289, %v2495, 0.0
      %v2633 = vadd.f32 %v2631, %v2632
      %v2634 = vsel %vm2289, %v2500, 0.0
      %v2635 = vadd.f32 %v2633, %v2634
      %v2636 = vsel %vm2289, %v2503, 0.0
      %v2637 = vadd.f32 %v2635, %v2636
      %v2638 = vsel %vm2289, %v2508, 0.0
      %v2639 = vadd.f32 %v2637, %v2638
      %v2640 = vsel %vm2289, %v2511, 0.0
      %v2641 = vadd.f32 %v2639, %v2640
      %v2642 = vsel %vm2289, %v2516, 0.0
      %v2643 = vadd.f32 %v2641, %v2642
      %v2644 = vsel %vm2289, %v2519, 0.0
      %v2645 = vadd.f32 %v2643, %v2644
      %v2646 = vsel %vm2289, %v2524, 0.0
      %v2647 = vadd.f32 %v2645, %v2646
      %v2648 = vsel %vm2289, %v2527, 0.0
      %v2649 = vadd.f32 %v2647, %v2648
      %v2650 = vsel %vm2289, %v2532, 0.0
      %v2651 = vadd.f32 %v2649, %v2650
      %v2652 = vsel %vm2289, %v2535, 0.0
      %v2653 = vadd.f32 %v2651, %v2652
      %v2654 = vsel %vm2289, %v2540, 0.0
      %v2655 = vadd.f32 %v2653, %v2654
      %v2656 = vsel %vm2289, %v2543, 0.0
      %v2657 = vadd.f32 %v2655, %v2656
      %v2658 = vrot.slane %v2657, 4
      %v2659 = vadd.f32 %v2657, %v2658
      %v2660 = vrot.slane %v2659, 2
      %v2661 = vadd.f32 %v2659, %v2660
      %v2662 = vrot.slane %v2661, 1
      %v2663 = vadd.f32 %v2661, %v2662
      %v2664 = vmul.f32 %v2484, %v2484
      %v2665 = vmul.f32 %v2487, %v2487
      %v2666 = vmul.f32 %v2492, %v2492
      %v2667 = vmul.f32 %v2495, %v2495
      %v2668 = vmul.f32 %v2500, %v2500
      %v2669 = vmul.f32 %v2503, %v2503
      %v2670 = vmul.f32 %v2508, %v2508
      %v2671 = vmul.f32 %v2511, %v2511
      %v2672 = vmul.f32 %v2516, %v2516
      %v2673 = vmul.f32 %v2519, %v2519
      %v2674 = vmul.f32 %v2524, %v2524
      %v2675 = vmul.f32 %v2527, %v2527
      %v2676 = vmul.f32 %v2532, %v2532
      %v2677 = vmul.f32 %v2535, %v2535
      %v2678 = vmul.f32 %v2540, %v2540
      %v2679 = vmul.f32 %v2543, %v2543
      %v2680 = vsel %vm2289, %v2664, 0.0
      %v2681 = vsel %vm2289, %v2665, 0.0
      %v2682 = vadd.f32 %v2680, %v2681
      %v2683 = vsel %vm2289, %v2666, 0.0
      %v2684 = vadd.f32 %v2682, %v2683
      %v2685 = vsel %vm2289, %v2667, 0.0
      %v2686 = vadd.f32 %v2684, %v2685
      %v2687 = vsel %vm2289, %v2668, 0.0
      %v2688 = vadd.f32 %v2686, %v2687
      %v2689 = vsel %vm2289, %v2669, 0.0
      %v2690 = vadd.f32 %v2688, %v2689
      %v2691 = vsel %vm2289, %v2670, 0.0
      %v2692 = vadd.f32 %v2690, %v2691
      %v2693 = vsel %vm2289, %v2671, 0.0
      %v2694 = vadd.f32 %v2692, %v2693
      %v2695 = vsel %vm2289, %v2672, 0.0
      %v2696 = vadd.f32 %v2694, %v2695
      %v2697 = vsel %vm2289, %v2673, 0.0
      %v2698 = vadd.f32 %v2696, %v2697
      %v2699 = vsel %vm2289, %v2674, 0.0
      %v2700 = vadd.f32 %v2698, %v2699
      %v2701 = vsel %vm2289, %v2675, 0.0
      %v2702 = vadd.f32 %v2700, %v2701
      %v2703 = vsel %vm2289, %v2676, 0.0
      %v2704 = vadd.f32 %v2702, %v2703
      %v2705 = vsel %vm2289, %v2677, 0.0
      %v2706 = vadd.f32 %v2704, %v2705
      %v2707 = vsel %vm2289, %v2678, 0.0
      %v2708 = vadd.f32 %v2706, %v2707
      %v2709 = vsel %vm2289, %v2679, 0.0
      %v2710 = vadd.f32 %v2708, %v2709
      %v2711 = vrot.slane %v2710, 4
      %v2712 = vadd.f32 %v2710, %v2711
      %v2713 = vrot.slane %v2712, 2
      %v2714 = vadd.f32 %v2712, %v2713
      %v2715 = vrot.slane %v2714, 1
      %v2716 = vadd.f32 %v2714, %v2715
      %vm2717 = vcmask 1040384
      %v2718 = vsel %vm2717, %v2663, %v2716
      %vm2719 = vcmask 58368
      %2720 = vst.msk [vmem:[%s467] sm:$0x3] %vm2719, %v2718
      %s2721 = smul.u32 8, %s24
      %p2722 = scmp.lt.s32.totalorder %s23, 1
      %s2723 = scalar_select %p2722, %s23, 1
      %p2724 = scmp.lt.s32.totalorder %s2721, 15
      %s2725 = scalar_select %p2724, %s2721, 15
      %s2726 = smul.addr %s2725, 2
      %s2727 = smul.addr %s2723, 32
      %s2728 = sadd.s32 %s2726, %s2727
      %s2729 = smul.addr %s2728, 4
      %s2730 = scalar_lea.vmem %s6, %s2729
      %p2731 = scmp.lt.s32.totalorder %s23, 1
      %s2732 = scalar_select %p2731, %s23, 1
      %p2733 = scmp.lt.s32.totalorder %s24, 1
      %s2734 = scalar_select %p2733, %s24, 1
      %s2735 = smul.addr %s2732, 2
      %s2736 = sadd.s32 %s2734, %s2735
      %s2737 = smul.addr %s2736, 2
      %s2738 = scalar_lea.vmem %s7, %s2737
      // Predicated region
      $region45: #{preact_basic.4} parent=43 // pred_check
        %p2739 = pneg %p214
      $region46: #{preact_basic.4} parent=43 // pred_check_branch
        %2741 = sbr.rel (%p2739) target = $region48
      $region47: #{preact_basic.4} parent=43 // pred_region
        %s2742 = smul.u32 8, %s24
      $region48: #{preact_basic.4} parent=43 // pred_fallthru
        _
      // Predicated region
      $region49: #{preact_basic.4} parent=43 // pred_check
        %p2743 = pneg %p242
      $region50: #{preact_basic.4} parent=43 // pred_check_branch
        %2745 = sbr.rel (%p2743) target = $region52
      $region51: #{preact_basic.4} parent=43 // pred_region
        _
      $region52: #{preact_basic.4} parent=43 // pred_fallthru
        _
    $region44: #{preact_basic.4} parent=5 // pred_fallthru
      _
    %p2746 = scmp.le.s32.totalorder 2, %s14
    // Predicated region
    $region53: #{preact_basic.4} parent=5 // pred_check
      %p2747 = pneg %p2746
    $region54: #{preact_basic.4} parent=5 // pred_check_branch
      %2749 = sbr.rel (%p2747) target = $region56
    $region55: #{preact_basic.4} parent=5 // pred_region
      %s2750 = ssub.s32 %s14, 2
      // Predicated region
      $region57: #{preact_basic.4} parent=55 // pred_check
        %p2751 = pneg %p220
      $region58: #{preact_basic.4} parent=55 // pred_check_branch
        %2753 = sbr.rel (%p2751) target = $region60
      $region59: #{preact_basic.4} parent=55 // pred_region
        %s2754 = smul.u32 8, %s26
        %p2755 = scmp.lt.s32.totalorder %s25, 1
        %s2756 = scalar_select %p2755, %s25, 1
        %p2757 = scmp.lt.s32.totalorder %s2754, 15
        %s2758 = scalar_select %p2757, %s2754, 15
        %s2759 = smul.addr %s2758, 2
        %s2760 = smul.addr %s2756, 32
        %s2761 = sadd.s32 %s2759, %s2760
        %s2762 = smul.addr %s2761, 4
        %s2763 = scalar_lea.vmem %s6, %s2762
      $region60: #{preact_basic.4} parent=55 // pred_fallthru
        _
      // Predicated region
      $region61: #{preact_basic.4} parent=55 // pred_check
        %p2764 = pneg %p248
      $region62: #{preact_basic.4} parent=55 // pred_check_branch
        %2766 = sbr.rel (%p2764) target = $region64
      $region63: #{preact_basic.4} parent=55 // pred_region
        %p2767 = scmp.lt.s32.totalorder %s25, 1
        %s2768 = scalar_select %p2767, %s25, 1
        %p2769 = scmp.lt.s32.totalorder %s26, 1
        %s2770 = scalar_select %p2769, %s26, 1
        %s2771 = smul.addr %s2768, 2
        %s2772 = sadd.s32 %s2770, %s2771
        %s2773 = smul.addr %s2772, 2
        %s2774 = scalar_lea.vmem %s7, %s2773
      $region64: #{preact_basic.4} parent=55 // pred_fallthru
        _
    $region56: #{preact_basic.4} parent=5 // pred_fallthru
      _
  $region6: #{preact_basic.4} parent=0 // loop_footer
    %s18 = sadd.s32 1, %s14
  $region7: #{preact_basic.4} parent=0 // loop_footer_branch
    %13 = sbr.rel target = $region3
  $region8: #{preact_basic.4} parent=0 // loop_exit
    _

// kernel: preact_basic.5
$region0: #{preact_basic.5}
  #allocation0 [shape = 'u32[]', space=smem, size = 0x4, offset = 0x4, fixed_abs, tag = 'smem constant byte address 0x4 - core index']
  #allocation1 [shape = 'u32[144,128]{1,0:T(1,128)}', space=vmem, size = 0x12000, scoped, tag = 'internal scratch']
  #allocation2 [shape = 'bf16[10,18,8]{2,1,0:T(8,128)(2,1)}', space=vmem, size = 0xf000, scoped, tag = 'scratch operand']
  %s0 = inlined_call_operand.vmem [shape: f32[1,8], index: 0, kind: input, shape index: {}]
  %s1 = inlined_call_operand.vmem [shape: f32[1,8], index: 1, kind: input, shape index: {}]
  %s2 = inlined_call_operand.vmem [shape: bf16[2,16,16,8], index: 2, kind: input, shape index: {}, may-alias: {2,3,4}]
  %s3 = inlined_call_operand.vmem [shape: bf16[2,16,16,8], index: 3, kind: input, shape index: {}, may-alias: {2,3,4}]
  %s4 = inlined_call_operand.vmem [shape: bf16[2,16,16,8], index: 4, kind: input, shape index: {}, may-alias: {2,3,4}]
  %s5 = inlined_call_operand.vmem [shape: bf16[72,8], index: 5, kind: input, shape index: {}]
  %s6 = inlined_call_operand.vmem [shape: f32[1,8], index: 6, kind: input, shape index: {}]
  %s7 = inlined_call_operand.vmem [shape: f32[2,16,16,4], index: 7, kind: input, shape index: {}]
  %s8 = inlined_call_operand.vmem [shape: bf16[4,8], index: 8, kind: input, shape index: {}]
  %s9 = inlined_call_operand.vmem [shape: f32[1,8], index: 9, kind: input, shape index: {}]
  %s10 = inlined_call_operand.vmem [shape: f32[2,16,16,8], index: 10, kind: output, shape index: {}]
  %s11 = sld [smem:[#allocation0]]
  $region73: #{preact_basic.5} parent=0
    _
  %s13 = ssub.s32 1, %s11
  %s14 = scalar_select 0, %s13, %s11
  loop: start=0, step=1, limit=6
  $region2: #{preact_basic.5} parent=0 // loop_pre_header
    _
  $region3: #{preact_basic.5} parent=0 // loop_header
    %s16 = sphi 0, %s20
    %p17 = scmp.ge.s32.totalorder %s16, 6
    %s23 = sphi 0, %s35
    %s24 = sphi 0, %s31
    %s25 = sphi 0, %s23
    %s26 = sphi 0, %s24
    %s27 = sphi 0, %s25
    %s28 = sphi 0, %s26
    %s36 = sphi 0, %s36
    %s38 = sphi 0, %s36
    %s39 = sphi 0, %s38
    %s53 = sphi 0, %s39
    %s57 = sphi 0, %s57
    %s59 = sphi 0, %s57
    %s60 = sphi 0, %s59
    %s74 = sphi 0, %s60
    %s90 = sphi 0, %s92
    %s93 = sphi 0, %s90
    %s94 = sphi 0, %s93
    %s110 = sphi 0, %s94
    %s118 = sphi 0, %s120
    %s121 = sphi 0, %s118
    %s122 = sphi 0, %s121
    %s138 = sphi 0, %s122
    %s154 = sphi 0, %s156
    %s157 = sphi 0, %s154
    %s158 = sphi 0, %s157
    %s174 = sphi 0, %s158
    %s178 = sphi 0, %s178
    %s180 = sphi 0, %s178
    %s181 = sphi 0, %s180
    %s195 = sphi 0, %s181
    %s199 = sphi 0, %s199
    %s201 = sphi 0, %s199
    %s202 = sphi 0, %s201
    %s216 = sphi 0, %s202
    %s224 = sphi 0, %s226
    %s227 = sphi 0, %s224
    %s228 = sphi 0, %s227
    %s244 = sphi 0, %s228
    %s248 = sphi 0, %s248
    %s250 = sphi 0, %s248
    %s251 = sphi 0, %s250
    %s265 = sphi 0, %s251
    %s269 = sphi 0, %s269
    %s271 = sphi 0, %s269
    %s272 = sphi 0, %s271
    %s286 = sphi 0, %s272
    %s294 = sphi 0, %s296
    %s297 = sphi 0, %s294
    %s298 = sphi 0, %s297
    %s314 = sphi 0, %s298
  $region4: #{preact_basic.5} parent=0 // loop_header_branch
    %19 = sbr.rel (%p17) target = $region8
  $region5: #{preact_basic.5} parent=0 // loop_body
    %s21 = ssub.s32 %s16, 1
    %s22 = ssub.s32 %s16, 2
    %s29 = sadd.s32 1, %s24
    %p30 = scmp.ge.s32.totalorder %s29, 2
    %s31 = scalar_select %p30, 0, %s29
    %s32 = sadd.s32 1, %s23
    %s33 = scalar_select %p30, %s32, %s23
    %p34 = scmp.ge.s32.totalorder %s33, 2
    %s35 = scalar_select %p34, 0, %s33
    %s37 = sadd.s32 %s36, 1
    %p40 = scmp.eq.s32.totalorder %s16, 3
    %p41 = scmp.ne.s32.totalorder %s36, %s38
    %p42 = scmp.eq.s32.totalorder %s16, 0
    %p43 = por %p41, %p42
    %p44 = scmp.ne.s32.totalorder %s36, %s38
    %p45 = scmp.eq.s32.totalorder %s21, 3
    %p46 = por %p44, %p45
    %p47 = scmp.ne.s32.totalorder %s38, %s39
    %p48 = scmp.eq.s32.totalorder %s21, 0
    %p49 = por %p47, %p48
    %p50 = scmp.ne.s32.totalorder %s38, %s39
    %p51 = scmp.eq.s32.totalorder %s22, 3
    %p52 = por %p50, %p51
    %p54 = scmp.ne.s32.totalorder %s39, %s53
    %p55 = scmp.eq.s32.totalorder %s22, 0
    %p56 = por %p54, %p55
    %s58 = sadd.s32 %s57, 1
    %p61 = scmp.eq.s32.totalorder %s16, 3
    %p62 = scmp.ne.s32.totalorder %s57, %s59
    %p63 = scmp.eq.s32.totalorder %s16, 0
    %p64 = por %p62, %p63
    %p65 = scmp.ne.s32.totalorder %s57, %s59
    %p66 = scmp.eq.s32.totalorder %s21, 3
    %p67 = por %p65, %p66
    %p68 = scmp.ne.s32.totalorder %s59, %s60
    %p69 = scmp.eq.s32.totalorder %s21, 0
    %p70 = por %p68, %p69
    %p71 = scmp.ne.s32.totalorder %s59, %s60
    %p72 = scmp.eq.s32.totalorder %s22, 3
    %p73 = por %p71, %p72
    %p75 = scmp.ne.s32.totalorder %s60, %s74
    %p76 = scmp.eq.s32.totalorder %s22, 0
    %p77 = por %p75, %p76
    %s78 = smul.u32 %s24, 8
    %s79 = ssub.s32 %s78, 1
    %p80 = scmp.gt.s32.totalorder %s79, 0
    %s81 = scalar_select %p80, %s79, 0
    %s82 = smul.u32 %s31, 8
    %s83 = ssub.s32 %s82, 1
    %p84 = scmp.gt.s32.totalorder %s83, 0
    %s85 = scalar_select %p84, %s83, 0
    %s86 = ssub.s32 %s23, %s35
    %s87 = ssub.s32 %s81, %s85
    %s88 = sor.u32 %s86, %s87
    %p89 = scmp.eq.s32.totalorder %s88, 0
    %s91 = sadd.s32 %s90, 1
    %s92 = scalar_select %p89, %s90, %s91
    %p95 = pneg %p89
    %p96 = scmp.eq.s32.totalorder %s16, 3
    %p97 = por %p95, %p96
    %p98 = scmp.ne.s32.totalorder %s90, %s93
    %p99 = scmp.eq.s32.totalorder %s16, 0
    %p100 = por %p98, %p99
    %p101 = scmp.ne.s32.totalorder %s90, %s93
    %p102 = scmp.eq.s32.totalorder %s21, 3
    %p103 = por %p101, %p102
    %p104 = scmp.ne.s32.totalorder %s93, %s94
    %p105 = scmp.eq.s32.totalorder %s21, 0
    %p106 = por %p104, %p105
    %p107 = scmp.ne.s32.totalorder %s93, %s94
    %p108 = scmp.eq.s32.totalorder %s22, 3
    %p109 = por %p107, %p108
    %p111 = scmp.ne.s32.totalorder %s94, %s110
    %p112 = scmp.eq.s32.totalorder %s22, 0
    %p113 = por %p111, %p112
    %s114 = ssub.s32 %s23, %s35
    %s115 = ssub.s32 %s24, %s31
    %s116 = sor.u32 %s114, %s115
    %p117 = scmp.eq.s32.totalorder %s116, 0
    %s119 = sadd.s32 %s118, 1
    %s120 = scalar_select %p117, %s118, %s119
    %p123 = pneg %p117
    %p124 = scmp.eq.s32.totalorder %s16, 3
    %p125 = por %p123, %p124
    %p126 = scmp.ne.s32.totalorder %s118, %s121
    %p127 = scmp.eq.s32.totalorder %s16, 0
    %p128 = por %p126, %p127
    %p129 = scmp.ne.s32.totalorder %s118, %s121
    %p130 = scmp.eq.s32.totalorder %s21, 3
    %p131 = por %p129, %p130
    %p132 = scmp.ne.s32.totalorder %s121, %s122
    %p133 = scmp.eq.s32.totalorder %s21, 0
    %p134 = por %p132, %p133
    %p135 = scmp.ne.s32.totalorder %s121, %s122
    %p136 = scmp.eq.s32.totalorder %s22, 3
    %p137 = por %p135, %p136
    %p139 = scmp.ne.s32.totalorder %s122, %s138
    %p140 = scmp.eq.s32.totalorder %s22, 0
    %p141 = por %p139, %p140
    %s142 = smul.u32 %s24, 8
    %s143 = sadd.s32 %s142, 8
    %p144 = scmp.lt.s32.totalorder %s143, 15
    %s145 = scalar_select %p144, %s143, 15
    %s146 = smul.u32 %s31, 8
    %s147 = sadd.s32 %s146, 8
    %p148 = scmp.lt.s32.totalorder %s147, 15
    %s149 = scalar_select %p148, %s147, 15
    %s150 = ssub.s32 %s23, %s35
    %s151 = ssub.s32 %s145, %s149
    %s152 = sor.u32 %s150, %s151
    %p153 = scmp.eq.s32.totalorder %s152, 0
    %s155 = sadd.s32 %s154, 1
    %s156 = scalar_select %p153, %s154, %s155
    %p159 = pneg %p153
    %p160 = scmp.eq.s32.totalorder %s16, 3
    %p161 = por %p159, %p160
    %p162 = scmp.ne.s32.totalorder %s154, %s157
    %p163 = scmp.eq.s32.totalorder %s16, 0
    %p164 = por %p162, %p163
    %p165 = scmp.ne.s32.totalorder %s154, %s157
    %p166 = scmp.eq.s32.totalorder %s21, 3
    %p167 = por %p165, %p166
    %p168 = scmp.ne.s32.totalorder %s157, %s158
    %p169 = scmp.eq.s32.totalorder %s21, 0
    %p170 = por %p168, %p169
    %p171 = scmp.ne.s32.totalorder %s157, %s158
    %p172 = scmp.eq.s32.totalorder %s22, 3
    %p173 = por %p171, %p172
    %p175 = scmp.ne.s32.totalorder %s158, %s174
    %p176 = scmp.eq.s32.totalorder %s22, 0
    %p177 = por %p175, %p176
    %s179 = sadd.s32 %s178, 1
    %p182 = scmp.eq.s32.totalorder %s16, 3
    %p183 = scmp.ne.s32.totalorder %s178, %s180
    %p184 = scmp.eq.s32.totalorder %s16, 0
    %p185 = por %p183, %p184
    %p186 = scmp.ne.s32.totalorder %s178, %s180
    %p187 = scmp.eq.s32.totalorder %s21, 3
    %p188 = por %p186, %p187
    %p189 = scmp.ne.s32.totalorder %s180, %s181
    %p190 = scmp.eq.s32.totalorder %s21, 0
    %p191 = por %p189, %p190
    %p192 = scmp.ne.s32.totalorder %s180, %s181
    %p193 = scmp.eq.s32.totalorder %s22, 3
    %p194 = por %p192, %p193
    %p196 = scmp.ne.s32.totalorder %s181, %s195
    %p197 = scmp.eq.s32.totalorder %s22, 0
    %p198 = por %p196, %p197
    %s200 = sadd.s32 %s199, 1
    %p203 = scmp.eq.s32.totalorder %s16, 3
    %p204 = scmp.ne.s32.totalorder %s199, %s201
    %p205 = scmp.eq.s32.totalorder %s16, 0
    %p206 = por %p204, %p205
    %p207 = scmp.ne.s32.totalorder %s199, %s201
    %p208 = scmp.eq.s32.totalorder %s21, 3
    %p209 = por %p207, %p208
    %p210 = scmp.ne.s32.totalorder %s201, %s202
    %p211 = scmp.eq.s32.totalorder %s21, 0
    %p212 = por %p210, %p211
    %p213 = scmp.ne.s32.totalorder %s201, %s202
    %p214 = scmp.eq.s32.totalorder %s22, 3
    %p215 = por %p213, %p214
    %p217 = scmp.ne.s32.totalorder %s202, %s216
    %p218 = scmp.eq.s32.totalorder %s22, 0
    %p219 = por %p217, %p218
    %s220 = ssub.s32 %s23, %s35
    %s221 = ssub.s32 %s24, %s31
    %s222 = sor.u32 %s220, %s221
    %p223 = scmp.eq.s32.totalorder %s222, 0
    %s225 = sadd.s32 %s224, 1
    %s226 = scalar_select %p223, %s224, %s225
    %p229 = pneg %p223
    %p230 = scmp.eq.s32.totalorder %s16, 3
    %p231 = por %p229, %p230
    %p232 = scmp.ne.s32.totalorder %s224, %s227
    %p233 = scmp.eq.s32.totalorder %s16, 0
    %p234 = por %p232, %p233
    %p235 = scmp.ne.s32.totalorder %s224, %s227
    %p236 = scmp.eq.s32.totalorder %s21, 3
    %p237 = por %p235, %p236
    %p238 = scmp.ne.s32.totalorder %s227, %s228
    %p239 = scmp.eq.s32.totalorder %s21, 0
    %p240 = por %p238, %p239
    %p241 = scmp.ne.s32.totalorder %s227, %s228
    %p242 = scmp.eq.s32.totalorder %s22, 3
    %p243 = por %p241, %p242
    %p245 = scmp.ne.s32.totalorder %s228, %s244
    %p246 = scmp.eq.s32.totalorder %s22, 0
    %p247 = por %p245, %p246
    %s249 = sadd.s32 %s248, 1
    %p252 = scmp.eq.s32.totalorder %s16, 3
    %p253 = scmp.ne.s32.totalorder %s248, %s250
    %p254 = scmp.eq.s32.totalorder %s16, 0
    %p255 = por %p253, %p254
    %p256 = scmp.ne.s32.totalorder %s248, %s250
    %p257 = scmp.eq.s32.totalorder %s21, 3
    %p258 = por %p256, %p257
    %p259 = scmp.ne.s32.totalorder %s250, %s251
    %p260 = scmp.eq.s32.totalorder %s21, 0
    %p261 = por %p259, %p260
    %p262 = scmp.ne.s32.totalorder %s250, %s251
    %p263 = scmp.eq.s32.totalorder %s22, 3
    %p264 = por %p262, %p263
    %p266 = scmp.ne.s32.totalorder %s251, %s265
    %p267 = scmp.eq.s32.totalorder %s22, 0
    %p268 = por %p266, %p267
    %s270 = sadd.s32 %s269, 1
    %p273 = scmp.eq.s32.totalorder %s16, 3
    %p274 = scmp.ne.s32.totalorder %s269, %s271
    %p275 = scmp.eq.s32.totalorder %s16, 0
    %p276 = por %p274, %p275
    %p277 = scmp.ne.s32.totalorder %s269, %s271
    %p278 = scmp.eq.s32.totalorder %s21, 3
    %p279 = por %p277, %p278
    %p280 = scmp.ne.s32.totalorder %s271, %s272
    %p281 = scmp.eq.s32.totalorder %s21, 0
    %p282 = por %p280, %p281
    %p283 = scmp.ne.s32.totalorder %s271, %s272
    %p284 = scmp.eq.s32.totalorder %s22, 3
    %p285 = por %p283, %p284
    %p287 = scmp.ne.s32.totalorder %s272, %s286
    %p288 = scmp.eq.s32.totalorder %s22, 0
    %p289 = por %p287, %p288
    %s290 = ssub.s32 %s23, %s35
    %s291 = ssub.s32 %s24, %s31
    %s292 = sor.u32 %s290, %s291
    %p293 = scmp.eq.s32.totalorder %s292, 0
    %s295 = sadd.s32 %s294, 1
    %s296 = scalar_select %p293, %s294, %s295
    %p299 = pneg %p293
    %p300 = scmp.eq.s32.totalorder %s16, 3
    %p301 = por %p299, %p300
    %p302 = scmp.ne.s32.totalorder %s294, %s297
    %p303 = scmp.eq.s32.totalorder %s16, 0
    %p304 = por %p302, %p303
    %p305 = scmp.ne.s32.totalorder %s294, %s297
    %p306 = scmp.eq.s32.totalorder %s21, 3
    %p307 = por %p305, %p306
    %p308 = scmp.ne.s32.totalorder %s297, %s298
    %p309 = scmp.eq.s32.totalorder %s21, 0
    %p310 = por %p308, %p309
    %p311 = scmp.ne.s32.totalorder %s297, %s298
    %p312 = scmp.eq.s32.totalorder %s22, 3
    %p313 = por %p311, %p312
    %p315 = scmp.ne.s32.totalorder %s298, %s314
    %p316 = scmp.eq.s32.totalorder %s22, 0
    %p317 = por %p315, %p316
    %p318 = scmp.le.s32.totalorder 1, %s16
    %p319 = scmp.lt.s32.totalorder %s16, 5
    %p320 = pnand %p318, %p319
    %p321 = pneg %p320
    // Predicated region
    $region9: #{preact_basic.5} parent=5 // pred_check
      _
    $region10: #{preact_basic.5} parent=5 // pred_check_branch
      %323 = sbr.rel (%p320) target = $region12
    $region11: #{preact_basic.5} parent=5 // pred_region
      %s324 = ssub.s32 %s16, 1
      // Predicated region
      $region13: #{preact_basic.5} parent=11 // pred_check
        %p325 = pneg %p49
      $region14: #{preact_basic.5} parent=11 // pred_check_branch
        %327 = sbr.rel (%p325) target = $region16
      $region15: #{preact_basic.5} parent=11 // pred_region
        _
      $region16: #{preact_basic.5} parent=11 // pred_fallthru
        _
      // Predicated region
      $region17: #{preact_basic.5} parent=11 // pred_check
        %p328 = pneg %p70
      $region18: #{preact_basic.5} parent=11 // pred_check_branch
        %330 = sbr.rel (%p328) target = $region20
      $region19: #{preact_basic.5} parent=11 // pred_region
        _
      $region20: #{preact_basic.5} parent=11 // pred_fallthru
        _
      // Predicated region
      $region21: #{preact_basic.5} parent=11 // pred_check
        %p331 = pneg %p191
      $region22: #{preact_basic.5} parent=11 // pred_check_branch
        %333 = sbr.rel (%p331) target = $region24
      $region23: #{preact_basic.5} parent=11 // pred_region
        _
      $region24: #{preact_basic.5} parent=11 // pred_fallthru
        _
      // Predicated region
      $region25: #{preact_basic.5} parent=11 // pred_check
        %p334 = pneg %p212
      $region26: #{preact_basic.5} parent=11 // pred_check_branch
        %336 = sbr.rel (%p334) target = $region28
      $region27: #{preact_basic.5} parent=11 // pred_region
        _
      $region28: #{preact_basic.5} parent=11 // pred_fallthru
        _
      // Predicated region
      $region29: #{preact_basic.5} parent=11 // pred_check
        %p337 = pneg %p261
      $region30: #{preact_basic.5} parent=11 // pred_check_branch
        %339 = sbr.rel (%p337) target = $region32
      $region31: #{preact_basic.5} parent=11 // pred_region
        _
      $region32: #{preact_basic.5} parent=11 // pred_fallthru
        _
      // Predicated region
      $region33: #{preact_basic.5} parent=11 // pred_check
        %p340 = pneg %p282
      $region34: #{preact_basic.5} parent=11 // pred_check_branch
        %342 = sbr.rel (%p340) target = $region36
      $region35: #{preact_basic.5} parent=11 // pred_region
        _
      $region36: #{preact_basic.5} parent=11 // pred_fallthru
        _
    $region12: #{preact_basic.5} parent=5 // pred_fallthru
      _
    %p343 = scmp.lt.s32.totalorder %s16, 4
    // Predicated region
    $region37: #{preact_basic.5} parent=5 // pred_check
      %p344 = pneg %p343
    $region38: #{preact_basic.5} parent=5 // pred_check_branch
      %346 = sbr.rel (%p344) target = $region40
    $region39: #{preact_basic.5} parent=5 // pred_region
      // Predicated region
      $region41: #{preact_basic.5} parent=39 // pred_check
        %p347 = pneg %p100
      $region42: #{preact_basic.5} parent=39 // pred_check_branch
        %349 = sbr.rel (%p347) target = $region44
      $region43: #{preact_basic.5} parent=39 // pred_region
        %s350 = smul.u32 %s24, 8
        %s351 = ssub.s32 %s350, 1
        %p352 = scmp.gt.s32.totalorder %s351, 0
        %s353 = scalar_select %p352, %s351, 0
        %p354 = scmp.lt.s32.totalorder %s23, 1
        %s355 = scalar_select %p354, %s23, 1
        %p356 = scmp.lt.s32.totalorder %s353, 15
        %s357 = scalar_select %p356, %s353, 15
        %s358 = smul.addr %s357, 2
        %s359 = smul.addr %s355, 32
        %s360 = sadd.s32 %s358, %s359
        %s361 = smul.addr %s360, 4
        %s362 = scalar_lea.vmem %s2, %s361
        %s363 = smul.u32 %s24, 8
        %s364 = ssub.s32 %s363, 1
        %p365 = scmp.gt.s32.totalorder %s364, 0
        %s366 = scalar_select %p365, %s364, 0
      $region44: #{preact_basic.5} parent=39 // pred_fallthru
        _
      // Predicated region
      $region45: #{preact_basic.5} parent=39 // pred_check
        %p367 = pneg %p128
      $region46: #{preact_basic.5} parent=39 // pred_check_branch
        %369 = sbr.rel (%p367) target = $region48
      $region47: #{preact_basic.5} parent=39 // pred_region
        %s370 = smul.u32 8, %s24
        %p371 = scmp.lt.s32.totalorder %s23, 1
        %s372 = scalar_select %p371, %s23, 1
        %p373 = scmp.lt.s32.totalorder %s370, 15
        %s374 = scalar_select %p373, %s370, 15
        %s375 = smul.addr %s374, 2
        %s376 = smul.addr %s372, 32
        %s377 = sadd.s32 %s375, %s376
        %s378 = smul.addr %s377, 4
        %s379 = scalar_lea.vmem %s3, %s378
        %s380 = smul.u32 8, %s24
      $region48: #{preact_basic.5} parent=39 // pred_fallthru
        _
      // Predicated region
      $region49: #{preact_basic.5} parent=39 // pred_check
        %p381 = pneg %p164
      $region50: #{preact_basic.5} parent=39 // pred_check_branch
        %383 = sbr.rel (%p381) target = $region52
      $region51: #{preact_basic.5} parent=39 // pred_region
        %s384 = smul.u32 %s24, 8
        %s385 = sadd.s32 %s384, 8
        %p386 = scmp.lt.s32.totalorder %s385, 15
        %s387 = scalar_select %p386, %s385, 15
        %p388 = scmp.lt.s32.totalorder %s23, 1
        %s389 = scalar_select %p388, %s23, 1
        %p390 = scmp.lt.s32.totalorder %s387, 15
        %s391 = scalar_select %p390, %s387, 15
        %s392 = smul.addr %s391, 2
        %s393 = smul.addr %s389, 32
        %s394 = sadd.s32 %s392, %s393
        %s395 = smul.addr %s394, 4
        %s396 = scalar_lea.vmem %s4, %s395
        %s397 = smul.u32 %s24, 8
        %s398 = sadd.s32 %s397, 8
        %p399 = scmp.lt.s32.totalorder %s398, 15
        %s400 = scalar_select %p399, %s398, 15
      $region52: #{preact_basic.5} parent=39 // pred_fallthru
        _
      // Predicated region
      $region53: #{preact_basic.5} parent=39 // pred_check
        %p401 = pneg %p234
      $region54: #{preact_basic.5} parent=39 // pred_check_branch
        %403 = sbr.rel (%p401) target = $region56
      $region55: #{preact_basic.5} parent=39 // pred_region
        %s404 = smul.u32 8, %s24
        %p405 = scmp.lt.s32.totalorder %s23, 1
        %s406 = scalar_select %p405, %s23, 1
        %p407 = scmp.lt.s32.totalorder %s404, 15
        %s408 = scalar_select %p407, %s404, 15
        %s409 = smul.addr %s408, 2
        %s410 = smul.addr %s406, 32
        %s411 = sadd.s32 %s409, %s410
        %s412 = smul.addr %s411, 8
        %s413 = scalar_lea.vmem %s7, %s412
        %s414 = smul.u32 8, %s24
      $region56: #{preact_basic.5} parent=39 // pred_fallthru
        _
    $region40: #{preact_basic.5} parent=5 // pred_fallthru
      _
    %p415 = scmp.le.s32.totalorder 1, %s16
    %p416 = scmp.lt.s32.totalorder %s16, 5
    %p417 = pnand %p415, %p416
    %p418 = pneg %p417
    // Predicated region
    $region57: #{preact_basic.5} parent=5 // pred_check
      _
    $region58: #{preact_basic.5} parent=5 // pred_check_branch
      %420 = sbr.rel (%p417) target = $region60
    $region59: #{preact_basic.5} parent=5 // pred_region
      %s421 = ssub.s32 %s16, 1
      %p422 = pneg %p49
      %p423 = pneg %p46
      %p424 = pneg %p70
      %p425 = pneg %p67
      %s426 = smul.u32 %s26, 8
      %s427 = ssub.s32 %s426, 1
      %p428 = scmp.gt.s32.totalorder %s427, 0
      %s429 = scalar_select %p428, %s427, 0
      %p430 = scmp.lt.s32.totalorder %s25, 1
      %s431 = scalar_select %p430, %s25, 1
      %p432 = scmp.lt.s32.totalorder %s429, 15
      %s433 = scalar_select %p432, %s429, 15
      %s434 = smul.addr %s433, 2
      %s435 = smul.addr %s431, 32
      %s436 = sadd.s32 %s434, %s435
      %s437 = smul.addr %s436, 4
      %s438 = scalar_lea.vmem %s2, %s437
      %p439 = pneg %p106
      %p440 = pneg %p103
      %s441 = smul.u32 8, %s26
      %p442 = scmp.lt.s32.totalorder %s25, 1
      %s443 = scalar_select %p442, %s25, 1
      %p444 = scmp.lt.s32.totalorder %s441, 15
      %s445 = scalar_select %p444, %s441, 15
      %s446 = smul.addr %s445, 2
      %s447 = smul.addr %s443, 32
      %s448 = sadd.s32 %s446, %s447
      %s449 = smul.addr %s448, 4
      %s450 = scalar_lea.vmem %s3, %s449
      %p451 = pneg %p134
      %p452 = pneg %p131
      %s453 = smul.u32 %s26, 8
      %s454 = sadd.s32 %s453, 8
      %p455 = scmp.lt.s32.totalorder %s454, 15
      %s456 = scalar_select %p455, %s454, 15
      %p457 = scmp.lt.s32.totalorder %s25, 1
      %s458 = scalar_select %p457, %s25, 1
      %p459 = scmp.lt.s32.totalorder %s456, 15
      %s460 = scalar_select %p459, %s456, 15
      %s461 = smul.addr %s460, 2
      %s462 = smul.addr %s458, 32
      %s463 = sadd.s32 %s461, %s462
      %s464 = smul.addr %s463, 4
      %s465 = scalar_lea.vmem %s4, %s464
      %p466 = pneg %p170
      %p467 = pneg %p167
      %p468 = pneg %p191
      %p469 = pneg %p188
      %p470 = pneg %p212
      %p471 = pneg %p209
      %s472 = smul.u32 8, %s26
      %p473 = scmp.lt.s32.totalorder %s25, 1
      %s474 = scalar_select %p473, %s25, 1
      %p475 = scmp.lt.s32.totalorder %s472, 15
      %s476 = scalar_select %p475, %s472, 15
      %s477 = smul.addr %s476, 2
      %s478 = smul.addr %s474, 32
      %s479 = sadd.s32 %s477, %s478
      %s480 = smul.addr %s479, 8
      %s481 = scalar_lea.vmem %s7, %s480
      %p482 = pneg %p240
      %p483 = pneg %p237
      %p484 = pneg %p261
      %p485 = pneg %p258
      %p486 = pneg %p282
      %p487 = pneg %p279
      %p488 = pneg %p310
      %p489 = pneg %p307
      %s490 = smul.u32 8, %s26
      %p491 = scmp.lt.s32.totalorder %s25, 1
      %s492 = scalar_select %p491, %s25, 1
      %p493 = scmp.lt.s32.totalorder %s490, 15
      %s494 = scalar_select %p493, %s490, 15
      %s495 = smul.addr %s494, 2
      %s496 = smul.addr %s492, 32
      %s497 = sadd.s32 %s495, %s496
      %s498 = smul.addr %s497, 8
      %s499 = scalar_lea.vmem %s10, %s498
      %s500 = smul.u32 %s26, 8
      %s501 = ssub.s32 %s500, 1
      %p502 = scmp.gt.s32.totalorder %s501, 0
      %s503 = scalar_select %p502, %s501, 0
      %p504 = scmp.lt.s32.totalorder %s25, 1
      %s505 = scalar_select %p504, %s25, 1
      %p506 = scmp.lt.s32.totalorder %s503, 15
      %s507 = scalar_select %p506, %s503, 15
      %s508 = smul.addr %s507, 2
      %s509 = smul.addr %s505, 32
      %s510 = sadd.s32 %s508, %s509
      %s511 = smul.addr %s510, 4
      %s512 = scalar_lea.vmem %s2, %s511
      %s513 = smul.u32 %s26, 8
      %s514 = ssub.s32 %s513, 1
      %p515 = scmp.gt.s32.totalorder %s514, 0
      %s516 = scalar_select %p515, %s514, 0
      %s517 = smul.u32 8, %s26
      %p518 = scmp.lt.s32.totalorder %s25, 1
      %s519 = scalar_select %p518, %s25, 1
      %p520 = scmp.lt.s32.totalorder %s517, 15
      %s521 = scalar_select %p520, %s517, 15
      %s522 = smul.addr %s521, 2
      %s523 = smul.addr %s519, 32
      %s524 = sadd.s32 %s522, %s523
      %s525 = smul.addr %s524, 4
      %s526 = scalar_lea.vmem %s3, %s525
      %s527 = smul.u32 8, %s26
      %s528 = smul.u32 %s26, 8
      %s529 = sadd.s32 %s528, 8
      %p530 = scmp.lt.s32.totalorder %s529, 15
      %s531 = scalar_select %p530, %s529, 15
      %p532 = scmp.lt.s32.totalorder %s25, 1
      %s533 = scalar_select %p532, %s25, 1
      %p534 = scmp.lt.s32.totalorder %s531, 15
      %s535 = scalar_select %p534, %s531, 15
      %s536 = smul.addr %s535, 2
      %s537 = smul.addr %s533, 32
      %s538 = sadd.s32 %s536, %s537
      %s539 = smul.addr %s538, 4
      %s540 = scalar_lea.vmem %s4, %s539
      %s541 = smul.u32 %s26, 8
      %s542 = sadd.s32 %s541, 8
      %p543 = scmp.lt.s32.totalorder %s542, 15
      %s544 = scalar_select %p543, %s542, 15
      %s545 = smul.u32 8, %s26
      %p546 = scmp.lt.s32.totalorder %s25, 1
      %s547 = scalar_select %p546, %s25, 1
      %p548 = scmp.lt.s32.totalorder %s545, 15
      %s549 = scalar_select %p548, %s545, 15
      %s550 = smul.addr %s549, 2
      %s551 = smul.addr %s547, 32
      %s552 = sadd.s32 %s550, %s551
      %s553 = smul.addr %s552, 8
      %s554 = scalar_lea.vmem %s7, %s553
      %s555 = smul.u32 8, %s26
      %s556 = smul.u32 8, %s26
      %p557 = scmp.lt.s32.totalorder %s25, 1
      %s558 = scalar_select %p557, %s25, 1
      %p559 = scmp.lt.s32.totalorder %s556, 15
      %s560 = scalar_select %p559, %s556, 15
      %s561 = smul.addr %s560, 2
      %s562 = smul.addr %s558, 32
      %s563 = sadd.s32 %s561, %s562
      %s564 = smul.addr %s563, 8
      %s565 = scalar_lea.vmem %s10, %s564
      %s566 = smul.u32 8, %s26
      %v568 = vld [vmem:[%s0] sm:$0x1]
      %v569 = vld [vmem:[%s1] sm:$0x1]
      %vm570 = vcmask 57344
      %vm571 = vsmask.f32 256
      %vm572 = vmand %vm570, %vm571
      %v573 = vld [vmem:[#allocation2] sm:$0x1]
      %v574 = vsel %vm572, 0, %v573
      %575 = vst [vmem:[#allocation2] sm:$0x1] %v574
      %v576 = vld [vmem:[#allocation2 + $0xc] sm:$0x1]
      %v577 = vsel %vm572, 0, %v576
      %578 = vst [vmem:[#allocation2 + $0xc] sm:$0x1] %v577
      %v579 = vld [vmem:[#allocation2 + $0x18] sm:$0x1]
      %v580 = vsel %vm572, 0, %v579
      %581 = vst [vmem:[#allocation2 + $0x18] sm:$0x1] %v580
      %v582 = vld [vmem:[#allocation2 + $0x24] sm:$0x1]
      %v583 = vsel %vm572, 0, %v582
      %584 = vst [vmem:[#allocation2 + $0x24] sm:$0x1] %v583
      %v585 = vld [vmem:[#allocation2 + $0x30] sm:$0x1]
      %v586 = vsel %vm572, 0, %v585
      %587 = vst [vmem:[#allocation2 + $0x30] sm:$0x1] %v586
      %v588 = vld [vmem:[#allocation2 + $0x3c] sm:$0x1]
      %v589 = vsel %vm572, 0, %v588
      %590 = vst [vmem:[#allocation2 + $0x3c] sm:$0x1] %v589
      %v591 = vld [vmem:[#allocation2 + $0x48] sm:$0x1]
      %v592 = vsel %vm572, 0, %v591
      %593 = vst [vmem:[#allocation2 + $0x48] sm:$0x1] %v592
      %v594 = vld [vmem:[#allocation2 + $0x54] sm:$0x1]
      %v595 = vsel %vm572, 0, %v594
      %596 = vst [vmem:[#allocation2 + $0x54] sm:$0x1] %v595
      %v597 = vld [vmem:[#allocation2 + $0x60] sm:$0x1]
      %v598 = vsel %vm572, 0, %v597
      %599 = vst [vmem:[#allocation2 + $0x60] sm:$0x1] %v598
      %v600 = vld [vmem:[#allocation2 + $0x6c] sm:$0x1]
      %v601 = vsel %vm572, 0, %v600
      %602 = vst [vmem:[#allocation2 + $0x6c] sm:$0x1] %v601
      %vm603 = vsmask.f32 7938
      %vm604 = vmand %vm570, %vm603
      %v605 = vld [vmem:[#allocation2 + $0x8] sm:$0x1]
      %v606 = vsel %vm604, 0, %v605
      %607 = vst [vmem:[#allocation2 + $0x8] sm:$0x1] %v606
      %v608 = vld [vmem:[#allocation2 + $0x14] sm:$0x1]
      %v609 = vsel %vm604, 0, %v608
      %610 = vst [vmem:[#allocation2 + $0x14] sm:$0x1] %v609
      %v611 = vld [vmem:[#allocation2 + $0x20] sm:$0x1]
      %v612 = vsel %vm604, 0, %v611
      %613 = vst [vmem:[#allocation2 + $0x20] sm:$0x1] %v612
      %v614 = vld [vmem:[#allocation2 + $0x2c] sm:$0x1]
      %v615 = vsel %vm604, 0, %v614
      %616 = vst [vmem:[#allocation2 + $0x2c] sm:$0x1] %v615
      %v617 = vld [vmem:[#allocation2 + $0x38] sm:$0x1]
      %v618 = vsel %vm604, 0, %v617
      %619 = vst [vmem:[#allocation2 + $0x38] sm:$0x1] %v618
      %v620 = vld [vmem:[#allocation2 + $0x44] sm:$0x1]
      %v621 = vsel %vm604, 0, %v620
      %622 = vst [vmem:[#allocation2 + $0x44] sm:$0x1] %v621
      %v623 = vld [vmem:[#allocation2 + $0x50] sm:$0x1]
      %v624 = vsel %vm604, 0, %v623
      %625 = vst [vmem:[#allocation2 + $0x50] sm:$0x1] %v624
      %v626 = vld [vmem:[#allocation2 + $0x5c] sm:$0x1]
      %v627 = vsel %vm604, 0, %v626
      %628 = vst [vmem:[#allocation2 + $0x5c] sm:$0x1] %v627
      %v629 = vld [vmem:[#allocation2 + $0x68] sm:$0x1]
      %v630 = vsel %vm604, 0, %v629
      %631 = vst [vmem:[#allocation2 + $0x68] sm:$0x1] %v630
      %v632 = vld [vmem:[#allocation2 + $0x74] sm:$0x1]
      %v633 = vsel %vm604, 0, %v632
      %634 = vst [vmem:[#allocation2 + $0x74] sm:$0x1] %v633
      %v635 = vld [vmem:[%s526] sm:$0xf]
      %v636 = vld [vmem:[%s526 + $0x4] sm:$0xf]
      %v637 = vld [vmem:[%s526 + $0x8] sm:$0xf]
      %v638 = vld [vmem:[%s526 + $0xc] sm:$0xf]
      %v639 = vld [vmem:[%s526 + $0x10] sm:$0xf]
      %v640 = vld [vmem:[%s526 + $0x14] sm:$0xf]
      %v641 = vld [vmem:[%s526 + $0x18] sm:$0xf]
      %v642 = vld [vmem:[%s526 + $0x1c] sm:$0xf]
      %v643 = vld [vmem:[%s526 + $0x20] sm:$0xf]
      %v644 = vld [vmem:[%s526 + $0x24] sm:$0xf]
      %v645 = vld [vmem:[%s526 + $0x28] sm:$0xf]
      %v646 = vld [vmem:[%s526 + $0x2c] sm:$0xf]
      %v647 = vld [vmem:[%s526 + $0x30] sm:$0xf]
      %v648 = vld [vmem:[%s526 + $0x34] sm:$0xf]
      %v649 = vld [vmem:[%s526 + $0x38] sm:$0xf]
      %v650 = vld [vmem:[%s526 + $0x3c] sm:$0xf]
      %v651 = vunpack.c.l.bf16 %v635
      %v652 = vunpack.c.l.bf16 %v636
      %v653 = vunpack.c.l.bf16 %v637
      %v654 = vunpack.c.l.bf16 %v638
      %v655 = vunpack.c.l.bf16 %v639
      %v656 = vunpack.c.l.bf16 %v640
      %v657 = vunpack.c.l.bf16 %v641
      %v658 = vunpack.c.l.bf16 %v642
      %v659 = vunpack.c.l.bf16 %v643
      %v660 = vunpack.c.l.bf16 %v644
      %v661 = vunpack.c.l.bf16 %v645
      %v662 = vunpack.c.l.bf16 %v646
      %v663 = vunpack.c.l.bf16 %v647
      %v664 = vunpack.c.l.bf16 %v648
      %v665 = vunpack.c.l.bf16 %v649
      %v666 = vunpack.c.l.bf16 %v650
      %v668 = vlaneseq
      %v669 = vshrl.u32 %v668, 7
      %v670 = vsub.s32 0, %v669
      %v671 = vrot.slane %v568, %v670
      %v673 = vmul.f32 %v651, %v671
      %v674 = vmul.f32 %v652, %v671
      %v675 = vmul.f32 %v653, %v671
      %v676 = vmul.f32 %v654, %v671
      %v677 = vmul.f32 %v655, %v671
      %v678 = vmul.f32 %v656, %v671
      %v679 = vmul.f32 %v657, %v671
      %v680 = vmul.f32 %v658, %v671
      %v681 = vmul.f32 %v659, %v671
      %v682 = vmul.f32 %v660, %v671
      %v683 = vmul.f32 %v661, %v671
      %v684 = vmul.f32 %v662, %v671
      %v685 = vmul.f32 %v663, %v671
      %v686 = vmul.f32 %v664, %v671
      %v687 = vmul.f32 %v665, %v671
      %v688 = vmul.f32 %v666, %v671
      %v690 = vlaneseq
      %v691 = vshrl.u32 %v690, 7
      %v692 = vsub.s32 0, %v691
      %v693 = vrot.slane %v569, %v692
      %v695 = vadd.f32 %v673, %v693
      %v696 = vadd.f32 %v674, %v693
      %v697 = vadd.f32 %v675, %v693
      %v698 = vadd.f32 %v676, %v693
      %v699 = vadd.f32 %v677, %v693
      %v700 = vadd.f32 %v678, %v693
      %v701 = vadd.f32 %v679, %v693
      %v702 = vadd.f32 %v680, %v693
      %v703 = vadd.f32 %v681, %v693
      %v704 = vadd.f32 %v682, %v693
      %v705 = vadd.f32 %v683, %v693
      %v706 = vadd.f32 %v684, %v693
      %v707 = vadd.f32 %v685, %v693
      %v708 = vadd.f32 %v686, %v693
      %v709 = vadd.f32 %v687, %v693
      %v710 = vadd.f32 %v688, %v693
      %v711 = vmax.f32 %v695, 0.0
      %v712 = vmax.f32 %v696, 0.0
      %v713 = vmax.f32 %v697, 0.0
      %v714 = vmax.f32 %v698, 0.0
      %v715 = vmax.f32 %v699, 0.0
      %v716 = vmax.f32 %v700, 0.0
      %v717 = vmax.f32 %v701, 0.0
      %v718 = vmax.f32 %v702, 0.0
      %v719 = vmax.f32 %v703, 0.0
      %v720 = vmax.f32 %v704, 0.0
      %v721 = vmax.f32 %v705, 0.0
      %v722 = vmax.f32 %v706, 0.0
      %v723 = vmax.f32 %v707, 0.0
      %v724 = vmax.f32 %v708, 0.0
      %v725 = vmax.f32 %v709, 0.0
      %v726 = vmax.f32 %v710, 0.0
      %v727 = vpack.c.bf16 %v712, %v711
      %v728 = vpack.c.bf16 %v714, %v713
      %v729 = vpack.c.bf16 %v716, %v715
      %v730 = vpack.c.bf16 %v718, %v717
      %v731 = vpack.c.bf16 %v720, %v719
      %v732 = vpack.c.bf16 %v722, %v721
      %v733 = vpack.c.bf16 %v724, %v723
      %v734 = vpack.c.bf16 %v726, %v725
      %v743 = vunpack.c.l.b16 %v727
      %v744 = vunpack.c.h.b16 %v727
      %v745 = vunpack.c.l.b16 %v728
      %v746 = vunpack.c.h.b16 %v728
      %v747 = vunpack.c.l.b16 %v729
      %v748 = vunpack.c.h.b16 %v729
      %v749 = vunpack.c.l.b16 %v730
      %v750 = vunpack.c.h.b16 %v730
      %v751 = vunpack.c.l.b16 %v731
      %v752 = vunpack.c.h.b16 %v731
      %v753 = vunpack.c.l.b16 %v732
      %v754 = vunpack.c.h.b16 %v732
      %v755 = vunpack.c.l.b16 %v733
      %v756 = vunpack.c.h.b16 %v733
      %v757 = vunpack.c.l.b16 %v734
      %v758 = vunpack.c.h.b16 %v734
      %v759 = vpack.c.b16 %v743, %v743
      %v760 = vpack.c.b16 %v744, %v744
      %v761 = vpack.c.b16 %v745, %v745
      %v762 = vpack.c.b16 %v746, %v746
      %v763 = vpack.c.b16 %v747, %v747
      %v764 = vpack.c.b16 %v748, %v748
      %v765 = vpack.c.b16 %v749, %v749
      %v766 = vpack.c.b16 %v750, %v750
      %v767 = vpack.c.b16 %v751, %v751
      %v768 = vpack.c.b16 %v752, %v752
      %v769 = vpack.c.b16 %v753, %v753
      %v770 = vpack.c.b16 %v754, %v754
      %v771 = vpack.c.b16 %v755, %v755
      %v772 = vpack.c.b16 %v756, %v756
      %v773 = vpack.c.b16 %v757, %v757
      %v774 = vpack.c.b16 %v758, %v758
      %vm775 = vsmask.f32 4368
      %vm776 = vmor %vm571, %vm775
      %v778 = vshrl.u32 %v759, 16
      %v780 = vrot.slane %v778, 7
      %v781 = vshll.u32 %v759, 16
      %v783 = vor.u32 %v780, %v781
      %v784 = vrot.slane %v780, 4
      %v786 = vshrl.u32 %v760, 16
      %v788 = vrot.slane %v786, 7
      %v789 = vshll.u32 %v760, 16
      %v791 = vor.u32 %v788, %v789
      %v792 = vsel %vm776, %v784, %v791
      %v793 = vrot.slane %v788, 4
      %v795 = vshrl.u32 %v761, 16
      %v797 = vrot.slane %v795, 7
      %v798 = vshll.u32 %v761, 16
      %v800 = vor.u32 %v797, %v798
      %v801 = vrot.slane %v797, 4
      %v803 = vshrl.u32 %v762, 16
      %v805 = vrot.slane %v803, 7
      %v806 = vshll.u32 %v762, 16
      %v808 = vor.u32 %v805, %v806
      %v809 = vsel %vm776, %v801, %v808
      %v810 = vrot.slane %v805, 4
      %v812 = vshrl.u32 %v763, 16
      %v814 = vrot.slane %v812, 7
      %v815 = vshll.u32 %v763, 16
      %v817 = vor.u32 %v814, %v815
      %v818 = vrot.slane %v814, 4
      %v820 = vshrl.u32 %v764, 16
      %v822 = vrot.slane %v820, 7
      %v823 = vshll.u32 %v764, 16
      %v825 = vor.u32 %v822, %v823
      %v826 = vsel %vm776, %v818, %v825
      %v827 = vrot.slane %v822, 4
      %v829 = vshrl.u32 %v765, 16
      %v831 = vrot.slane %v829, 7
      %v832 = vshll.u32 %v765, 16
      %v834 = vor.u32 %v831, %v832
      %v835 = vrot.slane %v831, 4
      %v837 = vshrl.u32 %v766, 16
      %v839 = vrot.slane %v837, 7
      %v840 = vshll.u32 %v766, 16
      %v842 = vor.u32 %v839, %v840
      %v843 = vsel %vm776, %v835, %v842
      %v844 = vrot.slane %v839, 4
      %v846 = vshrl.u32 %v767, 16
      %v848 = vrot.slane %v846, 7
      %v849 = vshll.u32 %v767, 16
      %v851 = vor.u32 %v848, %v849
      %v852 = vrot.slane %v848, 4
      %v854 = vshrl.u32 %v768, 16
      %v856 = vrot.slane %v854, 7
      %v857 = vshll.u32 %v768, 16
      %v859 = vor.u32 %v856, %v857
      %v860 = vsel %vm776, %v852, %v859
      %v861 = vrot.slane %v856, 4
      %v863 = vshrl.u32 %v769, 16
      %v865 = vrot.slane %v863, 7
      %v866 = vshll.u32 %v769, 16
      %v868 = vor.u32 %v865, %v866
      %v869 = vrot.slane %v865, 4
      %v871 = vshrl.u32 %v770, 16
      %v873 = vrot.slane %v871, 7
      %v874 = vshll.u32 %v770, 16
      %v876 = vor.u32 %v873, %v874
      %v877 = vsel %vm776, %v869, %v876
      %v878 = vrot.slane %v873, 4
      %v880 = vshrl.u32 %v771, 16
      %v882 = vrot.slane %v880, 7
      %v883 = vshll.u32 %v771, 16
      %v885 = vor.u32 %v882, %v883
      %v886 = vrot.slane %v882, 4
      %v888 = vshrl.u32 %v772, 16
      %v890 = vrot.slane %v888, 7
      %v891 = vshll.u32 %v772, 16
      %v893 = vor.u32 %v890, %v891
      %v894 = vsel %vm776, %v886, %v893
      %v895 = vrot.slane %v890, 4
      %v897 = vshrl.u32 %v773, 16
      %v899 = vrot.slane %v897, 7
      %v900 = vshll.u32 %v773, 16
      %v902 = vor.u32 %v899, %v900
      %v903 = vrot.slane %v899, 4
      %v905 = vshrl.u32 %v774, 16
      %v907 = vrot.slane %v905, 7
      %v908 = vshll.u32 %v774, 16
      %v910 = vor.u32 %v907, %v908
      %v911 = vsel %vm776, %v903, %v910
      %v912 = vrot.slane %v907, 4
      %s937 = scalar_lea.vmem [#allocation2], 12
      %vm938 = vcmask 60416
      %vm939 = vmand %vm938, %vm603
      %v940 = vld [vmem:[%s937] sm:$0xf]
      %v941 = vsel %vm939, %v783, %v940
      %942 = vst [vmem:[%s937] sm:$0xf] %v941
      %vm943 = vcmask 60416
      %944 = vst.msk [vmem:[%s937 + $0x4] sm:$0xf] %vm943, %v792
      %v945 = vld [vmem:[%s937 + $0x8] sm:$0x1]
      %v946 = vsel %vm572, %v793, %v945
      %947 = vst [vmem:[%s937 + $0x8] sm:$0x1] %v946
      %v948 = vld [vmem:[%s937 + $0xc] sm:$0xf]
      %v949 = vsel %vm939, %v800, %v948
      %950 = vst [vmem:[%s937 + $0xc] sm:$0xf] %v949
      %951 = vst.msk [vmem:[%s937 + $0x10] sm:$0xf] %vm943, %v809
      %v952 = vld [vmem:[%s937 + $0x14] sm:$0x1]
      %v953 = vsel %vm572, %v810, %v952
      %954 = vst [vmem:[%s937 + $0x14] sm:$0x1] %v953
      %v955 = vld [vmem:[%s937 + $0x18] sm:$0xf]
      %v956 = vsel %vm939, %v817, %v955
      %957 = vst [vmem:[%s937 + $0x18] sm:$0xf] %v956
      %958 = vst.msk [vmem:[%s937 + $0x1c] sm:$0xf] %vm943, %v826
      %v959 = vld [vmem:[%s937 + $0x20] sm:$0x1]
      %v960 = vsel %vm572, %v827, %v959
      %961 = vst [vmem:[%s937 + $0x20] sm:$0x1] %v960
      %v962 = vld [vmem:[%s937 + $0x24] sm:$0xf]
      %v963 = vsel %vm939, %v834, %v962
      %964 = vst [vmem:[%s937 + $0x24] sm:$0xf] %v963
      %965 = vst.msk [vmem:[%s937 + $0x28] sm:$0xf] %vm943, %v843
      %v966 = vld [vmem:[%s937 + $0x2c] sm:$0x1]
      %v967 = vsel %vm572, %v844, %v966
      %968 = vst [vmem:[%s937 + $0x2c] sm:$0x1] %v967
      %v969 = vld [vmem:[%s937 + $0x30] sm:$0xf]
      %v970 = vsel %vm939, %v851, %v969
      %971 = vst [vmem:[%s937 + $0x30] sm:$0xf] %v970
      %972 = vst.msk [vmem:[%s937 + $0x34] sm:$0xf] %vm943, %v860
      %v973 = vld [vmem:[%s937 + $0x38] sm:$0x1]
      %v974 = vsel %vm572, %v861, %v973
      %975 = vst [vmem:[%s937 + $0x38] sm:$0x1] %v974
      %v976 = vld [vmem:[%s937 + $0x3c] sm:$0xf]
      %v977 = vsel %vm939, %v868, %v976
      %978 = vst [vmem:[%s937 + $0x3c] sm:$0xf] %v977
      %979 = vst.msk [vmem:[%s937 + $0x40] sm:$0xf] %vm943, %v877
      %v980 = vld [vmem:[%s937 + $0x44] sm:$0x1]
      %v981 = vsel %vm572, %v878, %v980
      %982 = vst [vmem:[%s937 + $0x44] sm:$0x1] %v981
      %v983 = vld [vmem:[%s937 + $0x48] sm:$0xf]
      %v984 = vsel %vm939, %v885, %v983
      %985 = vst [vmem:[%s937 + $0x48] sm:$0xf] %v984
      %986 = vst.msk [vmem:[%s937 + $0x4c] sm:$0xf] %vm943, %v894
      %v987 = vld [vmem:[%s937 + $0x50] sm:$0x1]
      %v988 = vsel %vm572, %v895, %v987
      %989 = vst [vmem:[%s937 + $0x50] sm:$0x1] %v988
      %v990 = vld [vmem:[%s937 + $0x54] sm:$0xf]
      %v991 = vsel %vm939, %v902, %v990
      %992 = vst [vmem:[%s937 + $0x54] sm:$0xf] %v991
      %993 = vst.msk [vmem:[%s937 + $0x58] sm:$0xf] %vm943, %v911
      %v994 = vld [vmem:[%s937 + $0x5c] sm:$0x1]
      %v995 = vsel %vm572, %v912, %v994
      %996 = vst [vmem:[%s937 + $0x5c] sm:$0x1] %v995
      %v997 = vld [vmem:[%s512] sm:$0xf]
      %v998 = vld [vmem:[%s512 + $0x4] sm:$0xf]
      %v999 = vunpack.c.l.bf16 %v997
      %v1000 = vunpack.c.l.bf16 %v998
      %v1001 = vmul.f32 %v999, %v671
      %v1002 = vmul.f32 %v1000, %v671
      %v1003 = vadd.f32 %v1001, %v693
      %v1004 = vadd.f32 %v1002, %v693
      %v1005 = vmax.f32 %v1003, 0.0
      %v1006 = vmax.f32 %v1004, 0.0
      %p1007 = scmp.gt.s32.totalorder %s26, 0
      %s1008 = scalar_select %p1007, 1, 0
      %s1009 = scvt.s32.f32 %s1008
      %v1010 = vstv %s1009
      %v1011 = vmul.f32 %v1005, %v1010
      %v1012 = vmul.f32 %v1006, %v1010
      %v1013 = vpack.c.bf16 %v1012, %v1011
      %v1015 = vunpack.c.l.b16 %v1013
      %v1016 = vunpack.c.h.b16 %v1013
      %v1017 = vpack.c.b16 %v1015, %v1015
      %v1018 = vpack.c.b16 %v1016, %v1016
      %v1020 = vshrl.u32 %v1017, 16
      %v1022 = vrot.slane %v1020, 7
      %v1023 = vshll.u32 %v1017, 16
      %v1025 = vor.u32 %v1022, %v1023
      %v1026 = vrot.slane %v1022, 4
      %v1028 = vshrl.u32 %v1018, 16
      %v1030 = vrot.slane %v1028, 7
      %v1031 = vshll.u32 %v1018, 16
      %v1033 = vor.u32 %v1030, %v1031
      %v1034 = vsel %vm776, %v1026, %v1033
      %v1035 = vrot.slane %v1030, 4
      %v1039 = vld [vmem:[#allocation2] sm:$0xf]
      %v1040 = vsel %vm939, %v1025, %v1039
      %1041 = vst [vmem:[#allocation2] sm:$0xf] %v1040
      %1042 = vst.msk [vmem:[#allocation2 + $0x4] sm:$0xf] %vm943, %v1034
      %v1043 = vld [vmem:[#allocation2 + $0x8] sm:$0x1]
      %v1044 = vsel %vm572, %v1035, %v1043
      %1045 = vst [vmem:[#allocation2 + $0x8] sm:$0x1] %v1044
      %v1046 = vld [vmem:[%s540] sm:$0xf]
      %v1047 = vld [vmem:[%s540 + $0x4] sm:$0xf]
      %v1048 = vunpack.c.l.bf16 %v1046
      %v1049 = vunpack.c.l.bf16 %v1047
      %v1050 = vmul.f32 %v1048, %v671
      %v1051 = vmul.f32 %v1049, %v671
      %v1052 = vadd.f32 %v1050, %v693
      %v1053 = vadd.f32 %v1051, %v693
      %v1054 = vmax.f32 %v1052, 0.0
      %v1055 = vmax.f32 %v1053, 0.0
      %p1056 = scmp.lt.s32.totalorder %s26, 1
      %s1057 = scalar_select %p1056, 1, 0
      %s1058 = scvt.s32.f32 %s1057
      %v1059 = vstv %s1058
      %v1060 = vmul.f32 %v1054, %v1059
      %v1061 = vmul.f32 %v1055, %v1059
      %v1062 = vpack.c.bf16 %v1061, %v1060
      %v1064 = vunpack.c.l.b16 %v1062
      %v1065 = vunpack.c.h.b16 %v1062
      %v1066 = vpack.c.b16 %v1064, %v1064
      %v1067 = vpack.c.b16 %v1065, %v1065
      %v1069 = vshrl.u32 %v1066, 16
      %v1071 = vrot.slane %v1069, 7
      %v1072 = vshll.u32 %v1066, 16
      %v1074 = vor.u32 %v1071, %v1072
      %v1075 = vrot.slane %v1071, 4
      %v1077 = vshrl.u32 %v1067, 16
      %v1079 = vrot.slane %v1077, 7
      %v1080 = vshll.u32 %v1067, 16
      %v1082 = vor.u32 %v1079, %v1080
      %v1083 = vsel %vm776, %v1075, %v1082
      %v1084 = vrot.slane %v1079, 4
      %s1088 = scalar_lea.vmem [#allocation2], 108
      %v1089 = vld [vmem:[%s1088] sm:$0xf]
      %v1090 = vsel %vm939, %v1074, %v1089
      %1091 = vst [vmem:[%s1088] sm:$0xf] %v1090
      %1092 = vst.msk [vmem:[%s1088 + $0x4] sm:$0xf] %vm943, %v1083
      %v1093 = vld [vmem:[%s1088 + $0x8] sm:$0x1]
      %v1094 = vsel %vm572, %v1084, %v1093
      %1095 = vst [vmem:[%s1088 + $0x8] sm:$0x1] %v1094
      %v1096 = vld [vmem:[#allocation2] sm:$0xf]
      %v1097 = vld [vmem:[#allocation2 + $0x4] sm:$0xf]
      %v1098 = vld [vmem:[#allocation2 + $0xc] sm:$0xf]
      %v1099 = vld [vmem:[#allocation2 + $0x10] sm:$0xf]
      %v1100 = vld [vmem:[#allocation2 + $0x18] sm:$0xf]
      %v1101 = vld [vmem:[#allocation2 + $0x1c] sm:$0xf]
      %v1102 = vld [vmem:[#allocation2 + $0x24] sm:$0xf]
      %v1103 = vld [vmem:[#allocation2 + $0x28] sm:$0xf]
      %v1104 = vld [vmem:[#allocation2 + $0x30] sm:$0xf]
      %v1105 = vld [vmem:[#allocation2 + $0x34] sm:$0xf]
      %v1106 = vld [vmem:[#allocation2 + $0x3c] sm:$0xf]
      %v1107 = vld [vmem:[#allocation2 + $0x40] sm:$0xf]
      %v1108 = vld [vmem:[#allocation2 + $0x48] sm:$0xf]
      %v1109 = vld [vmem:[#allocation2 + $0x4c] sm:$0xf]
      %v1110 = vld [vmem:[#allocation2 + $0x54] sm:$0xf]
      %v1111 = vld [vmem:[#allocation2 + $0x58] sm:$0xf]
      %v1112 = vld [vmem:[#allocation2 + $0x8] sm:$0x1]
      %v1113 = vld [vmem:[#allocation2 + $0x14] sm:$0x1]
      %v1114 = vld [vmem:[#allocation2 + $0x20] sm:$0x1]
      %v1115 = vld [vmem:[#allocation2 + $0x2c] sm:$0x1]
      %v1116 = vld [vmem:[#allocation2 + $0x38] sm:$0x1]
      %v1117 = vld [vmem:[#allocation2 + $0x44] sm:$0x1]
      %v1118 = vld [vmem:[#allocation2 + $0x50] sm:$0x1]
      %v1119 = vld [vmem:[#allocation2 + $0x5c] sm:$0x1]
      %vm1120 = vsmask.f32 3328
      %vm1121 = vsmask.f32 7440
      %vm1122 = vmor %vm1120, %vm1121
      %v1124 = vshrl.u32 %v1096, 16
      %v1126 = vrot.slane %v1124, 4
      %v1127 = vshll.u32 %v1096, 16
      %v1129 = vrot.slane %v1127, 5
      %v1130 = vor.u32 %v1126, %v1129
      %v1131 = vrot.slane %v1130, 4
      %v1133 = vshll.u32 %v1097, 16
      %v1135 = vrot.slane %v1133, 5
      %v1136 = vsel %vm1122, %v1131, %v1135
      %v1137 = vshrl.u32 %v1097, 16
      %v1139 = vrot.slane %v1137, 4
      %v1140 = vor.u32 %v1139, %v1135
      %v1141 = vrot.slane %v1140, 4
      %v1143 = vshll.u32 %v1112, 16
      %v1145 = vrot.slane %v1143, 5
      %v1146 = vsel %vm1122, %v1141, %v1145
      %v1148 = vshrl.u32 %v1098, 16
      %v1150 = vrot.slane %v1148, 4
      %v1151 = vshll.u32 %v1098, 16
      %v1153 = vrot.slane %v1151, 5
      %v1154 = vor.u32 %v1150, %v1153
      %v1155 = vrot.slane %v1154, 4
      %v1157 = vshll.u32 %v1099, 16
      %v1159 = vrot.slane %v1157, 5
      %v1160 = vsel %vm1122, %v1155, %v1159
      %v1161 = vshrl.u32 %v1099, 16
      %v1163 = vrot.slane %v1161, 4
      %v1164 = vor.u32 %v1163, %v1159
      %v1165 = vrot.slane %v1164, 4
      %v1167 = vshll.u32 %v1113, 16
      %v1169 = vrot.slane %v1167, 5
      %v1170 = vsel %vm1122, %v1165, %v1169
      %v1172 = vshrl.u32 %v1100, 16
      %v1174 = vrot.slane %v1172, 4
      %v1175 = vshll.u32 %v1100, 16
      %v1177 = vrot.slane %v1175, 5
      %v1178 = vor.u32 %v1174, %v1177
      %v1179 = vrot.slane %v1178, 4
      %v1181 = vshll.u32 %v1101, 16
      %v1183 = vrot.slane %v1181, 5
      %v1184 = vsel %vm1122, %v1179, %v1183
      %v1185 = vshrl.u32 %v1101, 16
      %v1187 = vrot.slane %v1185, 4
      %v1188 = vor.u32 %v1187, %v1183
      %v1189 = vrot.slane %v1188, 4
      %v1191 = vshll.u32 %v1114, 16
      %v1193 = vrot.slane %v1191, 5
      %v1194 = vsel %vm1122, %v1189, %v1193
      %v1196 = vshrl.u32 %v1102, 16
      %v1198 = vrot.slane %v1196, 4
      %v1199 = vshll.u32 %v1102, 16
      %v1201 = vrot.slane %v1199, 5
      %v1202 = vor.u32 %v1198, %v1201
      %v1203 = vrot.slane %v1202, 4
      %v1205 = vshll.u32 %v1103, 16
      %v1207 = vrot.slane %v1205, 5
      %v1208 = vsel %vm1122, %v1203, %v1207
      %v1209 = vshrl.u32 %v1103, 16
      %v1211 = vrot.slane %v1209, 4
      %v1212 = vor.u32 %v1211, %v1207
      %v1213 = vrot.slane %v1212, 4
      %v1215 = vshll.u32 %v1115, 16
      %v1217 = vrot.slane %v1215, 5
      %v1218 = vsel %vm1122, %v1213, %v1217
      %v1220 = vshrl.u32 %v1104, 16
      %v1222 = vrot.slane %v1220, 4
      %v1223 = vshll.u32 %v1104, 16
      %v1225 = vrot.slane %v1223, 5
      %v1226 = vor.u32 %v1222, %v1225
      %v1227 = vrot.slane %v1226, 4
      %v1229 = vshll.u32 %v1105, 16
      %v1231 = vrot.slane %v1229, 5
      %v1232 = vsel %vm1122, %v1227, %v1231
      %v1233 = vshrl.u32 %v1105, 16
      %v1235 = vrot.slane %v1233, 4
      %v1236 = vor.u32 %v1235, %v1231
      %v1237 = vrot.slane %v1236, 4
      %v1239 = vshll.u32 %v1116, 16
      %v1241 = vrot.slane %v1239, 5
      %v1242 = vsel %vm1122, %v1237, %v1241
      %v1244 = vshrl.u32 %v1106, 16
      %v1246 = vrot.slane %v1244, 4
      %v1247 = vshll.u32 %v1106, 16
      %v1249 = vrot.slane %v1247, 5
      %v1250 = vor.u32 %v1246, %v1249
      %v1251 = vrot.slane %v1250, 4
      %v1253 = vshll.u32 %v1107, 16
      %v1255 = vrot.slane %v1253, 5
      %v1256 = vsel %vm1122, %v1251, %v1255
      %v1257 = vshrl.u32 %v1107, 16
      %v1259 = vrot.slane %v1257, 4
      %v1260 = vor.u32 %v1259, %v1255
      %v1261 = vrot.slane %v1260, 4
      %v1263 = vshll.u32 %v1117, 16
      %v1265 = vrot.slane %v1263, 5
      %v1266 = vsel %vm1122, %v1261, %v1265
      %v1268 = vshrl.u32 %v1108, 16
      %v1270 = vrot.slane %v1268, 4
      %v1271 = vshll.u32 %v1108, 16
      %v1273 = vrot.slane %v1271, 5
      %v1274 = vor.u32 %v1270, %v1273
      %v1275 = vrot.slane %v1274, 4
      %v1277 = vshll.u32 %v1109, 16
      %v1279 = vrot.slane %v1277, 5
      %v1280 = vsel %vm1122, %v1275, %v1279
      %v1281 = vshrl.u32 %v1109, 16
      %v1283 = vrot.slane %v1281, 4
      %v1284 = vor.u32 %v1283, %v1279
      %v1285 = vrot.slane %v1284, 4
      %v1287 = vshll.u32 %v1118, 16
      %v1289 = vrot.slane %v1287, 5
      %v1290 = vsel %vm1122, %v1285, %v1289
      %v1292 = vshrl.u32 %v1110, 16
      %v1294 = vrot.slane %v1292, 4
      %v1295 = vshll.u32 %v1110, 16
      %v1297 = vrot.slane %v1295, 5
      %v1298 = vor.u32 %v1294, %v1297
      %v1299 = vrot.slane %v1298, 4
      %v1301 = vshll.u32 %v1111, 16
      %v1303 = vrot.slane %v1301, 5
      %v1304 = vsel %vm1122, %v1299, %v1303
      %v1305 = vshrl.u32 %v1111, 16
      %v1307 = vrot.slane %v1305, 4
      %v1308 = vor.u32 %v1307, %v1303
      %v1309 = vrot.slane %v1308, 4
      %v1311 = vshll.u32 %v1119, 16
      %v1313 = vrot.slane %v1311, 5
      %v1314 = vsel %vm1122, %v1309, %v1313
      %v1315 = vld [vmem:[#allocation2] sm:$0xe]
      %v1316 = vld [vmem:[#allocation2 + $0xc] sm:$0xe]
      %v1317 = vld [vmem:[#allocation2 + $0x18] sm:$0xe]
      %v1318 = vld [vmem:[#allocation2 + $0x24] sm:$0xe]
      %v1319 = vld [vmem:[#allocation2 + $0x30] sm:$0xe]
      %v1320 = vld [vmem:[#allocation2 + $0x3c] sm:$0xe]
      %v1321 = vld [vmem:[#allocation2 + $0x48] sm:$0xe]
      %v1322 = vld [vmem:[#allocation2 + $0x54] sm:$0xe]
      %vm1347 = vcmask 1042432
      %vm1348 = vcmask 1046532
      %vm1349 = vmor %vm1347, %vm1348
      %v1350 = vrot.slane %v1315, 5
      %v1351 = vrot.slane %v1350, 4
      %v1352 = vrot.slane %v1097, 5
      %v1353 = vsel %vm1349, %v1351, %v1352
      %v1354 = vrot.slane %v1352, 4
      %v1355 = vrot.slane %v1112, 5
      %v1356 = vsel %vm1349, %v1354, %v1355
      %v1357 = vrot.slane %v1316, 5
      %v1358 = vrot.slane %v1357, 4
      %v1359 = vrot.slane %v1099, 5
      %v1360 = vsel %vm1349, %v1358, %v1359
      %v1361 = vrot.slane %v1359, 4
      %v1362 = vrot.slane %v1113, 5
      %v1363 = vsel %vm1349, %v1361, %v1362
      %v1364 = vrot.slane %v1317, 5
      %v1365 = vrot.slane %v1364, 4
      %v1366 = vrot.slane %v1101, 5
      %v1367 = vsel %vm1349, %v1365, %v1366
      %v1368 = vrot.slane %v1366, 4
      %v1369 = vrot.slane %v1114, 5
      %v1370 = vsel %vm1349, %v1368, %v1369
      %v1371 = vrot.slane %v1318, 5
      %v1372 = vrot.slane %v1371, 4
      %v1373 = vrot.slane %v1103, 5
      %v1374 = vsel %vm1349, %v1372, %v1373
      %v1375 = vrot.slane %v1373, 4
      %v1376 = vrot.slane %v1115, 5
      %v1377 = vsel %vm1349, %v1375, %v1376
      %v1378 = vrot.slane %v1319, 5
      %v1379 = vrot.slane %v1378, 4
      %v1380 = vrot.slane %v1105, 5
      %v1381 = vsel %vm1349, %v1379, %v1380
      %v1382 = vrot.slane %v1380, 4
      %v1383 = vrot.slane %v1116, 5
      %v1384 = vsel %vm1349, %v1382, %v1383
      %v1385 = vrot.slane %v1320, 5
      %v1386 = vrot.slane %v1385, 4
      %v1387 = vrot.slane %v1107, 5
      %v1388 = vsel %vm1349, %v1386, %v1387
      %v1389 = vrot.slane %v1387, 4
      %v1390 = vrot.slane %v1117, 5
      %v1391 = vsel %vm1349, %v1389, %v1390
      %v1392 = vrot.slane %v1321, 5
      %v1393 = vrot.slane %v1392, 4
      %v1394 = vrot.slane %v1109, 5
      %v1395 = vsel %vm1349, %v1393, %v1394
      %v1396 = vrot.slane %v1394, 4
      %v1397 = vrot.slane %v1118, 5
      %v1398 = vsel %vm1349, %v1396, %v1397
      %v1399 = vrot.slane %v1322, 5
      %v1400 = vrot.slane %v1399, 4
      %v1401 = vrot.slane %v1111, 5
      %v1402 = vsel %vm1349, %v1400, %v1401
      %v1403 = vrot.slane %v1401, 4
      %v1404 = vrot.slane %v1119, 5
      %v1405 = vsel %vm1349, %v1403, %v1404
      %v1406 = vld [vmem:[%s937] sm:$0xf]
      %v1407 = vld [vmem:[%s937 + $0x4] sm:$0xf]
      %v1408 = vld [vmem:[%s937 + $0xc] sm:$0xf]
      %v1409 = vld [vmem:[%s937 + $0x10] sm:$0xf]
      %v1410 = vld [vmem:[%s937 + $0x18] sm:$0xf]
      %v1411 = vld [vmem:[%s937 + $0x1c] sm:$0xf]
      %v1412 = vld [vmem:[%s937 + $0x24] sm:$0xf]
      %v1413 = vld [vmem:[%s937 + $0x28] sm:$0xf]
      %v1414 = vld [vmem:[%s937 + $0x30] sm:$0xf]
      %v1415 = vld [vmem:[%s937 + $0x34] sm:$0xf]
      %v1416 = vld [vmem:[%s937 + $0x3c] sm:$0xf]
      %v1417 = vld [vmem:[%s937 + $0x40] sm:$0xf]
      %v1418 = vld [vmem:[%s937 + $0x48] sm:$0xf]
      %v1419 = vld [vmem:[%s937 + $0x4c] sm:$0xf]
      %v1420 = vld [vmem:[%s937 + $0x54] sm:$0xf]
      %v1421 = vld [vmem:[%s937 + $0x58] sm:$0xf]
      %v1422 = vld [vmem:[%s937 + $0x8] sm:$0x1]
      %v1423 = vld [vmem:[%s937 + $0x14] sm:$0x1]
      %v1424 = vld [vmem:[%s937 + $0x20] sm:$0x1]
      %v1425 = vld [vmem:[%s937 + $0x2c] sm:$0x1]
      %v1426 = vld [vmem:[%s937 + $0x38] sm:$0x1]
      %v1427 = vld [vmem:[%s937 + $0x44] sm:$0x1]
      %v1428 = vld [vmem:[%s937 + $0x50] sm:$0x1]
      %v1429 = vld [vmem:[%s937 + $0x5c] sm:$0x1]
      %v1431 = vshrl.u32 %v1406, 16
      %v1433 = vrot.slane %v1431, 4
      %v1434 = vshll.u32 %v1406, 16
      %v1436 = vrot.slane %v1434, 5
      %v1437 = vor.u32 %v1433, %v1436
      %v1438 = vrot.slane %v1437, 4
      %v1440 = vshll.u32 %v1407, 16
      %v1442 = vrot.slane %v1440, 5
      %v1443 = vsel %vm1122, %v1438, %v1442
      %v1444 = vshrl.u32 %v1407, 16
      %v1446 = vrot.slane %v1444, 4
      %v1447 = vor.u32 %v1446, %v1442
      %v1448 = vrot.slane %v1447, 4
      %v1450 = vshll.u32 %v1422, 16
      %v1452 = vrot.slane %v1450, 5
      %v1453 = vsel %vm1122, %v1448, %v1452
      %v1455 = vshrl.u32 %v1408, 16
      %v1457 = vrot.slane %v1455, 4
      %v1458 = vshll.u32 %v1408, 16
      %v1460 = vrot.slane %v1458, 5
      %v1461 = vor.u32 %v1457, %v1460
      %v1462 = vrot.slane %v1461, 4
      %v1464 = vshll.u32 %v1409, 16
      %v1466 = vrot.slane %v1464, 5
      %v1467 = vsel %vm1122, %v1462, %v1466
      %v1468 = vshrl.u32 %v1409, 16
      %v1470 = vrot.slane %v1468, 4
      %v1471 = vor.u32 %v1470, %v1466
      %v1472 = vrot.slane %v1471, 4
      %v1474 = vshll.u32 %v1423, 16
      %v1476 = vrot.slane %v1474, 5
      %v1477 = vsel %vm1122, %v1472, %v1476
      %v1479 = vshrl.u32 %v1410, 16
      %v1481 = vrot.slane %v1479, 4
      %v1482 = vshll.u32 %v1410, 16
      %v1484 = vrot.slane %v1482, 5
      %v1485 = vor.u32 %v1481, %v1484
      %v1486 = vrot.slane %v1485, 4
      %v1488 = vshll.u32 %v1411, 16
      %v1490 = vrot.slane %v1488, 5
      %v1491 = vsel %vm1122, %v1486, %v1490
      %v1492 = vshrl.u32 %v1411, 16
      %v1494 = vrot.slane %v1492, 4
      %v1495 = vor.u32 %v1494, %v1490
      %v1496 = vrot.slane %v1495, 4
      %v1498 = vshll.u32 %v1424, 16
      %v1500 = vrot.slane %v1498, 5
      %v1501 = vsel %vm1122, %v1496, %v1500
      %v1503 = vshrl.u32 %v1412, 16
      %v1505 = vrot.slane %v1503, 4
      %v1506 = vshll.u32 %v1412, 16
      %v1508 = vrot.slane %v1506, 5
      %v1509 = vor.u32 %v1505, %v1508
      %v1510 = vrot.slane %v1509, 4
      %v1512 = vshll.u32 %v1413, 16
      %v1514 = vrot.slane %v1512, 5
      %v1515 = vsel %vm1122, %v1510, %v1514
      %v1516 = vshrl.u32 %v1413, 16
      %v1518 = vrot.slane %v1516, 4
      %v1519 = vor.u32 %v1518, %v1514
      %v1520 = vrot.slane %v1519, 4
      %v1522 = vshll.u32 %v1425, 16
      %v1524 = vrot.slane %v1522, 5
      %v1525 = vsel %vm1122, %v1520, %v1524
      %v1527 = vshrl.u32 %v1414, 16
      %v1529 = vrot.slane %v1527, 4
      %v1530 = vshll.u32 %v1414, 16
      %v1532 = vrot.slane %v1530, 5
      %v1533 = vor.u32 %v1529, %v1532
      %v1534 = vrot.slane %v1533, 4
      %v1536 = vshll.u32 %v1415, 16
      %v1538 = vrot.slane %v1536, 5
      %v1539 = vsel %vm1122, %v1534, %v1538
      %v1540 = vshrl.u32 %v1415, 16
      %v1542 = vrot.slane %v1540, 4
      %v1543 = vor.u32 %v1542, %v1538
      %v1544 = vrot.slane %v1543, 4
      %v1546 = vshll.u32 %v1426, 16
      %v1548 = vrot.slane %v1546, 5
      %v1549 = vsel %vm1122, %v1544, %v1548
      %v1551 = vshrl.u32 %v1416, 16
      %v1553 = vrot.slane %v1551, 4
      %v1554 = vshll.u32 %v1416, 16
      %v1556 = vrot.slane %v1554, 5
      %v1557 = vor.u32 %v1553, %v1556
      %v1558 = vrot.slane %v1557, 4
      %v1560 = vshll.u32 %v1417, 16
      %v1562 = vrot.slane %v1560, 5
      %v1563 = vsel %vm1122, %v1558, %v1562
      %v1564 = vshrl.u32 %v1417, 16
      %v1566 = vrot.slane %v1564, 4
      %v1567 = vor.u32 %v1566, %v1562
      %v1568 = vrot.slane %v1567, 4
      %v1570 = vshll.u32 %v1427, 16
      %v1572 = vrot.slane %v1570, 5
      %v1573 = vsel %vm1122, %v1568, %v1572
      %v1575 = vshrl.u32 %v1418, 16
      %v1577 = vrot.slane %v1575, 4
      %v1578 = vshll.u32 %v1418, 16
      %v1580 = vrot.slane %v1578, 5
      %v1581 = vor.u32 %v1577, %v1580
      %v1582 = vrot.slane %v1581, 4
      %v1584 = vshll.u32 %v1419, 16
      %v1586 = vrot.slane %v1584, 5
      %v1587 = vsel %vm1122, %v1582, %v1586
      %v1588 = vshrl.u32 %v1419, 16
      %v1590 = vrot.slane %v1588, 4
      %v1591 = vor.u32 %v1590, %v1586
      %v1592 = vrot.slane %v1591, 4
      %v1594 = vshll.u32 %v1428, 16
      %v1596 = vrot.slane %v1594, 5
      %v1597 = vsel %vm1122, %v1592, %v1596
      %v1599 = vshrl.u32 %v1420, 16
      %v1601 = vrot.slane %v1599, 4
      %v1602 = vshll.u32 %v1420, 16
      %v1604 = vrot.slane %v1602, 5
      %v1605 = vor.u32 %v1601, %v1604
      %v1606 = vrot.slane %v1605, 4
      %v1608 = vshll.u32 %v1421, 16
      %v1610 = vrot.slane %v1608, 5
      %v1611 = vsel %vm1122, %v1606, %v1610
      %v1612 = vshrl.u32 %v1421, 16
      %v1614 = vrot.slane %v1612, 4
      %v1615 = vor.u32 %v1614, %v1610
      %v1616 = vrot.slane %v1615, 4
      %v1618 = vshll.u32 %v1429, 16
      %v1620 = vrot.slane %v1618, 5
      %v1621 = vsel %vm1122, %v1616, %v1620
      %v1622 = vld [vmem:[%s937] sm:$0xe]
      %v1623 = vld [vmem:[%s937 + $0xc] sm:$0xe]
      %v1624 = vld [vmem:[%s937 + $0x18] sm:$0xe]
      %v1625 = vld [vmem:[%s937 + $0x24] sm:$0xe]
      %v1626 = vld [vmem:[%s937 + $0x30] sm:$0xe]
      %v1627 = vld [vmem:[%s937 + $0x3c] sm:$0xe]
      %v1628 = vld [vmem:[%s937 + $0x48] sm:$0xe]
      %v1629 = vld [vmem:[%s937 + $0x54] sm:$0xe]
      %v1654 = vrot.slane %v1622, 5
      %v1655 = vrot.slane %v1654, 4
      %v1656 = vrot.slane %v1407, 5
      %v1657 = vsel %vm1349, %v1655, %v1656
      %v1658 = vrot.slane %v1656, 4
      %v1659 = vrot.slane %v1422, 5
      %v1660 = vsel %vm1349, %v1658, %v1659
      %v1661 = vrot.slane %v1623, 5
      %v1662 = vrot.slane %v1661, 4
      %v1663 = vrot.slane %v1409, 5
      %v1664 = vsel %vm1349, %v1662, %v1663
      %v1665 = vrot.slane %v1663, 4
      %v1666 = vrot.slane %v1423, 5
      %v1667 = vsel %vm1349, %v1665, %v1666
      %v1668 = vrot.slane %v1624, 5
      %v1669 = vrot.slane %v1668, 4
      %v1670 = vrot.slane %v1411, 5
      %v1671 = vsel %vm1349, %v1669, %v1670
      %v1672 = vrot.slane %v1670, 4
      %v1673 = vrot.slane %v1424, 5
      %v1674 = vsel %vm1349, %v1672, %v1673
      %v1675 = vrot.slane %v1625, 5
      %v1676 = vrot.slane %v1675, 4
      %v1677 = vrot.slane %v1413, 5
      %v1678 = vsel %vm1349, %v1676, %v1677
      %v1679 = vrot.slane %v1677, 4
      %v1680 = vrot.slane %v1425, 5
      %v1681 = vsel %vm1349, %v1679, %v1680
      %v1682 = vrot.slane %v1626, 5
      %v1683 = vrot.slane %v1682, 4
      %v1684 = vrot.slane %v1415, 5
      %v1685 = vsel %vm1349, %v1683, %v1684
      %v1686 = vrot.slane %v1684, 4
      %v1687 = vrot.slane %v1426, 5
      %v1688 = vsel %vm1349, %v1686, %v1687
      %v1689 = vrot.slane %v1627, 5
      %v1690 = vrot.slane %v1689, 4
      %v1691 = vrot.slane %v1417, 5
      %v1692 = vsel %vm1349, %v1690, %v1691
      %v1693 = vrot.slane %v1691, 4
      %v1694 = vrot.slane %v1427, 5
      %v1695 = vsel %vm1349, %v1693, %v1694
      %v1696 = vrot.slane %v1628, 5
      %v1697 = vrot.slane %v1696, 4
      %v1698 = vrot.slane %v1419, 5
      %v1699 = vsel %vm1349, %v1697, %v1698
      %v1700 = vrot.slane %v1698, 4
      %v1701 = vrot.slane %v1428, 5
      %v1702 = vsel %vm1349, %v1700, %v1701
      %v1703 = vrot.slane %v1629, 5
      %v1704 = vrot.slane %v1703, 4
      %v1705 = vrot.slane %v1421, 5
      %v1706 = vsel %vm1349, %v1704, %v1705
      %v1707 = vrot.slane %v1705, 4
      %v1708 = vrot.slane %v1429, 5
      %v1709 = vsel %vm1349, %v1707, %v1708
      %s1710 = scalar_lea.vmem [#allocation2], 24
      %v1711 = vld [vmem:[%s1710] sm:$0xf]
      %v1712 = vld [vmem:[%s1710 + $0x4] sm:$0xf]
      %v1713 = vld [vmem:[%s1710 + $0xc] sm:$0xf]
      %v1714 = vld [vmem:[%s1710 + $0x10] sm:$0xf]
      %v1715 = vld [vmem:[%s1710 + $0x18] sm:$0xf]
      %v1716 = vld [vmem:[%s1710 + $0x1c] sm:$0xf]
      %v1717 = vld [vmem:[%s1710 + $0x24] sm:$0xf]
      %v1718 = vld [vmem:[%s1710 + $0x28] sm:$0xf]
      %v1719 = vld [vmem:[%s1710 + $0x30] sm:$0xf]
      %v1720 = vld [vmem:[%s1710 + $0x34] sm:$0xf]
      %v1721 = vld [vmem:[%s1710 + $0x3c] sm:$0xf]
      %v1722 = vld [vmem:[%s1710 + $0x40] sm:$0xf]
      %v1723 = vld [vmem:[%s1710 + $0x48] sm:$0xf]
      %v1724 = vld [vmem:[%s1710 + $0x4c] sm:$0xf]
      %v1725 = vld [vmem:[%s1710 + $0x54] sm:$0xf]
      %v1726 = vld [vmem:[%s1710 + $0x58] sm:$0xf]
      %v1727 = vld [vmem:[%s1710 + $0x8] sm:$0x1]
      %v1728 = vld [vmem:[%s1710 + $0x14] sm:$0x1]
      %v1729 = vld [vmem:[%s1710 + $0x20] sm:$0x1]
      %v1730 = vld [vmem:[%s1710 + $0x2c] sm:$0x1]
      %v1731 = vld [vmem:[%s1710 + $0x38] sm:$0x1]
      %v1732 = vld [vmem:[%s1710 + $0x44] sm:$0x1]
      %v1733 = vld [vmem:[%s1710 + $0x50] sm:$0x1]
      %v1734 = vld [vmem:[%s1710 + $0x5c] sm:$0x1]
      %v1736 = vshrl.u32 %v1711, 16
      %v1738 = vrot.slane %v1736, 4
      %v1739 = vshll.u32 %v1711, 16
      %v1741 = vrot.slane %v1739, 5
      %v1742 = vor.u32 %v1738, %v1741
      %v1743 = vrot.slane %v1742, 4
      %v1745 = vshll.u32 %v1712, 16
      %v1747 = vrot.slane %v1745, 5
      %v1748 = vsel %vm1122, %v1743, %v1747
      %v1749 = vshrl.u32 %v1712, 16
      %v1751 = vrot.slane %v1749, 4
      %v1752 = vor.u32 %v1751, %v1747
      %v1753 = vrot.slane %v1752, 4
      %v1755 = vshll.u32 %v1727, 16
      %v1757 = vrot.slane %v1755, 5
      %v1758 = vsel %vm1122, %v1753, %v1757
      %v1760 = vshrl.u32 %v1713, 16
      %v1762 = vrot.slane %v1760, 4
      %v1763 = vshll.u32 %v1713, 16
      %v1765 = vrot.slane %v1763, 5
      %v1766 = vor.u32 %v1762, %v1765
      %v1767 = vrot.slane %v1766, 4
      %v1769 = vshll.u32 %v1714, 16
      %v1771 = vrot.slane %v1769, 5
      %v1772 = vsel %vm1122, %v1767, %v1771
      %v1773 = vshrl.u32 %v1714, 16
      %v1775 = vrot.slane %v1773, 4
      %v1776 = vor.u32 %v1775, %v1771
      %v1777 = vrot.slane %v1776, 4
      %v1779 = vshll.u32 %v1728, 16
      %v1781 = vrot.slane %v1779, 5
      %v1782 = vsel %vm1122, %v1777, %v1781
      %v1784 = vshrl.u32 %v1715, 16
      %v1786 = vrot.slane %v1784, 4
      %v1787 = vshll.u32 %v1715, 16
      %v1789 = vrot.slane %v1787, 5
      %v1790 = vor.u32 %v1786, %v1789
      %v1791 = vrot.slane %v1790, 4
      %v1793 = vshll.u32 %v1716, 16
      %v1795 = vrot.slane %v1793, 5
      %v1796 = vsel %vm1122, %v1791, %v1795
      %v1797 = vshrl.u32 %v1716, 16
      %v1799 = vrot.slane %v1797, 4
      %v1800 = vor.u32 %v1799, %v1795
      %v1801 = vrot.slane %v1800, 4
      %v1803 = vshll.u32 %v1729, 16
      %v1805 = vrot.slane %v1803, 5
      %v1806 = vsel %vm1122, %v1801, %v1805
      %v1808 = vshrl.u32 %v1717, 16
      %v1810 = vrot.slane %v1808, 4
      %v1811 = vshll.u32 %v1717, 16
      %v1813 = vrot.slane %v1811, 5
      %v1814 = vor.u32 %v1810, %v1813
      %v1815 = vrot.slane %v1814, 4
      %v1817 = vshll.u32 %v1718, 16
      %v1819 = vrot.slane %v1817, 5
      %v1820 = vsel %vm1122, %v1815, %v1819
      %v1821 = vshrl.u32 %v1718, 16
      %v1823 = vrot.slane %v1821, 4
      %v1824 = vor.u32 %v1823, %v1819
      %v1825 = vrot.slane %v1824, 4
      %v1827 = vshll.u32 %v1730, 16
      %v1829 = vrot.slane %v1827, 5
      %v1830 = vsel %vm1122, %v1825, %v1829
      %v1832 = vshrl.u32 %v1719, 16
      %v1834 = vrot.slane %v1832, 4
      %v1835 = vshll.u32 %v1719, 16
      %v1837 = vrot.slane %v1835, 5
      %v1838 = vor.u32 %v1834, %v1837
      %v1839 = vrot.slane %v1838, 4
      %v1841 = vshll.u32 %v1720, 16
      %v1843 = vrot.slane %v1841, 5
      %v1844 = vsel %vm1122, %v1839, %v1843
      %v1845 = vshrl.u32 %v1720, 16
      %v1847 = vrot.slane %v1845, 4
      %v1848 = vor.u32 %v1847, %v1843
      %v1849 = vrot.slane %v1848, 4
      %v1851 = vshll.u32 %v1731, 16
      %v1853 = vrot.slane %v1851, 5
      %v1854 = vsel %vm1122, %v1849, %v1853
      %v1856 = vshrl.u32 %v1721, 16
      %v1858 = vrot.slane %v1856, 4
      %v1859 = vshll.u32 %v1721, 16
      %v1861 = vrot.slane %v1859, 5
      %v1862 = vor.u32 %v1858, %v1861
      %v1863 = vrot.slane %v1862, 4
      %v1865 = vshll.u32 %v1722, 16
      %v1867 = vrot.slane %v1865, 5
      %v1868 = vsel %vm1122, %v1863, %v1867
      %v1869 = vshrl.u32 %v1722, 16
      %v1871 = vrot.slane %v1869, 4
      %v1872 = vor.u32 %v1871, %v1867
      %v1873 = vrot.slane %v1872, 4
      %v1875 = vshll.u32 %v1732, 16
      %v1877 = vrot.slane %v1875, 5
      %v1878 = vsel %vm1122, %v1873, %v1877
      %v1880 = vshrl.u32 %v1723, 16
      %v1882 = vrot.slane %v1880, 4
      %v1883 = vshll.u32 %v1723, 16
      %v1885 = vrot.slane %v1883, 5
      %v1886 = vor.u32 %v1882, %v1885
      %v1887 = vrot.slane %v1886, 4
      %v1889 = vshll.u32 %v1724, 16
      %v1891 = vrot.slane %v1889, 5
      %v1892 = vsel %vm1122, %v1887, %v1891
      %v1893 = vshrl.u32 %v1724, 16
      %v1895 = vrot.slane %v1893, 4
      %v1896 = vor.u32 %v1895, %v1891
      %v1897 = vrot.slane %v1896, 4
      %v1899 = vshll.u32 %v1733, 16
      %v1901 = vrot.slane %v1899, 5
      %v1902 = vsel %vm1122, %v1897, %v1901
      %v1904 = vshrl.u32 %v1725, 16
      %v1906 = vrot.slane %v1904, 4
      %v1907 = vshll.u32 %v1725, 16
      %v1909 = vrot.slane %v1907, 5
      %v1910 = vor.u32 %v1906, %v1909
      %v1911 = vrot.slane %v1910, 4
      %v1913 = vshll.u32 %v1726, 16
      %v1915 = vrot.slane %v1913, 5
      %v1916 = vsel %vm1122, %v1911, %v1915
      %v1917 = vshrl.u32 %v1726, 16
      %v1919 = vrot.slane %v1917, 4
      %v1920 = vor.u32 %v1919, %v1915
      %v1921 = vrot.slane %v1920, 4
      %v1923 = vshll.u32 %v1734, 16
      %v1925 = vrot.slane %v1923, 5
      %v1926 = vsel %vm1122, %v1921, %v1925
      %v1927 = vld [vmem:[%s1710] sm:$0xe]
      %v1928 = vld [vmem:[%s1710 + $0xc] sm:$0xe]
      %v1929 = vld [vmem:[%s1710 + $0x18] sm:$0xe]
      %v1930 = vld [vmem:[%s1710 + $0x24] sm:$0xe]
      %v1931 = vld [vmem:[%s1710 + $0x30] sm:$0xe]
      %v1932 = vld [vmem:[%s1710 + $0x3c] sm:$0xe]
      %v1933 = vld [vmem:[%s1710 + $0x48] sm:$0xe]
      %v1934 = vld [vmem:[%s1710 + $0x54] sm:$0xe]
      %v1959 = vrot.slane %v1927, 5
      %v1960 = vrot.slane %v1959, 4
      %v1961 = vrot.slane %v1712, 5
      %v1962 = vsel %vm1349, %v1960, %v1961
      %v1963 = vrot.slane %v1961, 4
      %v1964 = vrot.slane %v1727, 5
      %v1965 = vsel %vm1349, %v1963, %v1964
      %v1966 = vrot.slane %v1928, 5
      %v1967 = vrot.slane %v1966, 4
      %v1968 = vrot.slane %v1714, 5
      %v1969 = vsel %vm1349, %v1967, %v1968
      %v1970 = vrot.slane %v1968, 4
      %v1971 = vrot.slane %v1728, 5
      %v1972 = vsel %vm1349, %v1970, %v1971
      %v1973 = vrot.slane %v1929, 5
      %v1974 = vrot.slane %v1973, 4
      %v1975 = vrot.slane %v1716, 5
      %v1976 = vsel %vm1349, %v1974, %v1975
      %v1977 = vrot.slane %v1975, 4
      %v1978 = vrot.slane %v1729, 5
      %v1979 = vsel %vm1349, %v1977, %v1978
      %v1980 = vrot.slane %v1930, 5
      %v1981 = vrot.slane %v1980, 4
      %v1982 = vrot.slane %v1718, 5
      %v1983 = vsel %vm1349, %v1981, %v1982
      %v1984 = vrot.slane %v1982, 4
      %v1985 = vrot.slane %v1730, 5
      %v1986 = vsel %vm1349, %v1984, %v1985
      %v1987 = vrot.slane %v1931, 5
      %v1988 = vrot.slane %v1987, 4
      %v1989 = vrot.slane %v1720, 5
      %v1990 = vsel %vm1349, %v1988, %v1989
      %v1991 = vrot.slane %v1989, 4
      %v1992 = vrot.slane %v1731, 5
      %v1993 = vsel %vm1349, %v1991, %v1992
      %v1994 = vrot.slane %v1932, 5
      %v1995 = vrot.slane %v1994, 4
      %v1996 = vrot.slane %v1722, 5
      %v1997 = vsel %vm1349, %v1995, %v1996
      %v1998 = vrot.slane %v1996, 4
      %v1999 = vrot.slane %v1732, 5
      %v2000 = vsel %vm1349, %v1998, %v1999
      %v2001 = vrot.slane %v1933, 5
      %v2002 = vrot.slane %v2001, 4
      %v2003 = vrot.slane %v1724, 5
      %v2004 = vsel %vm1349, %v2002, %v2003
      %v2005 = vrot.slane %v2003, 4
      %v2006 = vrot.slane %v1733, 5
      %v2007 = vsel %vm1349, %v2005, %v2006
      %v2008 = vrot.slane %v1934, 5
      %v2009 = vrot.slane %v2008, 4
      %v2010 = vrot.slane %v1726, 5
      %v2011 = vsel %vm1349, %v2009, %v2010
      %v2012 = vrot.slane %v2010, 4
      %v2013 = vrot.slane %v1734, 5
      %v2014 = vsel %vm1349, %v2012, %v2013
      %v2023 = vunpack.c.l.b16 %v1096
      %v2024 = vunpack.c.l.b16 %v1097
      %v2025 = vunpack.c.l.b16 %v1098
      %v2026 = vunpack.c.l.b16 %v1099
      %v2027 = vunpack.c.l.b16 %v1100
      %v2028 = vunpack.c.l.b16 %v1101
      %v2029 = vunpack.c.l.b16 %v1102
      %v2030 = vunpack.c.l.b16 %v1103
      %v2031 = vunpack.c.l.b16 %v1104
      %v2032 = vunpack.c.l.b16 %v1105
      %v2033 = vunpack.c.l.b16 %v1106
      %v2034 = vunpack.c.l.b16 %v1107
      %v2035 = vunpack.c.l.b16 %v1108
      %v2036 = vunpack.c.l.b16 %v1109
      %v2037 = vunpack.c.l.b16 %v1110
      %v2038 = vunpack.c.l.b16 %v1111
      %v2039 = vpack.c.b16 %v2024, %v2023
      %v2040 = vpack.c.b16 %v2026, %v2025
      %v2041 = vpack.c.b16 %v2028, %v2027
      %v2042 = vpack.c.b16 %v2030, %v2029
      %v2043 = vpack.c.b16 %v2032, %v2031
      %v2044 = vpack.c.b16 %v2034, %v2033
      %v2045 = vpack.c.b16 %v2036, %v2035
      %v2046 = vpack.c.b16 %v2038, %v2037
      %v2047 = vunpack.c.l.b16 %v1136
      %v2048 = vunpack.c.l.b16 %v1146
      %v2049 = vunpack.c.l.b16 %v1160
      %v2050 = vunpack.c.l.b16 %v1170
      %v2051 = vunpack.c.l.b16 %v1184
      %v2052 = vunpack.c.l.b16 %v1194
      %v2053 = vunpack.c.l.b16 %v1208
      %v2054 = vunpack.c.l.b16 %v1218
      %v2055 = vunpack.c.l.b16 %v1232
      %v2056 = vunpack.c.l.b16 %v1242
      %v2057 = vunpack.c.l.b16 %v1256
      %v2058 = vunpack.c.l.b16 %v1266
      %v2059 = vunpack.c.l.b16 %v1280
      %v2060 = vunpack.c.l.b16 %v1290
      %v2061 = vunpack.c.l.b16 %v1304
      %v2062 = vunpack.c.l.b16 %v1314
      %v2063 = vpack.c.b16 %v2048, %v2047
      %v2064 = vpack.c.b16 %v2050, %v2049
      %v2065 = vpack.c.b16 %v2052, %v2051
      %v2066 = vpack.c.b16 %v2054, %v2053
      %v2067 = vpack.c.b16 %v2056, %v2055
      %v2068 = vpack.c.b16 %v2058, %v2057
      %v2069 = vpack.c.b16 %v2060, %v2059
      %v2070 = vpack.c.b16 %v2062, %v2061
      %2071 = vrot.lane.b32.xlu0 %v2063, 8
      %v2072 = vpop.permute.xlu0 %2071
      %2073 = vrot.lane.b32.xlu0 %v2064, 8
      %v2074 = vpop.permute.xlu0 %2073
      %2075 = vrot.lane.b32.xlu0 %v2065, 8
      %v2076 = vpop.permute.xlu0 %2075
      %2077 = vrot.lane.b32.xlu0 %v2066, 8
      %v2078 = vpop.permute.xlu0 %2077
      %2079 = vrot.lane.b32.xlu0 %v2067, 8
      %v2080 = vpop.permute.xlu0 %2079
      %2081 = vrot.lane.b32.xlu0 %v2068, 8
      %v2082 = vpop.permute.xlu0 %2081
      %2083 = vrot.lane.b32.xlu0 %v2069, 8
      %v2084 = vpop.permute.xlu0 %2083
      %2085 = vrot.lane.b32.xlu0 %v2070, 8
      %v2086 = vpop.permute.xlu0 %2085
      %v2087 = vunpack.c.l.b16 %v1353
      %v2088 = vunpack.c.l.b16 %v1356
      %v2089 = vunpack.c.l.b16 %v1360
      %v2090 = vunpack.c.l.b16 %v1363
      %v2091 = vunpack.c.l.b16 %v1367
      %v2092 = vunpack.c.l.b16 %v1370
      %v2093 = vunpack.c.l.b16 %v1374
      %v2094 = vunpack.c.l.b16 %v1377
      %v2095 = vunpack.c.l.b16 %v1381
      %v2096 = vunpack.c.l.b16 %v1384
      %v2097 = vunpack.c.l.b16 %v1388
      %v2098 = vunpack.c.l.b16 %v1391
      %v2099 = vunpack.c.l.b16 %v1395
      %v2100 = vunpack.c.l.b16 %v1398
      %v2101 = vunpack.c.l.b16 %v1402
      %v2102 = vunpack.c.l.b16 %v1405
      %v2103 = vpack.c.b16 %v2088, %v2087
      %v2104 = vpack.c.b16 %v2090, %v2089
      %v2105 = vpack.c.b16 %v2092, %v2091
      %v2106 = vpack.c.b16 %v2094, %v2093
      %v2107 = vpack.c.b16 %v2096, %v2095
      %v2108 = vpack.c.b16 %v2098, %v2097
      %v2109 = vpack.c.b16 %v2100, %v2099
      %v2110 = vpack.c.b16 %v2102, %v2101
      %2111 = vrot.lane.b32.xlu0 %v2103, 16
      %v2112 = vpop.permute.xlu0 %2111
      %2113 = vrot.lane.b32.xlu0 %v2104, 16
      %v2114 = vpop.permute.xlu0 %2113
      %2115 = vrot.lane.b32.xlu0 %v2105, 16
      %v2116 = vpop.permute.xlu0 %2115
      %2117 = vrot.lane.b32.xlu0 %v2106, 16
      %v2118 = vpop.permute.xlu0 %2117
      %2119 = vrot.lane.b32.xlu0 %v2107, 16
      %v2120 = vpop.permute.xlu0 %2119
      %2121 = vrot.lane.b32.xlu0 %v2108, 16
      %v2122 = vpop.permute.xlu0 %2121
      %2123 = vrot.lane.b32.xlu0 %v2109, 16
      %v2124 = vpop.permute.xlu0 %2123
      %2125 = vrot.lane.b32.xlu0 %v2110, 16
      %v2126 = vpop.permute.xlu0 %2125
      %v2135 = vunpack.c.l.b16 %v1406
      %v2136 = vunpack.c.l.b16 %v1407
      %v2137 = vunpack.c.l.b16 %v1408
      %v2138 = vunpack.c.l.b16 %v1409
      %v2139 = vunpack.c.l.b16 %v1410
      %v2140 = vunpack.c.l.b16 %v1411
      %v2141 = vunpack.c.l.b16 %v1412
      %v2142 = vunpack.c.l.b16 %v1413
      %v2143 = vunpack.c.l.b16 %v1414
      %v2144 = vunpack.c.l.b16 %v1415
      %v2145 = vunpack.c.l.b16 %v1416
      %v2146 = vunpack.c.l.b16 %v1417
      %v2147 = vunpack.c.l.b16 %v1418
      %v2148 = vunpack.c.l.b16 %v1419
      %v2149 = vunpack.c.l.b16 %v1420
      %v2150 = vunpack.c.l.b16 %v1421
      %v2151 = vpack.c.b16 %v2136, %v2135
      %v2152 = vpack.c.b16 %v2138, %v2137
      %v2153 = vpack.c.b16 %v2140, %v2139
      %v2154 = vpack.c.b16 %v2142, %v2141
      %v2155 = vpack.c.b16 %v2144, %v2143
      %v2156 = vpack.c.b16 %v2146, %v2145
      %v2157 = vpack.c.b16 %v2148, %v2147
      %v2158 = vpack.c.b16 %v2150, %v2149
      %2159 = vrot.lane.b32.xlu0 %v2151, 24
      %v2160 = vpop.permute.xlu0 %2159
      %2161 = vrot.lane.b32.xlu0 %v2152, 24
      %v2162 = vpop.permute.xlu0 %2161
      %2163 = vrot.lane.b32.xlu0 %v2153, 24
      %v2164 = vpop.permute.xlu0 %2163
      %2165 = vrot.lane.b32.xlu0 %v2154, 24
      %v2166 = vpop.permute.xlu0 %2165
      %2167 = vrot.lane.b32.xlu0 %v2155, 24
      %v2168 = vpop.permute.xlu0 %2167
      %2169 = vrot.lane.b32.xlu0 %v2156, 24
      %v2170 = vpop.permute.xlu0 %2169
      %2171 = vrot.lane.b32.xlu0 %v2157, 24
      %v2172 = vpop.permute.xlu0 %2171
      %2173 = vrot.lane.b32.xlu0 %v2158, 24
      %v2174 = vpop.permute.xlu0 %2173
      %v2175 = vunpack.c.l.b16 %v1443
      %v2176 = vunpack.c.l.b16 %v1453
      %v2177 = vunpack.c.l.b16 %v1467
      %v2178 = vunpack.c.l.b16 %v1477
      %v2179 = vunpack.c.l.b16 %v1491
      %v2180 = vunpack.c.l.b16 %v1501
      %v2181 = vunpack.c.l.b16 %v1515
      %v2182 = vunpack.c.l.b16 %v1525
      %v2183 = vunpack.c.l.b16 %v1539
      %v2184 = vunpack.c.l.b16 %v1549
      %v2185 = vunpack.c.l.b16 %v1563
      %v2186 = vunpack.c.l.b16 %v1573
      %v2187 = vunpack.c.l.b16 %v1587
      %v2188 = vunpack.c.l.b16 %v1597
      %v2189 = vunpack.c.l.b16 %v1611
      %v2190 = vunpack.c.l.b16 %v1621
      %v2191 = vpack.c.b16 %v2176, %v2175
      %v2192 = vpack.c.b16 %v2178, %v2177
      %v2193 = vpack.c.b16 %v2180, %v2179
      %v2194 = vpack.c.b16 %v2182, %v2181
      %v2195 = vpack.c.b16 %v2184, %v2183
      %v2196 = vpack.c.b16 %v2186, %v2185
      %v2197 = vpack.c.b16 %v2188, %v2187
      %v2198 = vpack.c.b16 %v2190, %v2189
      %2199 = vrot.lane.b32.xlu0 %v2191, 32
      %v2200 = vpop.permute.xlu0 %2199
      %2201 = vrot.lane.b32.xlu0 %v2192, 32
      %v2202 = vpop.permute.xlu0 %2201
      %2203 = vrot.lane.b32.xlu0 %v2193, 32
      %v2204 = vpop.permute.xlu0 %2203
      %2205 = vrot.lane.b32.xlu0 %v2194, 32
      %v2206 = vpop.permute.xlu0 %2205
      %2207 = vrot.lane.b32.xlu0 %v2195, 32
      %v2208 = vpop.permute.xlu0 %2207
      %2209 = vrot.lane.b32.xlu0 %v2196, 32
      %v2210 = vpop.permute.xlu0 %2209
      %2211 = vrot.lane.b32.xlu0 %v2197, 32
      %v2212 = vpop.permute.xlu0 %2211
      %2213 = vrot.lane.b32.xlu0 %v2198, 32
      %v2214 = vpop.permute.xlu0 %2213
      %v2215 = vunpack.c.l.b16 %v1657
      %v2216 = vunpack.c.l.b16 %v1660
      %v2217 = vunpack.c.l.b16 %v1664
      %v2218 = vunpack.c.l.b16 %v1667
      %v2219 = vunpack.c.l.b16 %v1671
      %v2220 = vunpack.c.l.b16 %v1674
      %v2221 = vunpack.c.l.b16 %v1678
      %v2222 = vunpack.c.l.b16 %v1681
      %v2223 = vunpack.c.l.b16 %v1685
      %v2224 = vunpack.c.l.b16 %v1688
      %v2225 = vunpack.c.l.b16 %v1692
      %v2226 = vunpack.c.l.b16 %v1695
      %v2227 = vunpack.c.l.b16 %v1699
      %v2228 = vunpack.c.l.b16 %v1702
      %v2229 = vunpack.c.l.b16 %v1706
      %v2230 = vunpack.c.l.b16 %v1709
      %v2231 = vpack.c.b16 %v2216, %v2215
      %v2232 = vpack.c.b16 %v2218, %v2217
      %v2233 = vpack.c.b16 %v2220, %v2219
      %v2234 = vpack.c.b16 %v2222, %v2221
      %v2235 = vpack.c.b16 %v2224, %v2223
      %v2236 = vpack.c.b16 %v2226, %v2225
      %v2237 = vpack.c.b16 %v2228, %v2227
      %v2238 = vpack.c.b16 %v2230, %v2229
      %2239 = vrot.lane.b32.xlu0 %v2231, 40
      %v2240 = vpop.permute.xlu0 %2239
      %2241 = vrot.lane.b32.xlu0 %v2232, 40
      %v2242 = vpop.permute.xlu0 %2241
      %2243 = vrot.lane.b32.xlu0 %v2233, 40
      %v2244 = vpop.permute.xlu0 %2243
      %2245 = vrot.lane.b32.xlu0 %v2234, 40
      %v2246 = vpop.permute.xlu0 %2245
      %2247 = vrot.lane.b32.xlu0 %v2235, 40
      %v2248 = vpop.permute.xlu0 %2247
      %2249 = vrot.lane.b32.xlu0 %v2236, 40
      %v2250 = vpop.permute.xlu0 %2249
      %2251 = vrot.lane.b32.xlu0 %v2237, 40
      %v2252 = vpop.permute.xlu0 %2251
      %2253 = vrot.lane.b32.xlu0 %v2238, 40
      %v2254 = vpop.permute.xlu0 %2253
      %v2263 = vunpack.c.l.b16 %v1711
      %v2264 = vunpack.c.l.b16 %v1712
      %v2265 = vunpack.c.l.b16 %v1713
      %v2266 = vunpack.c.l.b16 %v1714
      %v2267 = vunpack.c.l.b16 %v1715
      %v2268 = vunpack.c.l.b16 %v1716
      %v2269 = vunpack.c.l.b16 %v1717
      %v2270 = vunpack.c.l.b16 %v1718
      %v2271 = vunpack.c.l.b16 %v1719
      %v2272 = vunpack.c.l.b16 %v1720
      %v2273 = vunpack.c.l.b16 %v1721
      %v2274 = vunpack.c.l.b16 %v1722
      %v2275 = vunpack.c.l.b16 %v1723
      %v2276 = vunpack.c.l.b16 %v1724
      %v2277 = vunpack.c.l.b16 %v1725
      %v2278 = vunpack.c.l.b16 %v1726
      %v2279 = vpack.c.b16 %v2264, %v2263
      %v2280 = vpack.c.b16 %v2266, %v2265
      %v2281 = vpack.c.b16 %v2268, %v2267
      %v2282 = vpack.c.b16 %v2270, %v2269
      %v2283 = vpack.c.b16 %v2272, %v2271
      %v2284 = vpack.c.b16 %v2274, %v2273
      %v2285 = vpack.c.b16 %v2276, %v2275
      %v2286 = vpack.c.b16 %v2278, %v2277
      %2287 = vrot.lane.b32.xlu0 %v2279, 48
      %v2288 = vpop.permute.xlu0 %2287
      %2289 = vrot.lane.b32.xlu0 %v2280, 48
      %v2290 = vpop.permute.xlu0 %2289
      %2291 = vrot.lane.b32.xlu0 %v2281, 48
      %v2292 = vpop.permute.xlu0 %2291
      %2293 = vrot.lane.b32.xlu0 %v2282, 48
      %v2294 = vpop.permute.xlu0 %2293
      %2295 = vrot.lane.b32.xlu0 %v2283, 48
      %v2296 = vpop.permute.xlu0 %2295
      %2297 = vrot.lane.b32.xlu0 %v2284, 48
      %v2298 = vpop.permute.xlu0 %2297
      %2299 = vrot.lane.b32.xlu0 %v2285, 48
      %v2300 = vpop.permute.xlu0 %2299
      %2301 = vrot.lane.b32.xlu0 %v2286, 48
      %v2302 = vpop.permute.xlu0 %2301
      %v2303 = vunpack.c.l.b16 %v1748
      %v2304 = vunpack.c.l.b16 %v1758
      %v2305 = vunpack.c.l.b16 %v1772
      %v2306 = vunpack.c.l.b16 %v1782
      %v2307 = vunpack.c.l.b16 %v1796
      %v2308 = vunpack.c.l.b16 %v1806
      %v2309 = vunpack.c.l.b16 %v1820
      %v2310 = vunpack.c.l.b16 %v1830
      %v2311 = vunpack.c.l.b16 %v1844
      %v2312 = vunpack.c.l.b16 %v1854
      %v2313 = vunpack.c.l.b16 %v1868
      %v2314 = vunpack.c.l.b16 %v1878
      %v2315 = vunpack.c.l.b16 %v1892
      %v2316 = vunpack.c.l.b16 %v1902
      %v2317 = vunpack.c.l.b16 %v1916
      %v2318 = vunpack.c.l.b16 %v1926
      %v2319 = vpack.c.b16 %v2304, %v2303
      %v2320 = vpack.c.b16 %v2306, %v2305
      %v2321 = vpack.c.b16 %v2308, %v2307
      %v2322 = vpack.c.b16 %v2310, %v2309
      %v2323 = vpack.c.b16 %v2312, %v2311
      %v2324 = vpack.c.b16 %v2314, %v2313
      %v2325 = vpack.c.b16 %v2316, %v2315
      %v2326 = vpack.c.b16 %v2318, %v2317
      %2327 = vrot.lane.b32.xlu0 %v2319, 56
      %v2328 = vpop.permute.xlu0 %2327
      %2329 = vrot.lane.b32.xlu0 %v2320, 56
      %v2330 = vpop.permute.xlu0 %2329
      %2331 = vrot.lane.b32.xlu0 %v2321, 56
      %v2332 = vpop.permute.xlu0 %2331
      %2333 = vrot.lane.b32.xlu0 %v2322, 56
      %v2334 = vpop.permute.xlu0 %2333
      %2335 = vrot.lane.b32.xlu0 %v2323, 56
      %v2336 = vpop.permute.xlu0 %2335
      %2337 = vrot.lane.b32.xlu0 %v2324, 56
      %v2338 = vpop.permute.xlu0 %2337
      %2339 = vrot.lane.b32.xlu0 %v2325, 56
      %v2340 = vpop.permute.xlu0 %2339
      %2341 = vrot.lane.b32.xlu0 %v2326, 56
      %v2342 = vpop.permute.xlu0 %2341
      %v2343 = vunpack.c.l.b16 %v1962
      %v2344 = vunpack.c.l.b16 %v1965
      %v2345 = vunpack.c.l.b16 %v1969
      %v2346 = vunpack.c.l.b16 %v1972
      %v2347 = vunpack.c.l.b16 %v1976
      %v2348 = vunpack.c.l.b16 %v1979
      %v2349 = vunpack.c.l.b16 %v1983
      %v2350 = vunpack.c.l.b16 %v1986
      %v2351 = vunpack.c.l.b16 %v1990
      %v2352 = vunpack.c.l.b16 %v1993
      %v2353 = vunpack.c.l.b16 %v1997
      %v2354 = vunpack.c.l.b16 %v2000
      %v2355 = vunpack.c.l.b16 %v2004
      %v2356 = vunpack.c.l.b16 %v2007
      %v2357 = vunpack.c.l.b16 %v2011
      %v2358 = vunpack.c.l.b16 %v2014
      %v2359 = vpack.c.b16 %v2344, %v2343
      %v2360 = vpack.c.b16 %v2346, %v2345
      %v2361 = vpack.c.b16 %v2348, %v2347
      %v2362 = vpack.c.b16 %v2350, %v2349
      %v2363 = vpack.c.b16 %v2352, %v2351
      %v2364 = vpack.c.b16 %v2354, %v2353
      %v2365 = vpack.c.b16 %v2356, %v2355
      %v2366 = vpack.c.b16 %v2358, %v2357
      %2367 = vrot.lane.b32.xlu0 %v2359, 64
      %v2368 = vpop.permute.xlu0 %2367
      %2369 = vrot.lane.b32.xlu0 %v2360, 64
      %v2370 = vpop.permute.xlu0 %2369
      %2371 = vrot.lane.b32.xlu0 %v2361, 64
      %v2372 = vpop.permute.xlu0 %2371
      %2373 = vrot.lane.b32.xlu0 %v2362, 64
      %v2374 = vpop.permute.xlu0 %2373
      %2375 = vrot.lane.b32.xlu0 %v2363, 64
      %v2376 = vpop.permute.xlu0 %2375
      %2377 = vrot.lane.b32.xlu0 %v2364, 64
      %v2378 = vpop.permute.xlu0 %2377
      %2379 = vrot.lane.b32.xlu0 %v2365, 64
      %v2380 = vpop.permute.xlu0 %2379
      %2381 = vrot.lane.b32.xlu0 %v2366, 64
      %v2382 = vpop.permute.xlu0 %2381
      %vm2383 = vcmask 64512
      %v2386 = vsel %vm2383, %v2039, %v2072
      %v2389 = vsel %vm2383, %v2040, %v2074
      %v2392 = vsel %vm2383, %v2041, %v2076
      %v2395 = vsel %vm2383, %v2042, %v2078
      %v2398 = vsel %vm2383, %v2043, %v2080
      %v2401 = vsel %vm2383, %v2044, %v2082
      %v2404 = vsel %vm2383, %v2045, %v2084
      %v2407 = vsel %vm2383, %v2046, %v2086
      %vm2408 = vcmask 130048
      %v2410 = vsel %vm2408, %v2386, %v2112
      %v2412 = vsel %vm2408, %v2389, %v2114
      %v2414 = vsel %vm2408, %v2392, %v2116
      %v2416 = vsel %vm2408, %v2395, %v2118
      %v2418 = vsel %vm2408, %v2398, %v2120
      %v2420 = vsel %vm2408, %v2401, %v2122
      %v2422 = vsel %vm2408, %v2404, %v2124
      %v2424 = vsel %vm2408, %v2407, %v2126
      %vm2425 = vcmask 195584
      %v2427 = vsel %vm2425, %v2410, %v2160
      %v2429 = vsel %vm2425, %v2412, %v2162
      %v2431 = vsel %vm2425, %v2414, %v2164
      %v2433 = vsel %vm2425, %v2416, %v2166
      %v2435 = vsel %vm2425, %v2418, %v2168
      %v2437 = vsel %vm2425, %v2420, %v2170
      %v2439 = vsel %vm2425, %v2422, %v2172
      %v2441 = vsel %vm2425, %v2424, %v2174
      %vm2442 = vcmask 261120
      %v2444 = vsel %vm2442, %v2427, %v2200
      %v2446 = vsel %vm2442, %v2429, %v2202
      %v2448 = vsel %vm2442, %v2431, %v2204
      %v2450 = vsel %vm2442, %v2433, %v2206
      %v2452 = vsel %vm2442, %v2435, %v2208
      %v2454 = vsel %vm2442, %v2437, %v2210
      %v2456 = vsel %vm2442, %v2439, %v2212
      %v2458 = vsel %vm2442, %v2441, %v2214
      %vm2459 = vcmask 326656
      %v2461 = vsel %vm2459, %v2444, %v2240
      %v2463 = vsel %vm2459, %v2446, %v2242
      %v2465 = vsel %vm2459, %v2448, %v2244
      %v2467 = vsel %vm2459, %v2450, %v2246
      %v2469 = vsel %vm2459, %v2452, %v2248
      %v2471 = vsel %vm2459, %v2454, %v2250
      %v2473 = vsel %vm2459, %v2456, %v2252
      %v2475 = vsel %vm2459, %v2458, %v2254
      %vm2476 = vcmask 392192
      %v2478 = vsel %vm2476, %v2461, %v2288
      %v2480 = vsel %vm2476, %v2463, %v2290
      %v2482 = vsel %vm2476, %v2465, %v2292
      %v2484 = vsel %vm2476, %v2467, %v2294
      %v2486 = vsel %vm2476, %v2469, %v2296
      %v2488 = vsel %vm2476, %v2471, %v2298
      %v2490 = vsel %vm2476, %v2473, %v2300
      %v2492 = vsel %vm2476, %v2475, %v2302
      %vm2493 = vcmask 457728
      %v2495 = vsel %vm2493, %v2478, %v2328
      %v2497 = vsel %vm2493, %v2480, %v2330
      %v2499 = vsel %vm2493, %v2482, %v2332
      %v2501 = vsel %vm2493, %v2484, %v2334
      %v2503 = vsel %vm2493, %v2486, %v2336
      %v2505 = vsel %vm2493, %v2488, %v2338
      %v2507 = vsel %vm2493, %v2490, %v2340
      %v2509 = vsel %vm2493, %v2492, %v2342
      %vm2510 = vcmask 523264
      %v2512 = vsel %vm2510, %v2495, %v2368
      %v2514 = vsel %vm2510, %v2497, %v2370
      %v2516 = vsel %vm2510, %v2499, %v2372
      %v2518 = vsel %vm2510, %v2501, %v2374
      %v2520 = vsel %vm2510, %v2503, %v2376
      %v2522 = vsel %vm2510, %v2505, %v2378
      %v2524 = vsel %vm2510, %v2507, %v2380
      %v2526 = vsel %vm2510, %v2509, %v2382
      %v2527 = vld [vmem:[%s5] sm:$0xf]
      %v2528 = vld [vmem:[%s5 + $0x4] sm:$0xf]
      %v2529 = vld [vmem:[%s5 + $0x8] sm:$0xf]
      %v2530 = vld [vmem:[%s5 + $0xc] sm:$0xf]
      %v2531 = vld [vmem:[%s5 + $0x10] sm:$0xf]
      %v2532 = vld [vmem:[%s5 + $0x14] sm:$0xf]
      %v2533 = vld [vmem:[%s5 + $0x18] sm:$0xf]
      %v2534 = vld [vmem:[%s5 + $0x1c] sm:$0xf]
      %v2535 = vld [vmem:[%s5 + $0x20] sm:$0xf]
      %v2536 = vld [vmem:[%s6] sm:$0x1]
      %v2538 = vlaneseq
      %v2539 = vshrl.u32 %v2538, 7
      %v2540 = vsub.s32 0, %v2539
      %v2541 = vrot.slane %v2536, %v2540
      %v2552 = vunpack.c.l.b16 %v2527
      %v2553 = vunpack.c.l.b16 %v2528
      %v2554 = vunpack.c.l.b16 %v2529
      %v2555 = vunpack.c.l.b16 %v2530
      %v2556 = vunpack.c.l.b16 %v2531
      %v2557 = vunpack.c.l.b16 %v2532
      %v2558 = vunpack.c.l.b16 %v2533
      %v2559 = vunpack.c.l.b16 %v2534
      %v2560 = vunpack.c.l.b16 %v2535
      %v2561 = vpack.c.b16 %v2553, %v2552
      %v2562 = vpack.c.b16 %v2555, %v2554
      %v2563 = vpack.c.b16 %v2557, %v2556
      %v2564 = vpack.c.b16 %v2559, %v2558
      %v2565 = vpack.c.b16 %v2560, %v2560
      %vm2570 = vcmask 588800
      %v2571 = vsel %vm2570, %v2512, 0
      %v2573 = vsel %vm2570, %v2514, 0
      %v2575 = vsel %vm2570, %v2516, 0
      %v2577 = vsel %vm2570, %v2518, 0
      %v2579 = vsel %vm2570, %v2520, 0
      %v2581 = vsel %vm2570, %v2522, 0
      %v2583 = vsel %vm2570, %v2524, 0
      %v2585 = vsel %vm2570, %v2526, 0
      %vm2587 = vcmask 1043456
      %v2589 = vsel %vm2587, %v2565, 0
      %2591 = vmatprep.subr.bf16.mxu0 0
      %2592 = vmatpush1.bf16.msra.mxu0 0
      %2593 = vmatprep.subr.bf16.mxu0 0
      %2594 = vmatpush1.bf16.msra.mxu0 0
      %2595 = vmatprep.subr.bf16.mxu0 0
      %2596 = vmatpush1.bf16.msra.mxu0 0
      %2597 = vmatprep.subr.bf16.mxu0 0
      %2598 = vmatpush1.bf16.msra.mxu0 %v2589
      %2599 = vmatprep.subr.bf16.mxu0 0
      %2600 = vmatpush1.bf16.msra.mxu0 %v2564
      %2601 = vmatprep.subr.bf16.mxu0 0
      %2602 = vmatpush1.bf16.msra.mxu0 %v2563
      %2603 = vmatprep.subr.bf16.mxu0 0
      %2604 = vmatpush1.bf16.msra.mxu0 %v2562
      %2605 = vmatprep.subr.bf16.mxu0 0
      %2606 = vmatpush1.bf16.msra.mxu0 %v2561
      %2607 = vmatprep.subr.bf16.mxu0 0
      %2608 = vmatpush2.bf16.msra.mxu0 0
      %2609 = vmatprep.subr.bf16.mxu0 0
      %2610 = vmatpush2.bf16.msra.mxu0 0
      %2611 = vmatprep.subr.bf16.mxu0 0
      %2612 = vmatpush2.bf16.msra.mxu0 0
      %2613 = vmatprep.subr.bf16.mxu0 0
      %2614 = vmatpush2.bf16.msra.mxu0 0
      %2615 = vmatprep.subr.bf16.mxu0 0
      %2616 = vmatpush2.bf16.msra.mxu0 0
      %2617 = vmatprep.subr.bf16.mxu0 0
      %2618 = vmatpush2.bf16.msra.mxu0 0
      %2619 = vmatprep.subr.bf16.mxu0 0
      %2620 = vmatpush2.bf16.msra.mxu0 0
      %2621 = vmatprep.subr.bf16.mxu0 0
      %2622 = vmatpush2.bf16.msra.mxu0 0
      %2623 = vmatprep.mubr.bf16.mxu0 0
      %2624 = vmatmul.mubr.bf16.gmra.mxu0 %v2571
      %v2625 = vpop.f32.mrf.mxu0
      %v2626 = vadd.f32 %v2541, %v2625
      %v2627 = vpop.f32.mrf.mxu0
      %v2628 = vpop.f32.mrf.mxu0
      %v2629 = vadd.f32 %v2541, %v2628
      %v2630 = vpop.f32.mrf.mxu0
      %2631 = vmatprep.mubr.bf16.mxu0 0
      %2632 = vmatmul.mubr.bf16.gmra.mxu0 %v2573
      %v2633 = vpop.f32.mrf.mxu0
      %v2634 = vadd.f32 %v2541, %v2633
      %v2635 = vpop.f32.mrf.mxu0
      %v2636 = vpop.f32.mrf.mxu0
      %v2637 = vadd.f32 %v2541, %v2636
      %v2638 = vpop.f32.mrf.mxu0
      %2639 = vmatprep.mubr.bf16.mxu0 0
      %2640 = vmatmul.mubr.bf16.gmra.mxu0 %v2575
      %v2641 = vpop.f32.mrf.mxu0
      %v2642 = vadd.f32 %v2541, %v2641
      %v2643 = vpop.f32.mrf.mxu0
      %v2644 = vpop.f32.mrf.mxu0
      %v2645 = vadd.f32 %v2541, %v2644
      %v2646 = vpop.f32.mrf.mxu0
      %2647 = vmatprep.mubr.bf16.mxu0 0
      %2648 = vmatmul.mubr.bf16.gmra.mxu0 %v2577
      %v2649 = vpop.f32.mrf.mxu0
      %v2650 = vadd.f32 %v2541, %v2649
      %v2651 = vpop.f32.mrf.mxu0
      %v2652 = vpop.f32.mrf.mxu0
      %v2653 = vadd.f32 %v2541, %v2652
      %v2654 = vpop.f32.mrf.mxu0
      %2655 = vmatprep.mubr.bf16.mxu0 0
      %2656 = vmatmul.mubr.bf16.gmra.mxu0 %v2579
      %v2657 = vpop.f32.mrf.mxu0
      %v2658 = vadd.f32 %v2541, %v2657
      %v2659 = vpop.f32.mrf.mxu0
      %v2660 = vpop.f32.mrf.mxu0
      %v2661 = vadd.f32 %v2541, %v2660
      %v2662 = vpop.f32.mrf.mxu0
      %2663 = vmatprep.mubr.bf16.mxu0 0
      %2664 = vmatmul.mubr.bf16.gmra.mxu0 %v2581
      %v2665 = vpop.f32.mrf.mxu0
      %v2666 = vadd.f32 %v2541, %v2665
      %v2667 = vpop.f32.mrf.mxu0
      %v2668 = vpop.f32.mrf.mxu0
      %v2669 = vadd.f32 %v2541, %v2668
      %v2670 = vpop.f32.mrf.mxu0
      %2671 = vmatprep.mubr.bf16.mxu0 0
      %2672 = vmatmul.mubr.bf16.gmra.mxu0 %v2583
      %v2673 = vpop.f32.mrf.mxu0
      %v2674 = vadd.f32 %v2541, %v2673
      %v2675 = vpop.f32.mrf.mxu0
      %v2676 = vpop.f32.mrf.mxu0
      %v2677 = vadd.f32 %v2541, %v2676
      %v2678 = vpop.f32.mrf.mxu0
      %2679 = vmatprep.mubr.bf16.mxu0 0
      %2680 = vmatmul.mubr.bf16.gmra.mxu0 %v2585
      %v2681 = vpop.f32.mrf.mxu0
      %v2682 = vadd.f32 %v2541, %v2681
      %v2683 = vpop.f32.mrf.mxu0
      %v2684 = vpop.f32.mrf.mxu0
      %v2685 = vadd.f32 %v2541, %v2684
      %v2686 = vpop.f32.mrf.mxu0
      %2687 = vdwg.mxu0
      %v2688 = vld [vmem:[%s554] sm:$0xff]
      %v2689 = vld [vmem:[%s554 + $0x8] sm:$0xff]
      %v2690 = vld [vmem:[%s554 + $0x10] sm:$0xff]
      %v2691 = vld [vmem:[%s554 + $0x18] sm:$0xff]
      %v2692 = vld [vmem:[%s554 + $0x20] sm:$0xff]
      %v2693 = vld [vmem:[%s554 + $0x28] sm:$0xff]
      %v2694 = vld [vmem:[%s554 + $0x30] sm:$0xff]
      %v2695 = vld [vmem:[%s554 + $0x38] sm:$0xff]
      %v2696 = vld [vmem:[%s554 + $0x40] sm:$0xff]
      %v2697 = vld [vmem:[%s554 + $0x48] sm:$0xff]
      %v2698 = vld [vmem:[%s554 + $0x50] sm:$0xff]
      %v2699 = vld [vmem:[%s554 + $0x58] sm:$0xff]
      %v2700 = vld [vmem:[%s554 + $0x60] sm:$0xff]
      %v2701 = vld [vmem:[%s554 + $0x68] sm:$0xff]
      %v2702 = vld [vmem:[%s554 + $0x70] sm:$0xff]
      %v2703 = vld [vmem:[%s554 + $0x78] sm:$0xff]
      %v2704 = vpack.c.bf16 %v2689, %v2688
      %v2705 = vpack.c.bf16 %v2691, %v2690
      %v2706 = vpack.c.bf16 %v2693, %v2692
      %v2707 = vpack.c.bf16 %v2695, %v2694
      %v2708 = vpack.c.bf16 %v2697, %v2696
      %v2709 = vpack.c.bf16 %v2699, %v2698
      %v2710 = vpack.c.bf16 %v2701, %v2700
      %v2711 = vpack.c.bf16 %v2703, %v2702
      %v2712 = vld [vmem:[%s8] sm:$0x3]
      %v2713 = vld [vmem:[%s9] sm:$0x1]
      %v2715 = vlaneseq
      %v2716 = vshrl.u32 %v2715, 7
      %v2717 = vsub.s32 0, %v2716
      %v2718 = vrot.slane %v2713, %v2717
      %vm2720 = vcmask 31744
      %v2722 = vsel %vm2720, %v2704, 0
      %v2725 = vsel %vm2720, %v2705, 0
      %v2728 = vsel %vm2720, %v2706, 0
      %v2731 = vsel %vm2720, %v2707, 0
      %v2734 = vsel %vm2720, %v2708, 0
      %v2737 = vsel %vm2720, %v2709, 0
      %v2740 = vsel %vm2720, %v2710, 0
      %v2743 = vsel %vm2720, %v2711, 0
      %vm2745 = vcmask 1041408
      %v2747 = vsel %vm2745, %v2712, 0
      %2749 = vmatprep.subr.bf16.mxu0 0
      %2750 = vmatpush1.bf16.msra.mxu0 0
      %2751 = vmatprep.subr.bf16.mxu0 0
      %2752 = vmatpush1.bf16.msra.mxu0 0
      %2753 = vmatprep.subr.bf16.mxu0 0
      %2754 = vmatpush1.bf16.msra.mxu0 0
      %2755 = vmatprep.subr.bf16.mxu0 0
      %2756 = vmatpush1.bf16.msra.mxu0 0
      %2757 = vmatprep.subr.bf16.mxu0 0
      %2758 = vmatpush1.bf16.msra.mxu0 0
      %2759 = vmatprep.subr.bf16.mxu0 0
      %2760 = vmatpush1.bf16.msra.mxu0 0
      %2761 = vmatprep.subr.bf16.mxu0 0
      %2762 = vmatpush1.bf16.msra.mxu0 0
      %2763 = vmatprep.subr.bf16.mxu0 0
      %2764 = vmatpush1.bf16.msra.mxu0 %v2747
      %2765 = vmatprep.subr.bf16.mxu0 0
      %2766 = vmatpush2.bf16.msra.mxu0 0
      %2767 = vmatprep.subr.bf16.mxu0 0
      %2768 = vmatpush2.bf16.msra.mxu0 0
      %2769 = vmatprep.subr.bf16.mxu0 0
      %2770 = vmatpush2.bf16.msra.mxu0 0
      %2771 = vmatprep.subr.bf16.mxu0 0
      %2772 = vmatpush2.bf16.msra.mxu0 0
      %2773 = vmatprep.subr.bf16.mxu0 0
      %2774 = vmatpush2.bf16.msra.mxu0 0
      %2775 = vmatprep.subr.bf16.mxu0 0
      %2776 = vmatpush2.bf16.msra.mxu0 0
      %2777 = vmatprep.subr.bf16.mxu0 0
      %2778 = vmatpush2.bf16.msra.mxu0 0
      %2779 = vmatprep.subr.bf16.mxu0 0
      %2780 = vmatpush2.bf16.msra.mxu0 0
      %2781 = vmatprep.mubr.bf16.mxu0 0
      %2782 = vmatmul.mubr.bf16.gmra.mxu0 %v2722
      %v2783 = vpop.f32.mrf.mxu0
      %v2784 = vadd.f32 %v2718, %v2783
      %v2785 = vpop.f32.mrf.mxu0
      %v2786 = vpop.f32.mrf.mxu0
      %v2787 = vadd.f32 %v2718, %v2786
      %v2788 = vpop.f32.mrf.mxu0
      %2789 = vmatprep.mubr.bf16.mxu0 0
      %2790 = vmatmul.mubr.bf16.gmra.mxu0 %v2725
      %v2791 = vpop.f32.mrf.mxu0
      %v2792 = vadd.f32 %v2718, %v2791
      %v2793 = vpop.f32.mrf.mxu0
      %v2794 = vpop.f32.mrf.mxu0
      %v2795 = vadd.f32 %v2718, %v2794
      %v2796 = vpop.f32.mrf.mxu0
      %2797 = vmatprep.mubr.bf16.mxu0 0
      %2798 = vmatmul.mubr.bf16.gmra.mxu0 %v2728
      %v2799 = vpop.f32.mrf.mxu0
      %v2800 = vadd.f32 %v2718, %v2799
      %v2801 = vpop.f32.mrf.mxu0
      %v2802 = vpop.f32.mrf.mxu0
      %v2803 = vadd.f32 %v2718, %v2802
      %v2804 = vpop.f32.mrf.mxu0
      %2805 = vmatprep.mubr.bf16.mxu0 0
      %2806 = vmatmul.mubr.bf16.gmra.mxu0 %v2731
      %v2807 = vpop.f32.mrf.mxu0
      %v2808 = vadd.f32 %v2718, %v2807
      %v2809 = vpop.f32.mrf.mxu0
      %v2810 = vpop.f32.mrf.mxu0
      %v2811 = vadd.f32 %v2718, %v2810
      %v2812 = vpop.f32.mrf.mxu0
      %2813 = vmatprep.mubr.bf16.mxu0 0
      %2814 = vmatmul.mubr.bf16.gmra.mxu0 %v2734
      %v2815 = vpop.f32.mrf.mxu0
      %v2816 = vadd.f32 %v2718, %v2815
      %v2817 = vpop.f32.mrf.mxu0
      %v2818 = vpop.f32.mrf.mxu0
      %v2819 = vadd.f32 %v2718, %v2818
      %v2820 = vpop.f32.mrf.mxu0
      %2821 = vmatprep.mubr.bf16.mxu0 0
      %2822 = vmatmul.mubr.bf16.gmra.mxu0 %v2737
      %v2823 = vpop.f32.mrf.mxu0
      %v2824 = vadd.f32 %v2718, %v2823
      %v2825 = vpop.f32.mrf.mxu0
      %v2826 = vpop.f32.mrf.mxu0
      %v2827 = vadd.f32 %v2718, %v2826
      %v2828 = vpop.f32.mrf.mxu0
      %2829 = vmatprep.mubr.bf16.mxu0 0
      %2830 = vmatmul.mubr.bf16.gmra.mxu0 %v2740
      %v2831 = vpop.f32.mrf.mxu0
      %v2832 = vadd.f32 %v2718, %v2831
      %v2833 = vpop.f32.mrf.mxu0
      %v2834 = vpop.f32.mrf.mxu0
      %v2835 = vadd.f32 %v2718, %v2834
      %v2836 = vpop.f32.mrf.mxu0
      %2837 = vmatprep.mubr.bf16.mxu0 0
      %2838 = vmatmul.mubr.bf16.gmra.mxu0 %v2743
      %v2839 = vpop.f32.mrf.mxu0
      %v2840 = vadd.f32 %v2718, %v2839
      %v2841 = vpop.f32.mrf.mxu0
      %v2842 = vpop.f32.mrf.mxu0
      %v2843 = vadd.f32 %v2718, %v2842
      %v2844 = vpop.f32.mrf.mxu0
      %2845 = vdwg.mxu0
      %v2846 = vadd.f32 %v2626, %v2784
      %v2847 = vadd.f32 %v2629, %v2787
      %v2848 = vadd.f32 %v2634, %v2792
      %v2849 = vadd.f32 %v2637, %v2795
      %v2850 = vadd.f32 %v2642, %v2800
      %v2851 = vadd.f32 %v2645, %v2803
      %v2852 = vadd.f32 %v2650, %v2808
      %v2853 = vadd.f32 %v2653, %v2811
      %v2854 = vadd.f32 %v2658, %v2816
      %v2855 = vadd.f32 %v2661, %v2819
      %v2856 = vadd.f32 %v2666, %v2824
      %v2857 = vadd.f32 %v2669, %v2827
      %v2858 = vadd.f32 %v2674, %v2832
      %v2859 = vadd.f32 %v2677, %v2835
      %v2860 = vadd.f32 %v2682, %v2840
      %v2861 = vadd.f32 %v2685, %v2843
      %2862 = vst.msk [vmem:[%s565] sm:$0xff] %vm2383, %v2846
      %2863 = vst.msk [vmem:[%s565 + $0x8] sm:$0xff] %vm2383, %v2847
      %2864 = vst.msk [vmem:[%s565 + $0x10] sm:$0xff] %vm2383, %v2848
      %2865 = vst.msk [vmem:[%s565 + $0x18] sm:$0xff] %vm2383, %v2849
      %2866 = vst.msk [vmem:[%s565 + $0x20] sm:$0xff] %vm2383, %v2850
      %2867 = vst.msk [vmem:[%s565 + $0x28] sm:$0xff] %vm2383, %v2851
      %2868 = vst.msk [vmem:[%s565 + $0x30] sm:$0xff] %vm2383, %v2852
      %2869 = vst.msk [vmem:[%s565 + $0x38] sm:$0xff] %vm2383, %v2853
      %2870 = vst.msk [vmem:[%s565 + $0x40] sm:$0xff] %vm2383, %v2854
      %2871 = vst.msk [vmem:[%s565 + $0x48] sm:$0xff] %vm2383, %v2855
      %2872 = vst.msk [vmem:[%s565 + $0x50] sm:$0xff] %vm2383, %v2856
      %2873 = vst.msk [vmem:[%s565 + $0x58] sm:$0xff] %vm2383, %v2857
      %2874 = vst.msk [vmem:[%s565 + $0x60] sm:$0xff] %vm2383, %v2858
      %2875 = vst.msk [vmem:[%s565 + $0x68] sm:$0xff] %vm2383, %v2859
      %2876 = vst.msk [vmem:[%s565 + $0x70] sm:$0xff] %vm2383, %v2860
      %2877 = vst.msk [vmem:[%s565 + $0x78] sm:$0xff] %vm2383, %v2861
      %s2878 = smul.u32 8, %s26
      %p2879 = scmp.lt.s32.totalorder %s25, 1
      %s2880 = scalar_select %p2879, %s25, 1
      %p2881 = scmp.lt.s32.totalorder %s2878, 15
      %s2882 = scalar_select %p2881, %s2878, 15
      %s2883 = smul.addr %s2882, 2
      %s2884 = smul.addr %s2880, 32
      %s2885 = sadd.s32 %s2883, %s2884
      %s2886 = smul.addr %s2885, 8
      %s2887 = scalar_lea.vmem %s10, %s2886
      // Predicated region
      $region61: #{preact_basic.5} parent=59 // pred_check
        %p2888 = pneg %p307
      $region62: #{preact_basic.5} parent=59 // pred_check_branch
        %2890 = sbr.rel (%p2888) target = $region64
      $region63: #{preact_basic.5} parent=59 // pred_region
        %s2891 = smul.u32 8, %s26
      $region64: #{preact_basic.5} parent=59 // pred_fallthru
        _
    $region60: #{preact_basic.5} parent=5 // pred_fallthru
      _
    %p2892 = scmp.le.s32.totalorder 2, %s16
    // Predicated region
    $region65: #{preact_basic.5} parent=5 // pred_check
      %p2893 = pneg %p2892
    $region66: #{preact_basic.5} parent=5 // pred_check_branch
      %2895 = sbr.rel (%p2893) target = $region68
    $region67: #{preact_basic.5} parent=5 // pred_region
      %s2896 = ssub.s32 %s16, 2
      // Predicated region
      $region69: #{preact_basic.5} parent=67 // pred_check
        %p2897 = pneg %p313
      $region70: #{preact_basic.5} parent=67 // pred_check_branch
        %2899 = sbr.rel (%p2897) target = $region72
      $region71: #{preact_basic.5} parent=67 // pred_region
        %s2900 = smul.u32 8, %s28
        %p2901 = scmp.lt.s32.totalorder %s27, 1
        %s2902 = scalar_select %p2901, %s27, 1
        %p2903 = scmp.lt.s32.totalorder %s2900, 15
        %s2904 = scalar_select %p2903, %s2900, 15
        %s2905 = smul.addr %s2904, 2
        %s2906 = smul.addr %s2902, 32
        %s2907 = sadd.s32 %s2905, %s2906
        %s2908 = smul.addr %s2907, 8
        %s2909 = scalar_lea.vmem %s10, %s2908
      $region72: #{preact_basic.5} parent=67 // pred_fallthru
        _
    $region68: #{preact_basic.5} parent=5 // pred_fallthru
      _
  $region6: #{preact_basic.5} parent=0 // loop_footer
    %s20 = sadd.s32 1, %s16
  $region7: #{preact_basic.5} parent=0 // loop_footer_branch
    %15 = sbr.rel target = $region3
  $region8: #{preact_basic.5} parent=0 // loop_exit
    _

</llo_original>
